<compile_context>
chip_gen: v6e
topology: v6e:2x2x1
jax: 0.10.0
libtpu: 0.0.40
codegen_flags: <defaults>
</compile_context>

<pallas_src>
import math
from functools import partial

import jax
import jax.numpy as jnp
from jax import lax
from jax.experimental import pallas as pl
from jax.experimental.pallas import tpu as pltpu


# ------------------------------ tiling helpers ------------------------------

def _pick_tile(dim, candidates):
    """Largest candidate that evenly divides `dim`, else the full dim."""
    for c in candidates:
        if dim % c == 0:
            return c
    return dim


_ROW_TILES = (256, 128, 64, 32, 16, 8)   # multiples of 8 (sublane)
_COL_TILES = (256, 128)                  # 256 first: matches v6e/v7x MXU, caps v7x VMEM
_K_TILES = (512, 256, 128)               # contraction tiles

_VMEM_LIMIT = 48 * 1024 * 1024           # explicit scoped-VMEM budget (safe on v5e/v6e/v7x)


# ------------------------------ Pallas kernels ------------------------------

def _make_ln_linear_kernel(activation):
    """Fused LayerNorm + Linear (+ optional tanh-GELU).

    LayerNorm is computed once per row tile (j == 0) and cached in VMEM
    scratch; every output-column tile j reuses it.
    """

    def kernel(x_ref, g_ref, bln_ref, w_ref, b_ref, o_ref, xn_ref):
        @pl.when(pl.program_id(1) == 0)
        def _():
            x = x_ref[...].astype(jnp.float32)                   # (tm, Din)
            mean = jnp.mean(x, axis=-1, keepdims=True)
            var = jnp.mean(jnp.square(x - mean), axis=-1, keepdims=True)
            xn = (x - mean) * lax.rsqrt(var + 1e-5)
            xn = xn * g_ref[...].astype(jnp.float32) + bln_ref[...].astype(jnp.float32)
            xn_ref[...] = xn.astype(xn_ref.dtype)

        acc = jnp.dot(xn_ref[...], w_ref[...],
                      preferred_element_type=jnp.float32)         # (tm, tn)
        acc = acc + b_ref[...].astype(jnp.float32)
        if activation == "gelu_tanh":
            c = math.sqrt(2.0 / math.pi)
            acc = 0.5 * acc * (1.0 + jnp.tanh(c * (acc + 0.044715 * acc * acc * acc)))
        o_ref[...] = acc.astype(o_ref.dtype)

    return kernel


def _linear_residual_kernel(x_ref, w_ref, b_ref, res_ref, o_ref, acc_ref):
    """Tiled matmul with K-axis accumulation, bias and fused residual add."""
    k = pl.program_id(2)

    @pl.when(k == 0)
    def _():
        acc_ref[...] = jnp.zeros_like(acc_ref)

    acc_ref[...] += jnp.dot(x_ref[...], w_ref[...],
                            preferred_element_type=jnp.float32)

    @pl.when(k == pl.num_programs(2) - 1)
    def _():
        out = (acc_ref[...]
               + b_ref[...].astype(jnp.float32)
               + res_ref[...].astype(jnp.float32))
        o_ref[...] = out.astype(o_ref.dtype)


def _ln_lm_head_kernel(x_ref, g_ref, bln_ref, w_ref, o_ref, xn_ref):
    """Fused final LayerNorm + tied lm_head (x @ wte.T).

    LN cached per row tile; contraction done with dot_general on the last dims
    of both operands so wte rows feed the MXU without a transpose/relayout.
    """
    @pl.when(pl.program_id(1) == 0)
    def _():
        x = x_ref[...].astype(jnp.float32)                        # (tm, D)
        mean = jnp.mean(x, axis=-1, keepdims=True)
        var = jnp.mean(jnp.square(x - mean), axis=-1, keepdims=True)
        xn = (x - mean) * lax.rsqrt(var + 1e-5)
        xn = xn * g_ref[...].astype(jnp.float32) + bln_ref[...].astype(jnp.float32)
        xn_ref[...] = xn.astype(xn_ref.dtype)

    acc = lax.dot_general(xn_ref[...], w_ref[...],                # w block: (tn, D)
                          (((1,), (1,)), ((), ())),
                          preferred_element_type=jnp.float32)
    o_ref[...] = acc.astype(o_ref.dtype)


def _attention_kernel(q_ref, k_ref, v_ref, o_ref, att_ref, *, scale):
    """Causal attention for one (batch, head, q-tile) grid step.

    Per-step VMEM footprint is O(tq * T) instead of O(H * T * T); the att row
    block must stay whole so the module's attn_dict can be emitted exactly.
    """
    tq, _ = q_ref.shape
    T = k_ref.shape[0]
    qi = pl.program_id(2)

    q = q_ref[...]                                                # (tq, dh)
    k = k_ref[...]                                                # (T, dh)
    v = v_ref[...]                                                # (T, dh)

    s = lax.dot_general(q, k, (((1,), (1,)), ((), ())),
                        preferred_element_type=jnp.float32)       # (tq, T)
    s = s * scale
    row = qi * tq + lax.broadcasted_iota(jnp.int32, (tq, T), 0)
    col = lax.broadcasted_iota(jnp.int32, (tq, T), 1)
    s = jnp.where(col <= row, s, -jnp.inf)                        # causal mask

    m = jnp.max(s, axis=-1, keepdims=True)
    e = jnp.exp(s - m)
    denom = jnp.sum(e, axis=-1, keepdims=True)
    att = e * pl.reciprocal(denom, approx=True)                   # EUP reciprocal

    out = jnp.dot(att.astype(v.dtype), v,
                  preferred_element_type=jnp.float32)             # (tq, dh)
    o_ref[...] = out.astype(o_ref.dtype)
    att_ref[...] = att.astype(att_ref.dtype)


# ------------------------------ kernel wrappers ------------------------------

def ln_linear(x, g, b_ln, w, b, activation=None):
    """y = Linear(LayerNorm(x)); optional fused tanh-GELU."""
    N, Din = x.shape
    Dout = w.shape[1]
    tm = _pick_tile(N, _ROW_TILES)
    tn = _pick_tile(Dout, _COL_TILES)
    return pl.pallas_call(
        _make_ln_linear_kernel(activation),
        out_shape=jax.ShapeDtypeStruct((N, Dout), x.dtype),
        grid=(N // tm, Dout // tn),
        in_specs=[
            pl.BlockSpec((tm, Din), lambda i, j: (i, 0)),
            pl.BlockSpec((1, Din), lambda i, j: (0, 0)),
            pl.BlockSpec((1, Din), lambda i, j: (0, 0)),
            pl.BlockSpec((Din, tn), lambda i, j: (0, j)),
            pl.BlockSpec((1, tn), lambda i, j: (0, j)),
        ],
        out_specs=pl.BlockSpec((tm, tn), lambda i, j: (i, j)),
        scratch_shapes=[pltpu.VMEM((tm, Din), x.dtype)],
        compiler_params=pltpu.CompilerParams(
            dimension_semantics=("parallel", "arbitrary"),
            vmem_limit_bytes=_VMEM_LIMIT),
    )(x, g.reshape(1, Din), b_ln.reshape(1, Din), w, b.reshape(1, Dout))


def linear_residual(x, w, b, res):
    """y = res + x @ w + b, tiled over (rows, out-cols, K) with f32 accumulator."""
    N, Din = x.shape
    Dout = w.shape[1]
    tm = _pick_tile(N, _ROW_TILES)
    tn = _pick_tile(Dout, _COL_TILES)
    tk = _pick_tile(Din, _K_TILES)
    return pl.pallas_call(
        _linear_residual_kernel,
        out_shape=jax.ShapeDtypeStruct((N, Dout), x.dtype),
        grid=(N // tm, Dout // tn, Din // tk),
        in_specs=[
            pl.BlockSpec((tm, tk), lambda i, j, k: (i, k)),
            pl.BlockSpec((tk, tn), lambda i, j, k: (k, j)),
            pl.BlockSpec((1, tn), lambda i, j, k: (0, j)),
            pl.BlockSpec((tm, tn), lambda i, j, k: (i, j)),
        ],
        out_specs=pl.BlockSpec((tm, tn), lambda i, j, k: (i, j)),
        scratch_shapes=[pltpu.VMEM((tm, tn), jnp.float32)],
        compiler_params=pltpu.CompilerParams(
            dimension_semantics=("parallel", "parallel", "arbitrary"),
            vmem_limit_bytes=_VMEM_LIMIT),
    )(x, w, b.reshape(1, Dout), res)


def ln_lm_head(x, g, b_ln, wte_padded):
    """logits = LayerNorm(x) @ wte.T over a 128-aligned (padded) vocab axis."""
    N, D = x.shape
    Vp = wte_padded.shape[0]
    tm = _pick_tile(N, _ROW_TILES)
    tn = _pick_tile(Vp, _COL_TILES)       # Vp is 128-aligned -> tn in {256, 128}
    return pl.pallas_call(
        _ln_lm_head_kernel,
        out_shape=jax.ShapeDtypeStruct((N, Vp), x.dtype),
        grid=(N // tm, Vp // tn),
        in_specs=[
            pl.BlockSpec((tm, D), lambda i, j: (i, 0)),
            pl.BlockSpec((1, D), lambda i, j: (0, 0)),
            pl.BlockSpec((1, D), lambda i, j: (0, 0)),
            pl.BlockSpec((tn, D), lambda i, j: (j, 0)),
        ],
        out_specs=pl.BlockSpec((tm, tn), lambda i, j: (i, j)),
        scratch_shapes=[pltpu.VMEM((tm, D), x.dtype)],
        compiler_params=pltpu.CompilerParams(
            dimension_semantics=("parallel", "arbitrary"),
            vmem_limit_bytes=_VMEM_LIMIT),
    )(x, g.reshape(1, D), b_ln.reshape(1, D), wte_padded)


def causal_attention(q, k, v):
    """q, k, v: (B, H, T, dh). Grid over (B, H, q-tiles); att emitted in q.dtype."""
    B, H, T, dh = q.shape
    tq = _pick_tile(T, _ROW_TILES)
    kernel = partial(_attention_kernel, scale=1.0 / math.sqrt(dh))
    return pl.pallas_call(
        kernel,
        out_shape=(
            jax.ShapeDtypeStruct((B, H, T, dh), q.dtype),
            jax.ShapeDtypeStruct((B, H, T, T), q.dtype),
        ),
        grid=(B, H, T // tq),
        in_specs=[
            pl.BlockSpec((None, None, tq, dh), lambda b, h, i: (b, h, i, 0)),
            pl.BlockSpec((None, None, T, dh), lambda b, h, i: (b, h, 0, 0)),
            pl.BlockSpec((None, None, T, dh), lambda b, h, i: (b, h, 0, 0)),
        ],
        out_specs=(
            pl.BlockSpec((None, None, tq, dh), lambda b, h, i: (b, h, i, 0)),
            pl.BlockSpec((None, None, tq, T), lambda b, h, i: (b, h, i, 0)),
        ),
        compiler_params=pltpu.CompilerParams(
            dimension_semantics=("parallel", "parallel", "parallel")),
    )(q, k, v)


# ------------------------------ model definition -----------------------------

class Config:
    n_embd = 128
    vocab_size = 200        # deliberately not 128-aligned: exercises vocab padding
    n_head = 4
    block_size = 16
    n_blocks = 2
    mode = "inference"


def init_params(key, cfg):
    D = cfg.n_embd

    def normal(k, shape):
        return 0.02 * jax.random.normal(k, shape, dtype=jnp.float32)

    keys = jax.random.split(key, 2 + 6 * cfg.n_blocks)
    params = {
        "wte": normal(keys[0], (cfg.vocab_size, D)),   # tied with lm_head
        "wpe": normal(keys[1], (cfg.block_size, D)),
        "lnf_g": jnp.ones((D,), jnp.float32),
        "lnf_b": jnp.zeros((D,), jnp.float32),
        "blocks": [],
    }
    for i in range(cfg.n_blocks):
        kk = keys[2 + 6 * i: 2 + 6 * (i + 1)]
        blk = {
            "ln1_g": jnp.ones((D,), jnp.float32),
            "ln1_b": jnp.zeros((D,), jnp.float32),
            "attn_w": normal(kk[0], (D, 3 * D)),        # stored as (in, out)
            "attn_b": jnp.zeros((3 * D,), jnp.float32),
            "attn_proj_w": normal(kk[1], (D, D)),
            "attn_proj_b": jnp.zeros((D,), jnp.float32),
            "ln2_g": jnp.ones((D,), jnp.float32),
            "ln2_b": jnp.zeros((D,), jnp.float32),
            "fc_w": normal(kk[2], (D, 4 * D)),
            "fc_b": jnp.zeros((4 * D,), jnp.float32),
            "proj_w": normal(kk[3], (4 * D, D)),
            "proj_b": jnp.zeros((D,), jnp.float32),
        }
        params["blocks"].append(blk)
    return params


def gpt_forward(params, in_tok, cfg):
    # TODO(synk): training-mode cross-entropy loss (targets) not implemented; inference only.
    B, T = in_tok.shape
    D = cfg.n_embd
    H = cfg.n_head
    dh = D // H
    V = cfg.vocab_size
    Vp = ((V + 127) // 128) * 128

    wte = params["wte"]
    # zero-pad the tied embedding / lm_head weight to a 128-aligned vocab once
    wte_p = wte if Vp == V else jnp.pad(wte, ((0, Vp - V), (0, 0)))

    # Embedding gather + positional add are glue (plain JAX, fused under jit).
    tok_emb = jnp.take(wte, in_tok, axis=0)                     # (B, T, D)
    pos_emb = params["wpe"][:T]                                  # (T, D)
    x = (tok_emb + pos_emb[None, :, :]).reshape(B * T, D)

    out_dict = {}
    attn_dict = {}
    for i, blk in enumerate(params["blocks"]):
        # ---- attention branch: fused LN1 + QKV projection ----
        qkv = ln_linear(x, blk["ln1_g"], blk["ln1_b"], blk["attn_w"], blk["attn_b"])
        qkv = qkv.reshape(B, T, 3, H, dh)
        # head split/merge relayout kept as XLA glue
        q = qkv[:, :, 0].transpose(0, 2, 1, 3)                   # (B, H, T, dh)
        k = qkv[:, :, 1].transpose(0, 2, 1, 3)
        v = qkv[:, :, 2].transpose(0, 2, 1, 3)

        attn_out, att_w = causal_attention(q, k, v)
        attn_out = attn_out.transpose(0, 2, 1, 3).reshape(B * T, D)

        # ---- attn output projection with fused residual add ----
        x = linear_residual(attn_out, blk["attn_proj_w"], blk["attn_proj_b"], x)

        # ---- MLP branch: fused LN2 + FC + GELU, then proj with fused residual ----
        h2 = ln_linear(x, blk["ln2_g"], blk["ln2_b"], blk["fc_w"], blk["fc_b"],
                       activation="gelu_tanh")
        x = linear_residual(h2, blk["proj_w"], blk["proj_b"], x)

        out_dict[i] = x.reshape(B, T, D)
        attn_dict[i] = att_w

    # ---- final LayerNorm fused with tied lm_head (no wte.T materialization) ----
    logits = ln_lm_head(x, params["lnf_g"], params["lnf_b"], wte_p)[:, :V]
    logits = logits.reshape(B, T, V)
    return logits, tok_emb, pos_emb, out_dict, attn_dict


# ------------------------- pure-JAX reference (check) ------------------------

def _ref_forward(params, in_tok, cfg):
    B, T = in_tok.shape
    D, H = cfg.n_embd, cfg.n_head
    dh = D // H

    def ln(x, g, b):
        m = jnp.mean(x, -1, keepdims=True)
        v = jnp.mean((x - m) ** 2, -1, keepdims=True)
        return (x - m) * lax.rsqrt(v + 1e-5) * g + b

    def gelu(x):
        c = math.sqrt(2.0 / math.pi)
        return 0.5 * x * (1.0 + jnp.tanh(c * (x + 0.044715 * x ** 3)))

    x = jnp.take(params["wte"], in_tok, axis=0) + params["wpe"][:T][None]
    mask = jnp.tril(jnp.ones((T, T), bool))
    outs, atts = [], []
    for blk in params["blocks"]:
        h = ln(x, blk["ln1_g"], blk["ln1_b"])
        qkv = h @ blk["attn_w"] + blk["attn_b"]
        q, k, v = jnp.split(qkv, 3, axis=2)
        q = q.reshape(B, T, H, dh).transpose(0, 2, 1, 3)
        k = k.reshape(B, T, H, dh).transpose(0, 2, 1, 3)
        v = v.reshape(B, T, H, dh).transpose(0, 2, 1, 3)
        att = (q @ jnp.swapaxes(k, -1, -2)) / math.sqrt(dh)
        att = jnp.where(mask[None, None], att, -jnp.inf)
        att = jax.nn.softmax(att, axis=-1)
        o = (att @ v).transpose(0, 2, 1, 3).reshape(B, T, D)
        x = x + o @ blk["attn_proj_w"] + blk["attn_proj_b"]
        h2 = ln(x, blk["ln2_g"], blk["ln2_b"])
        x = x + gelu(h2 @ blk["fc_w"] + blk["fc_b"]) @ blk["proj_w"] + blk["proj_b"]
        outs.append(x)
        atts.append(att)
    xf = ln(x, params["lnf_g"], params["lnf_b"])
    return xf @ params["wte"].T, outs, atts


# ------------------------------------ main ------------------------------------

if __name__ == "__main__":
    cfg = Config()
    B, T = 2, 8

    key = jax.random.PRNGKey(0)
    k_param, k_tok = jax.random.split(key)
    params = init_params(k_param, cfg)
    in_tok = jax.random.randint(k_tok, (B, T), 0, cfg.vocab_size, dtype=jnp.int32)

    # whole forward pass under one jit (fuses all pallas_call dispatches)
    fwd = jax.jit(partial(gpt_forward, cfg=cfg))

    # ---- f32 path: tight correctness check against pure-JAX reference ----
    logits, tok_emb, pos_emb, out_dict, attn_dict = fwd(params, in_tok)
    jax.block_until_ready(logits)

    ref_logits, ref_outs, ref_atts = _ref_forward(params, in_tok, cfg)
    assert logits.shape == (B, T, cfg.vocab_size)
    assert attn_dict[0].shape == (B, cfg.n_head, T, T)
    assert jnp.allclose(logits, ref_logits, atol=2e-3, rtol=2e-3)
    for i in range(cfg.n_blocks):
        assert jnp.allclose(out_dict[i], ref_outs[i], atol=2e-3, rtol=2e-3)
        assert jnp.allclose(attn_dict[i], ref_atts[i], atol=2e-3, rtol=2e-3)

    # ---- bf16 MXU-operand path (recommended production config on v6e/v7x) ----
    params_bf16 = jax.tree_util.tree_map(
        lambda p: p.astype(jnp.bfloat16) if p.dtype == jnp.float32 else p, params)
    logits_bf16, _, _, _, attn_dict_bf16 = fwd(params_bf16, in_tok)
    jax.block_until_ready(logits_bf16)
    logits_bf16_f32 = logits_bf16.astype(jnp.float32)
    assert jnp.all(jnp.isfinite(logits_bf16_f32))
    assert jnp.allclose(logits_bf16_f32, ref_logits, atol=5e-2, rtol=5e-2)
    # attention weights are now emitted in the activation dtype (bf16 here),
    # halving their HBM writeback in the production path
    assert attn_dict_bf16[0].dtype == jnp.bfloat16

    print("KERNEL_OK")
</pallas_src>

<mosaic_0001>
module attributes {stable_mosaic.version = 11 : i64} {
  func.func @kernel(%arg0: i32, %arg1: i32, %arg2: memref<16x128xf32, #tpu.memory_space<vmem>>, %arg3: memref<1x128xf32, #tpu.memory_space<vmem>>, %arg4: memref<1x128xf32, #tpu.memory_space<vmem>>, %arg5: memref<128x256xf32, #tpu.memory_space<vmem>>, %arg6: memref<1x256xf32, #tpu.memory_space<vmem>>, %arg7: memref<16x256xf32, #tpu.memory_space<vmem>>, %arg8: memref<16x128xf32, #tpu.memory_space<vmem>>) attributes {dimension_semantics = [#tpu.dimension_semantics<parallel>, #tpu.dimension_semantics<arbitrary>], iteration_bounds = array<i64: 1, 2>, scalar_prefetch = 0 : i64, scratch_operands = 1 : i64, tpu.core_type = #tpu.core_type<tc>, window_params = [{transform_indices = @transform_0, window_bounds = array<i64: 16, 128>}, {pipeline_mode = #tpu.pipeline_mode<synchronous>, transform_indices = @transform_1, window_bounds = array<i64: 1, 128>}, {pipeline_mode = #tpu.pipeline_mode<synchronous>, transform_indices = @transform_2, window_bounds = array<i64: 1, 128>}, {transform_indices = @transform_3, window_bounds = array<i64: 128, 256>}, {transform_indices = @transform_4, window_bounds = array<i64: 1, 256>}, {transform_indices = @transform_5, window_bounds = array<i64: 16, 256>}]} {
    %c0_i32 = arith.constant 0 : i32
    %0 = arith.cmpi eq, %arg1, %c0_i32 : i32
    %1 = arith.extui %0 : i1 to i32
    %c0_i32_0 = arith.constant 0 : i32
    %2 = arith.cmpi ne, %1, %c0_i32_0 : i32
    scf.if %2 {
      %c0_12 = arith.constant 0 : index
      %c0_13 = arith.constant 0 : index
      %23 = vector.load %arg2[%c0_12, %c0_13] : memref<16x128xf32, #tpu.memory_space<vmem>>, vector<16x128xf32>
      %cst_14 = arith.constant dense<0.000000e+00> : vector<16xf32>
      %24 = vector.multi_reduction <add>, %23, %cst_14 [1] : vector<16x128xf32> to vector<16xf32>
      %25 = vector.shape_cast %24 : vector<16xf32> to vector<16x1xf32>
      %cst_15 = arith.constant 1.280000e+02 : f32
      %26 = vector.broadcast %cst_15 : f32 to vector<16x1xf32>
      %27 = arith.divf %25, %26 : vector<16x1xf32>
      %28 = vector.broadcast %27 : vector<16x1xf32> to vector<16x128xf32>
      %29 = arith.subf %23, %28 : vector<16x128xf32>
      %30 = arith.mulf %29, %29 : vector<16x128xf32>
      %cst_16 = arith.constant dense<0.000000e+00> : vector<16xf32>
      %31 = vector.multi_reduction <add>, %30, %cst_16 [1] : vector<16x128xf32> to vector<16xf32>
      %32 = vector.shape_cast %31 : vector<16xf32> to vector<16x1xf32>
      %cst_17 = arith.constant 1.280000e+02 : f32
      %33 = vector.broadcast %cst_17 : f32 to vector<16x1xf32>
      %34 = arith.divf %32, %33 : vector<16x1xf32>
      %35 = vector.broadcast %27 : vector<16x1xf32> to vector<16x128xf32>
      %36 = arith.subf %23, %35 : vector<16x128xf32>
      %cst_18 = arith.constant 9.99999974E-6 : f32
      %37 = vector.broadcast %cst_18 : f32 to vector<16x1xf32>
      %38 = arith.addf %34, %37 : vector<16x1xf32>
      %39 = math.rsqrt %38 : vector<16x1xf32>
      %40 = vector.broadcast %39 : vector<16x1xf32> to vector<16x128xf32>
      %41 = arith.mulf %36, %40 : vector<16x128xf32>
      %c0_19 = arith.constant 0 : index
      %c0_20 = arith.constant 0 : index
      %42 = vector.load %arg3[%c0_19, %c0_20] : memref<1x128xf32, #tpu.memory_space<vmem>>, vector<1x128xf32>
      %43 = vector.broadcast %42 : vector<1x128xf32> to vector<16x128xf32>
      %44 = arith.mulf %41, %43 : vector<16x128xf32>
      %c0_21 = arith.constant 0 : index
      %c0_22 = arith.constant 0 : index
      %45 = vector.load %arg4[%c0_21, %c0_22] : memref<1x128xf32, #tpu.memory_space<vmem>>, vector<1x128xf32>
      %46 = vector.broadcast %45 : vector<1x128xf32> to vector<16x128xf32>
      %47 = arith.addf %44, %46 : vector<16x128xf32>
      %c0_23 = arith.constant 0 : index
      %c0_24 = arith.constant 0 : index
      %48 = vector.load %arg8[%c0_23, %c0_24] : memref<16x128xf32, #tpu.memory_space<vmem>>, vector<16x128xf32>
      tpu.vector_store %arg8[%c0_23, %c0_24], %47 {strides = array<i32>} : memref<16x128xf32, #tpu.memory_space<vmem>>, vector<16x128xf32>,
    } else {
    }
    %c0 = arith.constant 0 : index
    %c0_1 = arith.constant 0 : index
    %3 = vector.load %arg8[%c0, %c0_1] : memref<16x128xf32, #tpu.memory_space<vmem>>, vector<16x128xf32>
    %c0_2 = arith.constant 0 : index
    %c0_3 = arith.constant 0 : index
    %4 = vector.load %arg5[%c0_2, %c0_3] : memref<128x256xf32, #tpu.memory_space<vmem>>, vector<128x256xf32>
    %cst = arith.constant dense<0.000000e+00> : vector<16x256xf32>
    %5 = tpu.matmul %3, %4, %cst {dimension_numbers = #tpu.dot_dimension_numbers<[1], [0], [0], [1], [0, 0, 1, 1], [], []>} : vector<16x128xf32>, vector<128x256xf32>, vector<16x256xf32> -> vector<16x256xf32>
    %c0_4 = arith.constant 0 : index
    %c0_5 = arith.constant 0 : index
    %6 = vector.load %arg6[%c0_4, %c0_5] : memref<1x256xf32, #tpu.memory_space<vmem>>, vector<1x256xf32>
    %7 = vector.broadcast %6 : vector<1x256xf32> to vector<16x256xf32>
    %8 = arith.addf %5, %7 : vector<16x256xf32>
    %cst_6 = arith.constant 5.000000e-01 : f32
    %9 = vector.broadcast %cst_6 : f32 to vector<16x256xf32>
    %10 = arith.mulf %9, %8 : vector<16x256xf32>
    %cst_7 = arith.constant 4.471500e-02 : f32
    %11 = vector.broadcast %cst_7 : f32 to vector<16x256xf32>
    %12 = arith.mulf %11, %8 : vector<16x256xf32>
    %13 = arith.mulf %12, %8 : vector<16x256xf32>
    %14 = arith.mulf %13, %8 : vector<16x256xf32>
    %15 = arith.addf %8, %14 : vector<16x256xf32>
    %cst_8 = arith.constant 0.797884583 : f32
    %16 = vector.broadcast %cst_8 : f32 to vector<16x256xf32>
    %17 = arith.mulf %16, %15 : vector<16x256xf32>
    %18 = math.tanh %17 : vector<16x256xf32>
    %cst_9 = arith.constant 1.000000e+00 : f32
    %19 = vector.broadcast %cst_9 : f32 to vector<16x256xf32>
    %20 = arith.addf %19, %18 : vector<16x256xf32>
    %21 = arith.mulf %10, %20 : vector<16x256xf32>
    %c0_10 = arith.constant 0 : index
    %c0_11 = arith.constant 0 : index
    %22 = vector.load %arg7[%c0_10, %c0_11] : memref<16x256xf32, #tpu.memory_space<vmem>>, vector<16x256xf32>
    tpu.vector_store %arg7[%c0_10, %c0_11], %21 {strides = array<i32>} : memref<16x256xf32, #tpu.memory_space<vmem>>, vector<16x256xf32>,
    return
  }
  func.func @transform_0(%arg0: i32, %arg1: i32) -> (i32, i32) {
    %c0_i32 = arith.constant 0 : i32
    %c0_i32_0 = arith.constant 0 : i32
    return %arg0, %c0_i32 : i32, i32
  }
  func.func @transform_1(%arg0: i32, %arg1: i32) -> (i32, i32) {
    %c0_i32 = arith.constant 0 : i32
    %c0_i32_0 = arith.constant 0 : i32
    %c0_i32_1 = arith.constant 0 : i32
    return %c0_i32, %c0_i32_0 : i32, i32
  }
  func.func @transform_2(%arg0: i32, %arg1: i32) -> (i32, i32) {
    %c0_i32 = arith.constant 0 : i32
    %c0_i32_0 = arith.constant 0 : i32
    %c0_i32_1 = arith.constant 0 : i32
    return %c0_i32, %c0_i32_0 : i32, i32
  }
  func.func @transform_3(%arg0: i32, %arg1: i32) -> (i32, i32) {
    %c0_i32 = arith.constant 0 : i32
    %c0_i32_0 = arith.constant 0 : i32
    return %c0_i32, %arg1 : i32, i32
  }
  func.func @transform_4(%arg0: i32, %arg1: i32) -> (i32, i32) {
    %c0_i32 = arith.constant 0 : i32
    %c0_i32_0 = arith.constant 0 : i32
    return %c0_i32, %arg1 : i32, i32
  }
  func.func @transform_5(%arg0: i32, %arg1: i32) -> (i32, i32) {
    %c0_i32 = arith.constant 0 : i32
    return %arg0, %arg1 : i32, i32
  }
}

module attributes {stable_mosaic.version = 11 : i64} {
  func.func @_attention_kernel(%arg0: i32, %arg1: i32, %arg2: i32, %arg3: memref<1x1x8x32xf32, #tpu.memory_space<vmem>>, %arg4: memref<1x1x8x32xf32, #tpu.memory_space<vmem>>, %arg5: memref<1x1x8x32xf32, #tpu.memory_space<vmem>>, %arg6: memref<1x1x8x32xf32, #tpu.memory_space<vmem>>, %arg7: memref<1x1x8x8xf32, #tpu.memory_space<vmem>>) attributes {dimension_semantics = [#tpu.dimension_semantics<parallel>, #tpu.dimension_semantics<parallel>, #tpu.dimension_semantics<parallel>], iteration_bounds = array<i64: 2, 4, 1>, scalar_prefetch = 0 : i64, scratch_operands = 0 : i64, tpu.core_type = #tpu.core_type<tc>, window_params = [{transform_indices = @transform_0, window_bounds = array<i64: 1, 1, 8, 32>}, {transform_indices = @transform_1, window_bounds = array<i64: 1, 1, 8, 32>}, {transform_indices = @transform_2, window_bounds = array<i64: 1, 1, 8, 32>}, {transform_indices = @transform_3, window_bounds = array<i64: 1, 1, 8, 32>}, {transform_indices = @transform_4, window_bounds = array<i64: 1, 1, 8, 8>}]} {
    %c0 = arith.constant 0 : index
    %c0_0 = arith.constant 0 : index
    %c0_1 = arith.constant 0 : index
    %c0_2 = arith.constant 0 : index
    %0 = vector.load %arg3[%c0, %c0_0, %c0_1, %c0_2] : memref<1x1x8x32xf32, #tpu.memory_space<vmem>>, vector<1x1x8x32xf32>
    %1 = vector.shape_cast %0 : vector<1x1x8x32xf32> to vector<8x32xf32>
    %c0_3 = arith.constant 0 : index
    %c0_4 = arith.constant 0 : index
    %c0_5 = arith.constant 0 : index
    %c0_6 = arith.constant 0 : index
    %2 = vector.load %arg4[%c0_3, %c0_4, %c0_5, %c0_6] : memref<1x1x8x32xf32, #tpu.memory_space<vmem>>, vector<1x1x8x32xf32>
    %3 = vector.shape_cast %2 : vector<1x1x8x32xf32> to vector<8x32xf32>
    %c0_7 = arith.constant 0 : index
    %c0_8 = arith.constant 0 : index
    %c0_9 = arith.constant 0 : index
    %c0_10 = arith.constant 0 : index
    %4 = vector.load %arg5[%c0_7, %c0_8, %c0_9, %c0_10] : memref<1x1x8x32xf32, #tpu.memory_space<vmem>>, vector<1x1x8x32xf32>
    %5 = vector.shape_cast %4 : vector<1x1x8x32xf32> to vector<8x32xf32>
    %cst = arith.constant dense<0.000000e+00> : vector<8x8xf32>
    %6 = tpu.matmul %1, %3, %cst {dimension_numbers = #tpu.dot_dimension_numbers<[1], [1], [0], [0], [0, 0, 1, 0], [], []>} : vector<8x32xf32>, vector<8x32xf32>, vector<8x8xf32> -> vector<8x8xf32>
    %cst_11 = arith.constant 0.176776692 : f32
    %7 = vector.broadcast %cst_11 : f32 to vector<8x8xf32>
    %8 = arith.mulf %6, %7 : vector<8x8xf32>
    %c8_i32 = arith.constant 8 : i32
    %9 = arith.muli %arg2, %c8_i32 : i32
    %10 = tpu.iota {dimensions = array<i32: 0>} : vector<8x8xi32>
    %11 = vector.broadcast %9 : i32 to vector<8x8xi32>
    %12 = arith.addi %11, %10 : vector<8x8xi32>
    %13 = tpu.iota {dimensions = array<i32: 1>} : vector<8x8xi32>
    %14 = arith.cmpi sle, %13, %12 : vector<8x8xi32>
    %cst_12 = arith.constant 0xFF800000 : f32
    %15 = vector.broadcast %cst_12 : f32 to vector<8x8xf32>
    %16 = arith.select %14, %8, %15 : vector<8x8xi1>, vector<8x8xf32>
    %cst_13 = arith.constant dense<0xFF800000> : vector<8xf32>
    %17 = vector.multi_reduction <maximumf>, %16, %cst_13 [1] : vector<8x8xf32> to vector<8xf32>
    %18 = vector.shape_cast %17 : vector<8xf32> to vector<8x1xf32>
    %19 = vector.broadcast %18 : vector<8x1xf32> to vector<8x8xf32>
    %20 = arith.subf %16, %19 : vector<8x8xf32>
    %21 = math.exp %20 : vector<8x8xf32>
    %cst_14 = arith.constant dense<0.000000e+00> : vector<8xf32>
    %22 = vector.multi_reduction <add>, %21, %cst_14 [1] : vector<8x8xf32> to vector<8xf32>
    %23 = vector.shape_cast %22 : vector<8xf32> to vector<8x1xf32>
    %24 = tpu.reciprocal %23 {approx = true} : vector<8x1xf32> -> vector<8x1xf32>
    %25 = vector.broadcast %24 : vector<8x1xf32> to vector<8x8xf32>
    %26 = arith.mulf %21, %25 : vector<8x8xf32>
    %cst_15 = arith.constant dense<0.000000e+00> : vector<8x32xf32>
    %27 = tpu.matmul %26, %5, %cst_15 {dimension_numbers = #tpu.dot_dimension_numbers<[1], [0], [0], [1], [0, 0, 1, 1], [], []>} : vector<8x8xf32>, vector<8x32xf32>, vector<8x32xf32> -> vector<8x32xf32>
    %c0_16 = arith.constant 0 : index
    %c0_17 = arith.constant 0 : index
    %c0_18 = arith.constant 0 : index
    %c0_19 = arith.constant 0 : index
    %28 = vector.load %arg6[%c0_16, %c0_17, %c0_18, %c0_19] : memref<1x1x8x32xf32, #tpu.memory_space<vmem>>, vector<1x1x8x32xf32>
    %29 = vector.shape_cast %28 : vector<1x1x8x32xf32> to vector<8x32xf32>
    %30 = vector.shape_cast %27 : vector<8x32xf32> to vector<1x1x8x32xf32>
    tpu.vector_store %arg6[%c0_16, %c0_17, %c0_18, %c0_19], %30 {strides = array<i32>} : memref<1x1x8x32xf32, #tpu.memory_space<vmem>>, vector<1x1x8x32xf32>,
    %c0_20 = arith.constant 0 : index
    %c0_21 = arith.constant 0 : index
    %c0_22 = arith.constant 0 : index
    %c0_23 = arith.constant 0 : index
    %31 = vector.load %arg7[%c0_20, %c0_21, %c0_22, %c0_23] : memref<1x1x8x8xf32, #tpu.memory_space<vmem>>, vector<1x1x8x8xf32>
    %32 = vector.shape_cast %31 : vector<1x1x8x8xf32> to vector<8x8xf32>
    %33 = vector.shape_cast %26 : vector<8x8xf32> to vector<1x1x8x8xf32>
    tpu.vector_store %arg7[%c0_20, %c0_21, %c0_22, %c0_23], %33 {strides = array<i32>} : memref<1x1x8x8xf32, #tpu.memory_space<vmem>>, vector<1x1x8x8xf32>,
    return
  }
  func.func @transform_0(%arg0: i32, %arg1: i32, %arg2: i32) -> (i32, i32, i32, i32) {
    %c0_i32 = arith.constant 0 : i32
    %c0_i32_0 = arith.constant 0 : i32
    return %arg0, %arg1, %arg2, %c0_i32 : i32, i32, i32, i32
  }
  func.func @transform_1(%arg0: i32, %arg1: i32, %arg2: i32) -> (i32, i32, i32, i32) {
    %c0_i32 = arith.constant 0 : i32
    %c0_i32_0 = arith.constant 0 : i32
    %c0_i32_1 = arith.constant 0 : i32
    return %arg0, %arg1, %c0_i32, %c0_i32_0 : i32, i32, i32, i32
  }
  func.func @transform_2(%arg0: i32, %arg1: i32, %arg2: i32) -> (i32, i32, i32, i32) {
    %c0_i32 = arith.constant 0 : i32
    %c0_i32_0 = arith.constant 0 : i32
    %c0_i32_1 = arith.constant 0 : i32
    return %arg0, %arg1, %c0_i32, %c0_i32_0 : i32, i32, i32, i32
  }
  func.func @transform_3(%arg0: i32, %arg1: i32, %arg2: i32) -> (i32, i32, i32, i32) {
    %c0_i32 = arith.constant 0 : i32
    %c0_i32_0 = arith.constant 0 : i32
    return %arg0, %arg1, %arg2, %c0_i32 : i32, i32, i32, i32
  }
  func.func @transform_4(%arg0: i32, %arg1: i32, %arg2: i32) -> (i32, i32, i32, i32) {
    %c0_i32 = arith.constant 0 : i32
    %c0_i32_0 = arith.constant 0 : i32
    return %arg0, %arg1, %arg2, %c0_i32 : i32, i32, i32, i32
  }
}

module attributes {stable_mosaic.version = 11 : i64} {
  func.func @kernel(%arg0: i32, %arg1: i32, %arg2: memref<16x128xf32, #tpu.memory_space<vmem>>, %arg3: memref<1x128xf32, #tpu.memory_space<vmem>>, %arg4: memref<1x128xf32, #tpu.memory_space<vmem>>, %arg5: memref<128x128xf32, #tpu.memory_space<vmem>>, %arg6: memref<1x128xf32, #tpu.memory_space<vmem>>, %arg7: memref<16x128xf32, #tpu.memory_space<vmem>>, %arg8: memref<16x128xf32, #tpu.memory_space<vmem>>) attributes {dimension_semantics = [#tpu.dimension_semantics<parallel>, #tpu.dimension_semantics<arbitrary>], iteration_bounds = array<i64: 1, 3>, scalar_prefetch = 0 : i64, scratch_operands = 1 : i64, tpu.core_type = #tpu.core_type<tc>, window_params = [{transform_indices = @transform_0, window_bounds = array<i64: 16, 128>}, {pipeline_mode = #tpu.pipeline_mode<synchronous>, transform_indices = @transform_1, window_bounds = array<i64: 1, 128>}, {pipeline_mode = #tpu.pipeline_mode<synchronous>, transform_indices = @transform_2, window_bounds = array<i64: 1, 128>}, {transform_indices = @transform_3, window_bounds = array<i64: 128, 128>}, {transform_indices = @transform_4, window_bounds = array<i64: 1, 128>}, {transform_indices = @transform_5, window_bounds = array<i64: 16, 128>}]} {
    %c0_i32 = arith.constant 0 : i32
    %0 = arith.cmpi eq, %arg1, %c0_i32 : i32
    %1 = arith.extui %0 : i1 to i32
    %c0_i32_0 = arith.constant 0 : i32
    %2 = arith.cmpi ne, %1, %c0_i32_0 : i32
    scf.if %2 {
      %c0_8 = arith.constant 0 : index
      %c0_9 = arith.constant 0 : index
      %10 = vector.load %arg2[%c0_8, %c0_9] : memref<16x128xf32, #tpu.memory_space<vmem>>, vector<16x128xf32>
      %cst_10 = arith.constant dense<0.000000e+00> : vector<16xf32>
      %11 = vector.multi_reduction <add>, %10, %cst_10 [1] : vector<16x128xf32> to vector<16xf32>
      %12 = vector.shape_cast %11 : vector<16xf32> to vector<16x1xf32>
      %cst_11 = arith.constant 1.280000e+02 : f32
      %13 = vector.broadcast %cst_11 : f32 to vector<16x1xf32>
      %14 = arith.divf %12, %13 : vector<16x1xf32>
      %15 = vector.broadcast %14 : vector<16x1xf32> to vector<16x128xf32>
      %16 = arith.subf %10, %15 : vector<16x128xf32>
      %17 = arith.mulf %16, %16 : vector<16x128xf32>
      %cst_12 = arith.constant dense<0.000000e+00> : vector<16xf32>
      %18 = vector.multi_reduction <add>, %17, %cst_12 [1] : vector<16x128xf32> to vector<16xf32>
      %19 = vector.shape_cast %18 : vector<16xf32> to vector<16x1xf32>
      %cst_13 = arith.constant 1.280000e+02 : f32
      %20 = vector.broadcast %cst_13 : f32 to vector<16x1xf32>
      %21 = arith.divf %19, %20 : vector<16x1xf32>
      %22 = vector.broadcast %14 : vector<16x1xf32> to vector<16x128xf32>
      %23 = arith.subf %10, %22 : vector<16x128xf32>
      %cst_14 = arith.constant 9.99999974E-6 : f32
      %24 = vector.broadcast %cst_14 : f32 to vector<16x1xf32>
      %25 = arith.addf %21, %24 : vector<16x1xf32>
      %26 = math.rsqrt %25 : vector<16x1xf32>
      %27 = vector.broadcast %26 : vector<16x1xf32> to vector<16x128xf32>
      %28 = arith.mulf %23, %27 : vector<16x128xf32>
      %c0_15 = arith.constant 0 : index
      %c0_16 = arith.constant 0 : index
      %29 = vector.load %arg3[%c0_15, %c0_16] : memref<1x128xf32, #tpu.memory_space<vmem>>, vector<1x128xf32>
      %30 = vector.broadcast %29 : vector<1x128xf32> to vector<16x128xf32>
      %31 = arith.mulf %28, %30 : vector<16x128xf32>
      %c0_17 = arith.constant 0 : index
      %c0_18 = arith.constant 0 : index
      %32 = vector.load %arg4[%c0_17, %c0_18] : memref<1x128xf32, #tpu.memory_space<vmem>>, vector<1x128xf32>
      %33 = vector.broadcast %32 : vector<1x128xf32> to vector<16x128xf32>
      %34 = arith.addf %31, %33 : vector<16x128xf32>
      %c0_19 = arith.constant 0 : index
      %c0_20 = arith.constant 0 : index
      %35 = vector.load %arg8[%c0_19, %c0_20] : memref<16x128xf32, #tpu.memory_space<vmem>>, vector<16x128xf32>
      tpu.vector_store %arg8[%c0_19, %c0_20], %34 {strides = array<i32>} : memref<16x128xf32, #tpu.memory_space<vmem>>, vector<16x128xf32>,
    } else {
    }
    %c0 = arith.constant 0 : index
    %c0_1 = arith.constant 0 : index
    %3 = vector.load %arg8[%c0, %c0_1] : memref<16x128xf32, #tpu.memory_space<vmem>>, vector<16x128xf32>
    %c0_2 = arith.constant 0 : index
    %c0_3 = arith.constant 0 : index
    %4 = vector.load %arg5[%c0_2, %c0_3] : memref<128x128xf32, #tpu.memory_space<vmem>>, vector<128x128xf32>
    %cst = arith.constant dense<0.000000e+00> : vector<16x128xf32>
    %5 = tpu.matmul %3, %4, %cst {dimension_numbers = #tpu.dot_dimension_numbers<[1], [0], [0], [1], [0, 0, 1, 1], [], []>} : vector<16x128xf32>, vector<128x128xf32>, vector<16x128xf32> -> vector<16x128xf32>
    %c0_4 = arith.constant 0 : index
    %c0_5 = arith.constant 0 : index
    %6 = vector.load %arg6[%c0_4, %c0_5] : memref<1x128xf32, #tpu.memory_space<vmem>>, vector<1x128xf32>
    %7 = vector.broadcast %6 : vector<1x128xf32> to vector<16x128xf32>
    %8 = arith.addf %5, %7 : vector<16x128xf32>
    %c0_6 = arith.constant 0 : index
    %c0_7 = arith.constant 0 : index
    %9 = vector.load %arg7[%c0_6, %c0_7] : memref<16x128xf32, #tpu.memory_space<vmem>>, vector<16x128xf32>
    tpu.vector_store %arg7[%c0_6, %c0_7], %8 {strides = array<i32>} : memref<16x128xf32, #tpu.memory_space<vmem>>, vector<16x128xf32>,
    return
  }
  func.func @transform_0(%arg0: i32, %arg1: i32) -> (i32, i32) {
    %c0_i32 = arith.constant 0 : i32
    %c0_i32_0 = arith.constant 0 : i32
    return %arg0, %c0_i32 : i32, i32
  }
  func.func @transform_1(%arg0: i32, %arg1: i32) -> (i32, i32) {
    %c0_i32 = arith.constant 0 : i32
    %c0_i32_0 = arith.constant 0 : i32
    %c0_i32_1 = arith.constant 0 : i32
    return %c0_i32, %c0_i32_0 : i32, i32
  }
  func.func @transform_2(%arg0: i32, %arg1: i32) -> (i32, i32) {
    %c0_i32 = arith.constant 0 : i32
    %c0_i32_0 = arith.constant 0 : i32
    %c0_i32_1 = arith.constant 0 : i32
    return %c0_i32, %c0_i32_0 : i32, i32
  }
  func.func @transform_3(%arg0: i32, %arg1: i32) -> (i32, i32) {
    %c0_i32 = arith.constant 0 : i32
    %c0_i32_0 = arith.constant 0 : i32
    return %c0_i32, %arg1 : i32, i32
  }
  func.func @transform_4(%arg0: i32, %arg1: i32) -> (i32, i32) {
    %c0_i32 = arith.constant 0 : i32
    %c0_i32_0 = arith.constant 0 : i32
    return %c0_i32, %arg1 : i32, i32
  }
  func.func @transform_5(%arg0: i32, %arg1: i32) -> (i32, i32) {
    %c0_i32 = arith.constant 0 : i32
    return %arg0, %arg1 : i32, i32
  }
}

module attributes {stable_mosaic.version = 11 : i64} {
  func.func @_linear_residual_kernel(%arg0: i32, %arg1: i32, %arg2: i32, %arg3: memref<16x128xf32, #tpu.memory_space<vmem>>, %arg4: memref<128x128xf32, #tpu.memory_space<vmem>>, %arg5: memref<1x128xf32, #tpu.memory_space<vmem>>, %arg6: memref<16x128xf32, #tpu.memory_space<vmem>>, %arg7: memref<16x128xf32, #tpu.memory_space<vmem>>, %arg8: memref<16x128xf32, #tpu.memory_space<vmem>>) attributes {dimension_semantics = [#tpu.dimension_semantics<parallel>, #tpu.dimension_semantics<parallel>, #tpu.dimension_semantics<arbitrary>], iteration_bounds = array<i64: 1, 1, 1>, scalar_prefetch = 0 : i64, scratch_operands = 1 : i64, tpu.core_type = #tpu.core_type<tc>, window_params = [{transform_indices = @transform_0, window_bounds = array<i64: 16, 128>}, {transform_indices = @transform_1, window_bounds = array<i64: 128, 128>}, {transform_indices = @transform_2, window_bounds = array<i64: 1, 128>}, {transform_indices = @transform_3, window_bounds = array<i64: 16, 128>}, {transform_indices = @transform_4, window_bounds = array<i64: 16, 128>}]} {
    %c0_i32 = arith.constant 0 : i32
    %0 = arith.cmpi eq, %arg2, %c0_i32 : i32
    %1 = arith.extui %0 : i1 to i32
    %c0_i32_0 = arith.constant 0 : i32
    %2 = arith.cmpi ne, %1, %c0_i32_0 : i32
    scf.if %2 {
      %cst_10 = arith.constant 0.000000e+00 : f32
      %12 = vector.broadcast %cst_10 : f32 to vector<16x128xf32>
      %c0_11 = arith.constant 0 : index
      %c0_12 = arith.constant 0 : index
      %13 = vector.load %arg8[%c0_11, %c0_12] : memref<16x128xf32, #tpu.memory_space<vmem>>, vector<16x128xf32>
      tpu.vector_store %arg8[%c0_11, %c0_12], %12 {strides = array<i32>} : memref<16x128xf32, #tpu.memory_space<vmem>>, vector<16x128xf32>,
    } else {
    }
    %c0 = arith.constant 0 : index
    %c0_1 = arith.constant 0 : index
    %3 = vector.load %arg8[%c0, %c0_1] : memref<16x128xf32, #tpu.memory_space<vmem>>, vector<16x128xf32>
    %c0_2 = arith.constant 0 : index
    %c0_3 = arith.constant 0 : index
    %4 = vector.load %arg3[%c0_2, %c0_3] : memref<16x128xf32, #tpu.memory_space<vmem>>, vector<16x128xf32>
    %c0_4 = arith.constant 0 : index
    %c0_5 = arith.constant 0 : index
    %5 = vector.load %arg4[%c0_4, %c0_5] : memref<128x128xf32, #tpu.memory_space<vmem>>, vector<128x128xf32>
    %cst = arith.constant dense<0.000000e+00> : vector<16x128xf32>
    %6 = tpu.matmul %4, %5, %cst {dimension_numbers = #tpu.dot_dimension_numbers<[1], [0], [0], [1], [0, 0, 1, 1], [], []>} : vector<16x128xf32>, vector<128x128xf32>, vector<16x128xf32> -> vector<16x128xf32>
    %7 = arith.addf %3, %6 : vector<16x128xf32>
    %c0_6 = arith.constant 0 : index
    %c0_7 = arith.constant 0 : index
    %8 = vector.load %arg8[%c0_6, %c0_7] : memref<16x128xf32, #tpu.memory_space<vmem>>, vector<16x128xf32>
    tpu.vector_store %arg8[%c0_6, %c0_7], %7 {strides = array<i32>} : memref<16x128xf32, #tpu.memory_space<vmem>>, vector<16x128xf32>,
    %c0_i32_8 = arith.constant 0 : i32
    %9 = arith.cmpi eq, %arg2, %c0_i32_8 : i32
    %10 = arith.extui %9 : i1 to i32
    %c0_i32_9 = arith.constant 0 : i32
    %11 = arith.cmpi ne, %10, %c0_i32_9 : i32
    scf.if %11 {
      %c0_10 = arith.constant 0 : index
      %c0_11 = arith.constant 0 : index
      %12 = vector.load %arg8[%c0_10, %c0_11] : memref<16x128xf32, #tpu.memory_space<vmem>>, vector<16x128xf32>
      %c0_12 = arith.constant 0 : index
      %c0_13 = arith.constant 0 : index
      %13 = vector.load %arg5[%c0_12, %c0_13] : memref<1x128xf32, #tpu.memory_space<vmem>>, vector<1x128xf32>
      %14 = vector.broadcast %13 : vector<1x128xf32> to vector<16x128xf32>
      %15 = arith.addf %12, %14 : vector<16x128xf32>
      %c0_14 = arith.constant 0 : index
      %c0_15 = arith.constant 0 : index
      %16 = vector.load %arg6[%c0_14, %c0_15] : memref<16x128xf32, #tpu.memory_space<vmem>>, vector<16x128xf32>
      %17 = arith.addf %15, %16 : vector<16x128xf32>
      %c0_16 = arith.constant 0 : index
      %c0_17 = arith.constant 0 : index
      %18 = vector.load %arg7[%c0_16, %c0_17] : memref<16x128xf32, #tpu.memory_space<vmem>>, vector<16x128xf32>
      tpu.vector_store %arg7[%c0_16, %c0_17], %17 {strides = array<i32>} : memref<16x128xf32, #tpu.memory_space<vmem>>, vector<16x128xf32>,
    } else {
    }
    return
  }
  func.func @transform_0(%arg0: i32, %arg1: i32, %arg2: i32) -> (i32, i32) {
    %c0_i32 = arith.constant 0 : i32
    return %arg0, %arg2 : i32, i32
  }
  func.func @transform_1(%arg0: i32, %arg1: i32, %arg2: i32) -> (i32, i32) {
    %c0_i32 = arith.constant 0 : i32
    return %arg2, %arg1 : i32, i32
  }
  func.func @transform_2(%arg0: i32, %arg1: i32, %arg2: i32) -> (i32, i32) {
    %c0_i32 = arith.constant 0 : i32
    %c0_i32_0 = arith.constant 0 : i32
    return %c0_i32, %arg1 : i32, i32
  }
  func.func @transform_3(%arg0: i32, %arg1: i32, %arg2: i32) -> (i32, i32) {
    %c0_i32 = arith.constant 0 : i32
    return %arg0, %arg1 : i32, i32
  }
  func.func @transform_4(%arg0: i32, %arg1: i32, %arg2: i32) -> (i32, i32) {
    %c0_i32 = arith.constant 0 : i32
    return %arg0, %arg1 : i32, i32
  }
}

module attributes {stable_mosaic.version = 11 : i64} {
  func.func @kernel(%arg0: i32, %arg1: i32, %arg2: memref<16x128xf32, #tpu.memory_space<vmem>>, %arg3: memref<1x128xf32, #tpu.memory_space<vmem>>, %arg4: memref<1x128xf32, #tpu.memory_space<vmem>>, %arg5: memref<128x128xf32, #tpu.memory_space<vmem>>, %arg6: memref<1x128xf32, #tpu.memory_space<vmem>>, %arg7: memref<16x128xf32, #tpu.memory_space<vmem>>, %arg8: memref<16x128xf32, #tpu.memory_space<vmem>>) attributes {dimension_semantics = [#tpu.dimension_semantics<parallel>, #tpu.dimension_semantics<arbitrary>], iteration_bounds = array<i64: 1, 3>, scalar_prefetch = 0 : i64, scratch_operands = 1 : i64, tpu.core_type = #tpu.core_type<tc>, window_params = [{transform_indices = @transform_0, window_bounds = array<i64: 16, 128>}, {pipeline_mode = #tpu.pipeline_mode<synchronous>, transform_indices = @transform_1, window_bounds = array<i64: 1, 128>}, {pipeline_mode = #tpu.pipeline_mode<synchronous>, transform_indices = @transform_2, window_bounds = array<i64: 1, 128>}, {transform_indices = @transform_3, window_bounds = array<i64: 128, 128>}, {transform_indices = @transform_4, window_bounds = array<i64: 1, 128>}, {transform_indices = @transform_5, window_bounds = array<i64: 16, 128>}]} {
    %c0_i32 = arith.constant 0 : i32
    %0 = arith.cmpi eq, %arg1, %c0_i32 : i32
    %1 = arith.extui %0 : i1 to i32
    %c0_i32_0 = arith.constant 0 : i32
    %2 = arith.cmpi ne, %1, %c0_i32_0 : i32
    scf.if %2 {
      %c0_8 = arith.constant 0 : index
      %c0_9 = arith.constant 0 : index
      %10 = vector.load %arg2[%c0_8, %c0_9] : memref<16x128xf32, #tpu.memory_space<vmem>>, vector<16x128xf32>
      %cst_10 = arith.constant dense<0.000000e+00> : vector<16xf32>
      %11 = vector.multi_reduction <add>, %10, %cst_10 [1] : vector<16x128xf32> to vector<16xf32>
      %12 = vector.shape_cast %11 : vector<16xf32> to vector<16x1xf32>
      %cst_11 = arith.constant 1.280000e+02 : f32
      %13 = vector.broadcast %cst_11 : f32 to vector<16x1xf32>
      %14 = arith.divf %12, %13 : vector<16x1xf32>
      %15 = vector.broadcast %14 : vector<16x1xf32> to vector<16x128xf32>
      %16 = arith.subf %10, %15 : vector<16x128xf32>
      %17 = arith.mulf %16, %16 : vector<16x128xf32>
      %cst_12 = arith.constant dense<0.000000e+00> : vector<16xf32>
      %18 = vector.multi_reduction <add>, %17, %cst_12 [1] : vector<16x128xf32> to vector<16xf32>
      %19 = vector.shape_cast %18 : vector<16xf32> to vector<16x1xf32>
      %cst_13 = arith.constant 1.280000e+02 : f32
      %20 = vector.broadcast %cst_13 : f32 to vector<16x1xf32>
      %21 = arith.divf %19, %20 : vector<16x1xf32>
      %22 = vector.broadcast %14 : vector<16x1xf32> to vector<16x128xf32>
      %23 = arith.subf %10, %22 : vector<16x128xf32>
      %cst_14 = arith.constant 9.99999974E-6 : f32
      %24 = vector.broadcast %cst_14 : f32 to vector<16x1xf32>
      %25 = arith.addf %21, %24 : vector<16x1xf32>
      %26 = math.rsqrt %25 : vector<16x1xf32>
      %27 = vector.broadcast %26 : vector<16x1xf32> to vector<16x128xf32>
      %28 = arith.mulf %23, %27 : vector<16x128xf32>
      %c0_15 = arith.constant 0 : index
      %c0_16 = arith.constant 0 : index
      %29 = vector.load %arg3[%c0_15, %c0_16] : memref<1x128xf32, #tpu.memory_space<vmem>>, vector<1x128xf32>
      %30 = vector.broadcast %29 : vector<1x128xf32> to vector<16x128xf32>
      %31 = arith.mulf %28, %30 : vector<16x128xf32>
      %c0_17 = arith.constant 0 : index
      %c0_18 = arith.constant 0 : index
      %32 = vector.load %arg4[%c0_17, %c0_18] : memref<1x128xf32, #tpu.memory_space<vmem>>, vector<1x128xf32>
      %33 = vector.broadcast %32 : vector<1x128xf32> to vector<16x128xf32>
      %34 = arith.addf %31, %33 : vector<16x128xf32>
      %c0_19 = arith.constant 0 : index
      %c0_20 = arith.constant 0 : index
      %35 = vector.load %arg8[%c0_19, %c0_20] : memref<16x128xf32, #tpu.memory_space<vmem>>, vector<16x128xf32>
      tpu.vector_store %arg8[%c0_19, %c0_20], %34 {strides = array<i32>} : memref<16x128xf32, #tpu.memory_space<vmem>>, vector<16x128xf32>,
    } else {
    }
    %c0 = arith.constant 0 : index
    %c0_1 = arith.constant 0 : index
    %3 = vector.load %arg8[%c0, %c0_1] : memref<16x128xf32, #tpu.memory_space<vmem>>, vector<16x128xf32>
    %c0_2 = arith.constant 0 : index
    %c0_3 = arith.constant 0 : index
    %4 = vector.load %arg5[%c0_2, %c0_3] : memref<128x128xf32, #tpu.memory_space<vmem>>, vector<128x128xf32>
    %cst = arith.constant dense<0.000000e+00> : vector<16x128xf32>
    %5 = tpu.matmul %3, %4, %cst {dimension_numbers = #tpu.dot_dimension_numbers<[1], [0], [0], [1], [0, 0, 1, 1], [], []>} : vector<16x128xf32>, vector<128x128xf32>, vector<16x128xf32> -> vector<16x128xf32>
    %c0_4 = arith.constant 0 : index
    %c0_5 = arith.constant 0 : index
    %6 = vector.load %arg6[%c0_4, %c0_5] : memref<1x128xf32, #tpu.memory_space<vmem>>, vector<1x128xf32>
    %7 = vector.broadcast %6 : vector<1x128xf32> to vector<16x128xf32>
    %8 = arith.addf %5, %7 : vector<16x128xf32>
    %c0_6 = arith.constant 0 : index
    %c0_7 = arith.constant 0 : index
    %9 = vector.load %arg7[%c0_6, %c0_7] : memref<16x128xf32, #tpu.memory_space<vmem>>, vector<16x128xf32>
    tpu.vector_store %arg7[%c0_6, %c0_7], %8 {strides = array<i32>} : memref<16x128xf32, #tpu.memory_space<vmem>>, vector<16x128xf32>,
    return
  }
  func.func @transform_0(%arg0: i32, %arg1: i32) -> (i32, i32) {
    %c0_i32 = arith.constant 0 : i32
    %c0_i32_0 = arith.constant 0 : i32
    return %arg0, %c0_i32 : i32, i32
  }
  func.func @transform_1(%arg0: i32, %arg1: i32) -> (i32, i32) {
    %c0_i32 = arith.constant 0 : i32
    %c0_i32_0 = arith.constant 0 : i32
    %c0_i32_1 = arith.constant 0 : i32
    return %c0_i32, %c0_i32_0 : i32, i32
  }
  func.func @transform_2(%arg0: i32, %arg1: i32) -> (i32, i32) {
    %c0_i32 = arith.constant 0 : i32
    %c0_i32_0 = arith.constant 0 : i32
    %c0_i32_1 = arith.constant 0 : i32
    return %c0_i32, %c0_i32_0 : i32, i32
  }
  func.func @transform_3(%arg0: i32, %arg1: i32) -> (i32, i32) {
    %c0_i32 = arith.constant 0 : i32
    %c0_i32_0 = arith.constant 0 : i32
    return %c0_i32, %arg1 : i32, i32
  }
  func.func @transform_4(%arg0: i32, %arg1: i32) -> (i32, i32) {
    %c0_i32 = arith.constant 0 : i32
    %c0_i32_0 = arith.constant 0 : i32
    return %c0_i32, %arg1 : i32, i32
  }
  func.func @transform_5(%arg0: i32, %arg1: i32) -> (i32, i32) {
    %c0_i32 = arith.constant 0 : i32
    return %arg0, %arg1 : i32, i32
  }
}

module attributes {stable_mosaic.version = 11 : i64} {
  func.func @_linear_residual_kernel(%arg0: i32, %arg1: i32, %arg2: i32, %arg3: memref<16x512xf32, #tpu.memory_space<vmem>>, %arg4: memref<512x128xf32, #tpu.memory_space<vmem>>, %arg5: memref<1x128xf32, #tpu.memory_space<vmem>>, %arg6: memref<16x128xf32, #tpu.memory_space<vmem>>, %arg7: memref<16x128xf32, #tpu.memory_space<vmem>>, %arg8: memref<16x128xf32, #tpu.memory_space<vmem>>) attributes {dimension_semantics = [#tpu.dimension_semantics<parallel>, #tpu.dimension_semantics<parallel>, #tpu.dimension_semantics<arbitrary>], iteration_bounds = array<i64: 1, 1, 1>, scalar_prefetch = 0 : i64, scratch_operands = 1 : i64, tpu.core_type = #tpu.core_type<tc>, window_params = [{transform_indices = @transform_0, window_bounds = array<i64: 16, 512>}, {transform_indices = @transform_1, window_bounds = array<i64: 512, 128>}, {transform_indices = @transform_2, window_bounds = array<i64: 1, 128>}, {transform_indices = @transform_3, window_bounds = array<i64: 16, 128>}, {transform_indices = @transform_4, window_bounds = array<i64: 16, 128>}]} {
    %c0_i32 = arith.constant 0 : i32
    %0 = arith.cmpi eq, %arg2, %c0_i32 : i32
    %1 = arith.extui %0 : i1 to i32
    %c0_i32_0 = arith.constant 0 : i32
    %2 = arith.cmpi ne, %1, %c0_i32_0 : i32
    scf.if %2 {
      %cst_10 = arith.constant 0.000000e+00 : f32
      %12 = vector.broadcast %cst_10 : f32 to vector<16x128xf32>
      %c0_11 = arith.constant 0 : index
      %c0_12 = arith.constant 0 : index
      %13 = vector.load %arg8[%c0_11, %c0_12] : memref<16x128xf32, #tpu.memory_space<vmem>>, vector<16x128xf32>
      tpu.vector_store %arg8[%c0_11, %c0_12], %12 {strides = array<i32>} : memref<16x128xf32, #tpu.memory_space<vmem>>, vector<16x128xf32>,
    } else {
    }
    %c0 = arith.constant 0 : index
    %c0_1 = arith.constant 0 : index
    %3 = vector.load %arg8[%c0, %c0_1] : memref<16x128xf32, #tpu.memory_space<vmem>>, vector<16x128xf32>
    %c0_2 = arith.constant 0 : index
    %c0_3 = arith.constant 0 : index
    %4 = vector.load %arg3[%c0_2, %c0_3] : memref<16x512xf32, #tpu.memory_space<vmem>>, vector<16x512xf32>
    %c0_4 = arith.constant 0 : index
    %c0_5 = arith.constant 0 : index
    %5 = vector.load %arg4[%c0_4, %c0_5] : memref<512x128xf32, #tpu.memory_space<vmem>>, vector<512x128xf32>
    %cst = arith.constant dense<0.000000e+00> : vector<16x128xf32>
    %6 = tpu.matmul %4, %5, %cst {dimension_numbers = #tpu.dot_dimension_numbers<[1], [0], [0], [1], [0, 0, 1, 1], [], []>} : vector<16x512xf32>, vector<512x128xf32>, vector<16x128xf32> -> vector<16x128xf32>
    %7 = arith.addf %3, %6 : vector<16x128xf32>
    %c0_6 = arith.constant 0 : index
    %c0_7 = arith.constant 0 : index
    %8 = vector.load %arg8[%c0_6, %c0_7] : memref<16x128xf32, #tpu.memory_space<vmem>>, vector<16x128xf32>
    tpu.vector_store %arg8[%c0_6, %c0_7], %7 {strides = array<i32>} : memref<16x128xf32, #tpu.memory_space<vmem>>, vector<16x128xf32>,
    %c0_i32_8 = arith.constant 0 : i32
    %9 = arith.cmpi eq, %arg2, %c0_i32_8 : i32
    %10 = arith.extui %9 : i1 to i32
    %c0_i32_9 = arith.constant 0 : i32
    %11 = arith.cmpi ne, %10, %c0_i32_9 : i32
    scf.if %11 {
      %c0_10 = arith.constant 0 : index
      %c0_11 = arith.constant 0 : index
      %12 = vector.load %arg8[%c0_10, %c0_11] : memref<16x128xf32, #tpu.memory_space<vmem>>, vector<16x128xf32>
      %c0_12 = arith.constant 0 : index
      %c0_13 = arith.constant 0 : index
      %13 = vector.load %arg5[%c0_12, %c0_13] : memref<1x128xf32, #tpu.memory_space<vmem>>, vector<1x128xf32>
      %14 = vector.broadcast %13 : vector<1x128xf32> to vector<16x128xf32>
      %15 = arith.addf %12, %14 : vector<16x128xf32>
      %c0_14 = arith.constant 0 : index
      %c0_15 = arith.constant 0 : index
      %16 = vector.load %arg6[%c0_14, %c0_15] : memref<16x128xf32, #tpu.memory_space<vmem>>, vector<16x128xf32>
      %17 = arith.addf %15, %16 : vector<16x128xf32>
      %c0_16 = arith.constant 0 : index
      %c0_17 = arith.constant 0 : index
      %18 = vector.load %arg7[%c0_16, %c0_17] : memref<16x128xf32, #tpu.memory_space<vmem>>, vector<16x128xf32>
      tpu.vector_store %arg7[%c0_16, %c0_17], %17 {strides = array<i32>} : memref<16x128xf32, #tpu.memory_space<vmem>>, vector<16x128xf32>,
    } else {
    }
    return
  }
  func.func @transform_0(%arg0: i32, %arg1: i32, %arg2: i32) -> (i32, i32) {
    %c0_i32 = arith.constant 0 : i32
    return %arg0, %arg2 : i32, i32
  }
  func.func @transform_1(%arg0: i32, %arg1: i32, %arg2: i32) -> (i32, i32) {
    %c0_i32 = arith.constant 0 : i32
    return %arg2, %arg1 : i32, i32
  }
  func.func @transform_2(%arg0: i32, %arg1: i32, %arg2: i32) -> (i32, i32) {
    %c0_i32 = arith.constant 0 : i32
    %c0_i32_0 = arith.constant 0 : i32
    return %c0_i32, %arg1 : i32, i32
  }
  func.func @transform_3(%arg0: i32, %arg1: i32, %arg2: i32) -> (i32, i32) {
    %c0_i32 = arith.constant 0 : i32
    return %arg0, %arg1 : i32, i32
  }
  func.func @transform_4(%arg0: i32, %arg1: i32, %arg2: i32) -> (i32, i32) {
    %c0_i32 = arith.constant 0 : i32
    return %arg0, %arg1 : i32, i32
  }
}

module attributes {stable_mosaic.version = 11 : i64} {
  func.func @_ln_lm_head_kernel(%arg0: i32, %arg1: i32, %arg2: memref<16x128xf32, #tpu.memory_space<vmem>>, %arg3: memref<1x128xf32, #tpu.memory_space<vmem>>, %arg4: memref<1x128xf32, #tpu.memory_space<vmem>>, %arg5: memref<256x128xf32, #tpu.memory_space<vmem>>, %arg6: memref<16x256xf32, #tpu.memory_space<vmem>>, %arg7: memref<16x128xf32, #tpu.memory_space<vmem>>) attributes {dimension_semantics = [#tpu.dimension_semantics<parallel>, #tpu.dimension_semantics<arbitrary>], iteration_bounds = array<i64: 1, 1>, scalar_prefetch = 0 : i64, scratch_operands = 1 : i64, tpu.core_type = #tpu.core_type<tc>, window_params = [{transform_indices = @transform_0, window_bounds = array<i64: 16, 128>}, {pipeline_mode = #tpu.pipeline_mode<synchronous>, transform_indices = @transform_1, window_bounds = array<i64: 1, 128>}, {pipeline_mode = #tpu.pipeline_mode<synchronous>, transform_indices = @transform_2, window_bounds = array<i64: 1, 128>}, {transform_indices = @transform_3, window_bounds = array<i64: 256, 128>}, {transform_indices = @transform_4, window_bounds = array<i64: 16, 256>}]} {
    %c0_i32 = arith.constant 0 : i32
    %0 = arith.cmpi eq, %arg1, %c0_i32 : i32
    %1 = arith.extui %0 : i1 to i32
    %c0_i32_0 = arith.constant 0 : i32
    %2 = arith.cmpi ne, %1, %c0_i32_0 : i32
    scf.if %2 {
      %c0_6 = arith.constant 0 : index
      %c0_7 = arith.constant 0 : index
      %7 = vector.load %arg2[%c0_6, %c0_7] : memref<16x128xf32, #tpu.memory_space<vmem>>, vector<16x128xf32>
      %cst_8 = arith.constant dense<0.000000e+00> : vector<16xf32>
      %8 = vector.multi_reduction <add>, %7, %cst_8 [1] : vector<16x128xf32> to vector<16xf32>
      %9 = vector.shape_cast %8 : vector<16xf32> to vector<16x1xf32>
      %cst_9 = arith.constant 1.280000e+02 : f32
      %10 = vector.broadcast %cst_9 : f32 to vector<16x1xf32>
      %11 = arith.divf %9, %10 : vector<16x1xf32>
      %12 = vector.broadcast %11 : vector<16x1xf32> to vector<16x128xf32>
      %13 = arith.subf %7, %12 : vector<16x128xf32>
      %14 = arith.mulf %13, %13 : vector<16x128xf32>
      %cst_10 = arith.constant dense<0.000000e+00> : vector<16xf32>
      %15 = vector.multi_reduction <add>, %14, %cst_10 [1] : vector<16x128xf32> to vector<16xf32>
      %16 = vector.shape_cast %15 : vector<16xf32> to vector<16x1xf32>
      %cst_11 = arith.constant 1.280000e+02 : f32
      %17 = vector.broadcast %cst_11 : f32 to vector<16x1xf32>
      %18 = arith.divf %16, %17 : vector<16x1xf32>
      %19 = vector.broadcast %11 : vector<16x1xf32> to vector<16x128xf32>
      %20 = arith.subf %7, %19 : vector<16x128xf32>
      %cst_12 = arith.constant 9.99999974E-6 : f32
      %21 = vector.broadcast %cst_12 : f32 to vector<16x1xf32>
      %22 = arith.addf %18, %21 : vector<16x1xf32>
      %23 = math.rsqrt %22 : vector<16x1xf32>
      %24 = vector.broadcast %23 : vector<16x1xf32> to vector<16x128xf32>
      %25 = arith.mulf %20, %24 : vector<16x128xf32>
      %c0_13 = arith.constant 0 : index
      %c0_14 = arith.constant 0 : index
      %26 = vector.load %arg3[%c0_13, %c0_14] : memref<1x128xf32, #tpu.memory_space<vmem>>, vector<1x128xf32>
      %27 = vector.broadcast %26 : vector<1x128xf32> to vector<16x128xf32>
      %28 = arith.mulf %25, %27 : vector<16x128xf32>
      %c0_15 = arith.constant 0 : index
      %c0_16 = arith.constant 0 : index
      %29 = vector.load %arg4[%c0_15, %c0_16] : memref<1x128xf32, #tpu.memory_space<vmem>>, vector<1x128xf32>
      %30 = vector.broadcast %29 : vector<1x128xf32> to vector<16x128xf32>
      %31 = arith.addf %28, %30 : vector<16x128xf32>
      %c0_17 = arith.constant 0 : index
      %c0_18 = arith.constant 0 : index
      %32 = vector.load %arg7[%c0_17, %c0_18] : memref<16x128xf32, #tpu.memory_space<vmem>>, vector<16x128xf32>
      tpu.vector_store %arg7[%c0_17, %c0_18], %31 {strides = array<i32>} : memref<16x128xf32, #tpu.memory_space<vmem>>, vector<16x128xf32>,
    } else {
    }
    %c0 = arith.constant 0 : index
    %c0_1 = arith.constant 0 : index
    %3 = vector.load %arg7[%c0, %c0_1] : memref<16x128xf32, #tpu.memory_space<vmem>>, vector<16x128xf32>
    %c0_2 = arith.constant 0 : index
    %c0_3 = arith.constant 0 : index
    %4 = vector.load %arg5[%c0_2, %c0_3] : memref<256x128xf32, #tpu.memory_space<vmem>>, vector<256x128xf32>
    %cst = arith.constant dense<0.000000e+00> : vector<16x256xf32>
    %5 = tpu.matmul %3, %4, %cst {dimension_numbers = #tpu.dot_dimension_numbers<[1], [1], [0], [0], [0, 0, 1, 0], [], []>} : vector<16x128xf32>, vector<256x128xf32>, vector<16x256xf32> -> vector<16x256xf32>
    %c0_4 = arith.constant 0 : index
    %c0_5 = arith.constant 0 : index
    %6 = vector.load %arg6[%c0_4, %c0_5] : memref<16x256xf32, #tpu.memory_space<vmem>>, vector<16x256xf32>
    tpu.vector_store %arg6[%c0_4, %c0_5], %5 {strides = array<i32>} : memref<16x256xf32, #tpu.memory_space<vmem>>, vector<16x256xf32>,
    return
  }
  func.func @transform_0(%arg0: i32, %arg1: i32) -> (i32, i32) {
    %c0_i32 = arith.constant 0 : i32
    %c0_i32_0 = arith.constant 0 : i32
    return %arg0, %c0_i32 : i32, i32
  }
  func.func @transform_1(%arg0: i32, %arg1: i32) -> (i32, i32) {
    %c0_i32 = arith.constant 0 : i32
    %c0_i32_0 = arith.constant 0 : i32
    %c0_i32_1 = arith.constant 0 : i32
    return %c0_i32, %c0_i32_0 : i32, i32
  }
  func.func @transform_2(%arg0: i32, %arg1: i32) -> (i32, i32) {
    %c0_i32 = arith.constant 0 : i32
    %c0_i32_0 = arith.constant 0 : i32
    %c0_i32_1 = arith.constant 0 : i32
    return %c0_i32, %c0_i32_0 : i32, i32
  }
  func.func @transform_3(%arg0: i32, %arg1: i32) -> (i32, i32) {
    %c0_i32 = arith.constant 0 : i32
    %c0_i32_0 = arith.constant 0 : i32
    return %arg1, %c0_i32 : i32, i32
  }
  func.func @transform_4(%arg0: i32, %arg1: i32) -> (i32, i32) {
    %c0_i32 = arith.constant 0 : i32
    return %arg0, %arg1 : i32, i32
  }
}

</mosaic_0001>

<llo_original>
// kernel: gpt_forward.14
$region0: #{gpt_forward.14}
  #allocation0 [shape = 'u32[]', space=smem, size = 0x4, offset = 0x4, fixed_abs, tag = 'smem constant byte address 0x4 - core index']
  #allocation1 [shape = 'u32[144,128]{1,0:T(1,128)}', space=vmem, size = 0x12000, scoped, tag = 'internal scratch']
  #allocation2 [shape = 'f32[16,128]{1,0:T(8,128)}', space=vmem, size = 0x2000, scoped, tag = 'scratch operand']
  %s0 = inlined_call_operand.vmem [shape: f32[16,128], index: 0, kind: input, shape index: {}]
  %s1 = inlined_call_operand.vmem [shape: f32[1,128], index: 1, kind: input, shape index: {}]
  %s2 = inlined_call_operand.vmem [shape: f32[1,128], index: 2, kind: input, shape index: {}]
  %s3 = inlined_call_operand.vmem [shape: f32[128,512], index: 3, kind: input, shape index: {}]
  %s4 = inlined_call_operand.vmem [shape: f32[1,512], index: 4, kind: input, shape index: {}]
  %s5 = inlined_call_operand.vmem [shape: f32[16,512], index: 5, kind: output, shape index: {}]
  %s6 = sld [smem:[#allocation0]]
  $region99: #{gpt_forward.14} parent=0
    _
  %s8 = ssub.s32 1, %s6
  %s9 = scalar_select 0, %s8, %s6
  $region1: #{gpt_forward.14} parent=0
    #allocation3 [shape = 'u8[262144]{0}', space=vmem, size = 0x40000, scoped, tag = 'input window, operand 3']
    #allocation4 [shape = 'u8[32768]{0}', space=vmem, size = 0x8000, scoped, tag = 'output window, operand 0']
    loop: start=0, step=1, limit=4
    $region2: #{gpt_forward.14} parent=1 // loop_pre_header
      _
    $region3: #{gpt_forward.14} parent=1 // loop_header
      %s11 = sphi 0, %s15
      %p12 = scmp.ge.s32.totalorder %s11, 4
      %s18 = sphi 0, %s30
      %s19 = sphi 0, %s26
      %s20 = sphi 0, %s18
      %s21 = sphi 0, %s19
      %s22 = sphi 0, %s20
      %s23 = sphi 0, %s21
      %s33 = sphi 0, %s35
      %s36 = sphi 0, %s33
      %s37 = sphi 0, %s36
      %s53 = sphi 0, %s37
      %s57 = sphi 0, %s57
      %s59 = sphi 0, %s57
      %s60 = sphi 0, %s59
      %s74 = sphi 0, %s60
      %s78 = sphi 0, %s78
      %s80 = sphi 0, %s78
      %s81 = sphi 0, %s80
      %s95 = sphi 0, %s81
      %s101 = sphi 0, %s103
      %s104 = sphi 0, %s101
      %s105 = sphi 0, %s104
      %s121 = sphi 0, %s105
      %s127 = sphi 0, %s129
      %s130 = sphi 0, %s127
      %s131 = sphi 0, %s130
      %s147 = sphi 0, %s131
      %s155 = sphi 0, %s157
      %s158 = sphi 0, %s155
      %s159 = sphi 0, %s158
      %s175 = sphi 0, %s159
    $region4: #{gpt_forward.14} parent=1 // loop_header_branch
      %14 = sbr.rel (%p12) target = $region8
    $region5: #{gpt_forward.14} parent=1 // loop_body
      %s16 = ssub.s32 %s11, 1
      %s17 = ssub.s32 %s11, 2
      %s24 = sadd.s32 1, %s19
      %p25 = scmp.ge.s32.totalorder %s24, 2
      %s26 = scalar_select %p25, 0, %s24
      %s27 = sadd.s32 1, %s18
      %s28 = scalar_select %p25, %s27, %s18
      %p29 = scmp.ge.s32.totalorder %s28, 1
      %s30 = scalar_select %p29, 0, %s28
      %s31 = ssub.s32 %s18, %s30
      %p32 = scmp.eq.s32.totalorder %s31, 0
      %s34 = sadd.s32 %s33, 1
      %s35 = scalar_select %p32, %s33, %s34
      %p38 = pneg %p32
      %p39 = scmp.eq.s32.totalorder %s11, 1
      %p40 = por %p38, %p39
      %p41 = scmp.ne.s32.totalorder %s33, %s36
      %p42 = scmp.eq.s32.totalorder %s11, 0
      %p43 = por %p41, %p42
      %p44 = scmp.ne.s32.totalorder %s33, %s36
      %p45 = scmp.eq.s32.totalorder %s16, 1
      %p46 = por %p44, %p45
      %p47 = scmp.ne.s32.totalorder %s36, %s37
      %p48 = scmp.eq.s32.totalorder %s16, 0
      %p49 = por %p47, %p48
      %p50 = scmp.ne.s32.totalorder %s36, %s37
      %p51 = scmp.eq.s32.totalorder %s17, 1
      %p52 = por %p50, %p51
      %p54 = scmp.ne.s32.totalorder %s37, %s53
      %p55 = scmp.eq.s32.totalorder %s17, 0
      %p56 = por %p54, %p55
      %s58 = sadd.s32 %s57, 1
      %p61 = scmp.eq.s32.totalorder %s11, 1
      %p62 = scmp.ne.s32.totalorder %s57, %s59
      %p63 = scmp.eq.s32.totalorder %s11, 0
      %p64 = por %p62, %p63
      %p65 = scmp.ne.s32.totalorder %s57, %s59
      %p66 = scmp.eq.s32.totalorder %s16, 1
      %p67 = por %p65, %p66
      %p68 = scmp.ne.s32.totalorder %s59, %s60
      %p69 = scmp.eq.s32.totalorder %s16, 0
      %p70 = por %p68, %p69
      %p71 = scmp.ne.s32.totalorder %s59, %s60
      %p72 = scmp.eq.s32.totalorder %s17, 1
      %p73 = por %p71, %p72
      %p75 = scmp.ne.s32.totalorder %s60, %s74
      %p76 = scmp.eq.s32.totalorder %s17, 0
      %p77 = por %p75, %p76
      %s79 = sadd.s32 %s78, 1
      %p82 = scmp.eq.s32.totalorder %s11, 1
      %p83 = scmp.ne.s32.totalorder %s78, %s80
      %p84 = scmp.eq.s32.totalorder %s11, 0
      %p85 = por %p83, %p84
      %p86 = scmp.ne.s32.totalorder %s78, %s80
      %p87 = scmp.eq.s32.totalorder %s16, 1
      %p88 = por %p86, %p87
      %p89 = scmp.ne.s32.totalorder %s80, %s81
      %p90 = scmp.eq.s32.totalorder %s16, 0
      %p91 = por %p89, %p90
      %p92 = scmp.ne.s32.totalorder %s80, %s81
      %p93 = scmp.eq.s32.totalorder %s17, 1
      %p94 = por %p92, %p93
      %p96 = scmp.ne.s32.totalorder %s81, %s95
      %p97 = scmp.eq.s32.totalorder %s17, 0
      %p98 = por %p96, %p97
      %s99 = ssub.s32 %s19, %s26
      %p100 = scmp.eq.s32.totalorder %s99, 0
      %s102 = sadd.s32 %s101, 1
      %s103 = scalar_select %p100, %s101, %s102
      %p106 = pneg %p100
      %p107 = scmp.eq.s32.totalorder %s11, 1
      %p108 = por %p106, %p107
      %p109 = scmp.ne.s32.totalorder %s101, %s104
      %p110 = scmp.eq.s32.totalorder %s11, 0
      %p111 = por %p109, %p110
      %p112 = scmp.ne.s32.totalorder %s101, %s104
      %p113 = scmp.eq.s32.totalorder %s16, 1
      %p114 = por %p112, %p113
      %p115 = scmp.ne.s32.totalorder %s104, %s105
      %p116 = scmp.eq.s32.totalorder %s16, 0
      %p117 = por %p115, %p116
      %p118 = scmp.ne.s32.totalorder %s104, %s105
      %p119 = scmp.eq.s32.totalorder %s17, 1
      %p120 = por %p118, %p119
      %p122 = scmp.ne.s32.totalorder %s105, %s121
      %p123 = scmp.eq.s32.totalorder %s17, 0
      %p124 = por %p122, %p123
      %s125 = ssub.s32 %s19, %s26
      %p126 = scmp.eq.s32.totalorder %s125, 0
      %s128 = sadd.s32 %s127, 1
      %s129 = scalar_select %p126, %s127, %s128
      %p132 = pneg %p126
      %p133 = scmp.eq.s32.totalorder %s11, 1
      %p134 = por %p132, %p133
      %p135 = scmp.ne.s32.totalorder %s127, %s130
      %p136 = scmp.eq.s32.totalorder %s11, 0
      %p137 = por %p135, %p136
      %p138 = scmp.ne.s32.totalorder %s127, %s130
      %p139 = scmp.eq.s32.totalorder %s16, 1
      %p140 = por %p138, %p139
      %p141 = scmp.ne.s32.totalorder %s130, %s131
      %p142 = scmp.eq.s32.totalorder %s16, 0
      %p143 = por %p141, %p142
      %p144 = scmp.ne.s32.totalorder %s130, %s131
      %p145 = scmp.eq.s32.totalorder %s17, 1
      %p146 = por %p144, %p145
      %p148 = scmp.ne.s32.totalorder %s131, %s147
      %p149 = scmp.eq.s32.totalorder %s17, 0
      %p150 = por %p148, %p149
      %s151 = ssub.s32 %s18, %s30
      %s152 = ssub.s32 %s19, %s26
      %s153 = sor.u32 %s151, %s152
      %p154 = scmp.eq.s32.totalorder %s153, 0
      %s156 = sadd.s32 %s155, 1
      %s157 = scalar_select %p154, %s155, %s156
      %p160 = pneg %p154
      %p161 = scmp.eq.s32.totalorder %s11, 1
      %p162 = por %p160, %p161
      %p163 = scmp.ne.s32.totalorder %s155, %s158
      %p164 = scmp.eq.s32.totalorder %s11, 0
      %p165 = por %p163, %p164
      %p166 = scmp.ne.s32.totalorder %s155, %s158
      %p167 = scmp.eq.s32.totalorder %s16, 1
      %p168 = por %p166, %p167
      %p169 = scmp.ne.s32.totalorder %s158, %s159
      %p170 = scmp.eq.s32.totalorder %s16, 0
      %p171 = por %p169, %p170
      %p172 = scmp.ne.s32.totalorder %s158, %s159
      %p173 = scmp.eq.s32.totalorder %s17, 1
      %p174 = por %p172, %p173
      %p176 = scmp.ne.s32.totalorder %s159, %s175
      %p177 = scmp.eq.s32.totalorder %s17, 0
      %p178 = por %p176, %p177
      %p179 = scmp.le.s32.totalorder 1, %s11
      %p180 = scmp.lt.s32.totalorder %s11, 3
      %p181 = pnand %p179, %p180
      %p182 = pneg %p181
      // Predicated region
      $region9: #{gpt_forward.14} parent=5 // pred_check
        _
      $region10: #{gpt_forward.14} parent=5 // pred_check_branch
        %184 = sbr.rel (%p181) target = $region12
      $region11: #{gpt_forward.14} parent=5 // pred_region
        %s185 = ssub.s32 %s11, 1
        // Predicated region
        $region13: #{gpt_forward.14} parent=11 // pred_check
          %p186 = pneg %p49
        $region14: #{gpt_forward.14} parent=11 // pred_check_branch
          %188 = sbr.rel (%p186) target = $region16
        $region15: #{gpt_forward.14} parent=11 // pred_region
          %s189 = smul.u32 2, %s20
          %p190 = scmp.lt.s32.totalorder %s189, 1
          %s191 = scalar_select %p190, %s189, 1
          %s192 = smul.addr %s191, 8
          %s193 = scalar_lea.vmem %s0, %s192
          %s194 = smul.u32 2, %s20
        $region16: #{gpt_forward.14} parent=11 // pred_fallthru
          _
        // Predicated region
        $region17: #{gpt_forward.14} parent=11 // pred_check
          %p195 = pneg %p70
        $region18: #{gpt_forward.14} parent=11 // pred_check_branch
          %197 = sbr.rel (%p195) target = $region20
        $region19: #{gpt_forward.14} parent=11 // pred_region
          _
        $region20: #{gpt_forward.14} parent=11 // pred_fallthru
          _
        // Predicated region
        $region21: #{gpt_forward.14} parent=11 // pred_check
          %p198 = pneg %p91
        $region22: #{gpt_forward.14} parent=11 // pred_check_branch
          %200 = sbr.rel (%p198) target = $region24
        $region23: #{gpt_forward.14} parent=11 // pred_region
          _
        $region24: #{gpt_forward.14} parent=11 // pred_fallthru
          _
      $region12: #{gpt_forward.14} parent=5 // pred_fallthru
        _
      %p201 = scmp.lt.s32.totalorder %s11, 2
      // Predicated region
      $region25: #{gpt_forward.14} parent=5 // pred_check
        %p202 = pneg %p201
      $region26: #{gpt_forward.14} parent=5 // pred_check_branch
        %204 = sbr.rel (%p202) target = $region28
      $region27: #{gpt_forward.14} parent=5 // pred_region
        // Predicated region
        $region29: #{gpt_forward.14} parent=27 // pred_check
          %p205 = pneg %p111
        $region30: #{gpt_forward.14} parent=27 // pred_check_branch
          %207 = sbr.rel (%p205) target = $region32
        $region31: #{gpt_forward.14} parent=27 // pred_region
          %s208 = sand.u32 %s101, 1
          %s209 = sand.u32 %s101, 1
          %s210 = smul.addr %s209, 256
          %s211 = scalar_lea.vmem [#allocation3], %s210
          %s212 = smul.u32 2, %s19
          %s213 = smul.addr %s212, 8
          %s214 = scalar_lea.vmem %s3, %s213
          // Predicated region
          $region33: #{gpt_forward.14} parent=31 // pred_check
            _
          $region34: #{gpt_forward.14} parent=31 // pred_check_branch
            %216 = sbr.rel (0) target = $region36
          $region35: #{gpt_forward.14} parent=31 // pred_region
            // Predicated region
            $region37: #{gpt_forward.14} parent=35 // pred_check
              _
            $region38: #{gpt_forward.14} parent=35 // pred_check_branch
              %218 = sbr.rel (0) target = $region40
            $region39: #{gpt_forward.14} parent=35 // pred_region
              loop: start=0, step=1, limit=1
              $region41: #{gpt_forward.14} parent=39 // loop_pre_header
                _
              $region42: #{gpt_forward.14} parent=39 // loop_header
                %s220 = sphi 0, %s224
                %p221 = scmp.ge.s32.totalorder %s220, 1
                %s225 = sphi %s214, %s214
                %s226 = sphi %s211, %s211
              $region43: #{gpt_forward.14} parent=39 // loop_header_branch
                %223 = sbr.rel (%p221) target = $region47
              $region44: #{gpt_forward.14} parent=39 // loop_body
                %v227 = vld [vmem:[%s225] sm:$0xff]
                %228 = vst [vmem:[%s226] sm:$0xff] %v227
                %v229 = vld [vmem:[%s225 + $0x8] sm:$0xff]
                %230 = vst [vmem:[%s226 + $0x8] sm:$0xff] %v229
                %v231 = vld [vmem:[%s225 + $0x20] sm:$0xff]
                %232 = vst [vmem:[%s226 + $0x10] sm:$0xff] %v231
                %v233 = vld [vmem:[%s225 + $0x28] sm:$0xff]
                %234 = vst [vmem:[%s226 + $0x18] sm:$0xff] %v233
                %v235 = vld [vmem:[%s225 + $0x40] sm:$0xff]
                %236 = vst [vmem:[%s226 + $0x20] sm:$0xff] %v235
                %v237 = vld [vmem:[%s225 + $0x48] sm:$0xff]
                %238 = vst [vmem:[%s226 + $0x28] sm:$0xff] %v237
                %v239 = vld [vmem:[%s225 + $0x60] sm:$0xff]
                %240 = vst [vmem:[%s226 + $0x30] sm:$0xff] %v239
                %v241 = vld [vmem:[%s225 + $0x68] sm:$0xff]
                %242 = vst [vmem:[%s226 + $0x38] sm:$0xff] %v241
                %v243 = vld [vmem:[%s225 + $0x80] sm:$0xff]
                %244 = vst [vmem:[%s226 + $0x40] sm:$0xff] %v243
                %v245 = vld [vmem:[%s225 + $0x88] sm:$0xff]
                %246 = vst [vmem:[%s226 + $0x48] sm:$0xff] %v245
                %v247 = vld [vmem:[%s225 + $0xa0] sm:$0xff]
                %248 = vst [vmem:[%s226 + $0x50] sm:$0xff] %v247
                %v249 = vld [vmem:[%s225 + $0xa8] sm:$0xff]
                %250 = vst [vmem:[%s226 + $0x58] sm:$0xff] %v249
                %v251 = vld [vmem:[%s225 + $0xc0] sm:$0xff]
                %252 = vst [vmem:[%s226 + $0x60] sm:$0xff] %v251
                %v253 = vld [vmem:[%s225 + $0xc8] sm:$0xff]
                %254 = vst [vmem:[%s226 + $0x68] sm:$0xff] %v253
                %v255 = vld [vmem:[%s225 + $0xe0] sm:$0xff]
                %256 = vst [vmem:[%s226 + $0x70] sm:$0xff] %v255
                %v257 = vld [vmem:[%s225 + $0xe8] sm:$0xff]
                %258 = vst [vmem:[%s226 + $0x78] sm:$0xff] %v257
                %v259 = vld [vmem:[%s225 + $0x100] sm:$0xff]
                %260 = vst [vmem:[%s226 + $0x80] sm:$0xff] %v259
                %v261 = vld [vmem:[%s225 + $0x108] sm:$0xff]
                %262 = vst [vmem:[%s226 + $0x88] sm:$0xff] %v261
                %v263 = vld [vmem:[%s225 + $0x120] sm:$0xff]
                %264 = vst [vmem:[%s226 + $0x90] sm:$0xff] %v263
                %v265 = vld [vmem:[%s225 + $0x128] sm:$0xff]
                %266 = vst [vmem:[%s226 + $0x98] sm:$0xff] %v265
                %v267 = vld [vmem:[%s225 + $0x140] sm:$0xff]
                %268 = vst [vmem:[%s226 + $0xa0] sm:$0xff] %v267
                %v269 = vld [vmem:[%s225 + $0x148] sm:$0xff]
                %270 = vst [vmem:[%s226 + $0xa8] sm:$0xff] %v269
                %v271 = vld [vmem:[%s225 + $0x160] sm:$0xff]
                %272 = vst [vmem:[%s226 + $0xb0] sm:$0xff] %v271
                %v273 = vld [vmem:[%s225 + $0x168] sm:$0xff]
                %274 = vst [vmem:[%s226 + $0xb8] sm:$0xff] %v273
                %v275 = vld [vmem:[%s225 + $0x180] sm:$0xff]
                %276 = vst [vmem:[%s226 + $0xc0] sm:$0xff] %v275
                %v277 = vld [vmem:[%s225 + $0x188] sm:$0xff]
                %278 = vst [vmem:[%s226 + $0xc8] sm:$0xff] %v277
                %v279 = vld [vmem:[%s225 + $0x1a0] sm:$0xff]
                %280 = vst [vmem:[%s226 + $0xd0] sm:$0xff] %v279
                %v281 = vld [vmem:[%s225 + $0x1a8] sm:$0xff]
                %282 = vst [vmem:[%s226 + $0xd8] sm:$0xff] %v281
                %v283 = vld [vmem:[%s225 + $0x1c0] sm:$0xff]
                %284 = vst [vmem:[%s226 + $0xe0] sm:$0xff] %v283
                %v285 = vld [vmem:[%s225 + $0x1c8] sm:$0xff]
                %286 = vst [vmem:[%s226 + $0xe8] sm:$0xff] %v285
                %v287 = vld [vmem:[%s225 + $0x1e0] sm:$0xff]
                %288 = vst [vmem:[%s226 + $0xf0] sm:$0xff] %v287
                %v289 = vld [vmem:[%s225 + $0x1e8] sm:$0xff]
                %290 = vst [vmem:[%s226 + $0xf8] sm:$0xff] %v289
              $region45: #{gpt_forward.14} parent=39 // loop_footer
                %s224 = sadd.s32 1, %s220
              $region46: #{gpt_forward.14} parent=39 // loop_footer_branch
                %219 = sbr.rel target = $region42
              $region47: #{gpt_forward.14} parent=39 // loop_exit
                _
            $region40: #{gpt_forward.14} parent=35 // pred_fallthru
              _
            // Predicated region
            $region48: #{gpt_forward.14} parent=35 // pred_check
              _
            $region49: #{gpt_forward.14} parent=35 // pred_check_branch
              %292 = sbr.rel target = $region51
            $region50: #{gpt_forward.14} parent=35 // pred_region
              _
            $region51: #{gpt_forward.14} parent=35 // pred_fallthru
              _
          $region36: #{gpt_forward.14} parent=31 // pred_fallthru
            _
          %293 = vnop
        $region32: #{gpt_forward.14} parent=27 // pred_fallthru
          _
        // Predicated region
        $region52: #{gpt_forward.14} parent=27 // pred_check
          %p294 = pneg %p137
        $region53: #{gpt_forward.14} parent=27 // pred_check_branch
          %296 = sbr.rel (%p294) target = $region55
        $region54: #{gpt_forward.14} parent=27 // pred_region
          %s297 = smul.u32 2, %s19
          %p298 = scmp.lt.s32.totalorder %s297, 3
          %s299 = scalar_select %p298, %s297, 3
          %s300 = scalar_lea.vmem %s4, %s299
          %s301 = smul.u32 2, %s19
        $region55: #{gpt_forward.14} parent=27 // pred_fallthru
          _
      $region28: #{gpt_forward.14} parent=5 // pred_fallthru
        _
      %p302 = scmp.le.s32.totalorder 1, %s11
      %p303 = scmp.lt.s32.totalorder %s11, 3
      %p304 = pnand %p302, %p303
      %p305 = pneg %p304
      // Predicated region
      $region56: #{gpt_forward.14} parent=5 // pred_check
        _
      $region57: #{gpt_forward.14} parent=5 // pred_check_branch
        %307 = sbr.rel (%p304) target = $region59
      $region58: #{gpt_forward.14} parent=5 // pred_region
        %s308 = ssub.s32 %s11, 1
        %s309 = sand.u32 %s104, 1
        %s310 = sand.u32 %s104, 1
        %s311 = smul.addr %s310, 256
        %s312 = scalar_lea.vmem [#allocation3], %s311
        // Predicated region
        $region60: #{gpt_forward.14} parent=58 // pred_check
          %p313 = pneg %p117
        $region61: #{gpt_forward.14} parent=58 // pred_check_branch
          %315 = sbr.rel (%p313) target = $region63
        $region62: #{gpt_forward.14} parent=58 // pred_region
          _
        $region63: #{gpt_forward.14} parent=58 // pred_fallthru
          _
        %s316 = smul.u32 2, %s20
        %p317 = scmp.lt.s32.totalorder %s316, 1
        %s318 = scalar_select %p317, %s316, 1
        %s319 = smul.addr %s318, 8
        %s320 = scalar_lea.vmem %s0, %s319
        %p321 = pneg %p49
        %p322 = pneg %p46
        %p323 = pneg %p70
        %p324 = pneg %p67
        %p325 = pneg %p91
        %p326 = pneg %p88
        %s327 = sand.u32 %s104, 1
        %s328 = sand.u32 %s104, 1
        %s329 = smul.addr %s328, 256
        %s330 = scalar_lea.vmem [#allocation3], %s329
        %p331 = pneg %p117
        %p332 = pneg %p114
        %s333 = smul.u32 2, %s21
        %p334 = scmp.lt.s32.totalorder %s333, 3
        %s335 = scalar_select %p334, %s333, 3
        %s336 = scalar_lea.vmem %s4, %s335
        %p337 = pneg %p143
        %p338 = pneg %p140
        %p339 = pneg %p171
        %p340 = pneg %p168
        %s341 = sand.u32 %s158, 1
        %s342 = sand.u32 %s158, 1
        %s343 = smul.addr %s342, 32
        %s344 = scalar_lea.vmem [#allocation4], %s343
        %s345 = smul.u32 2, %s20
        %p346 = scmp.lt.s32.totalorder %s345, 1
        %s347 = scalar_select %p346, %s345, 1
        %s348 = smul.addr %s347, 8
        %s349 = scalar_lea.vmem %s0, %s348
        %s350 = smul.u32 2, %s20
        %s351 = smul.u32 2, %s21
        %s352 = smul.u32 2, %s21
        %p353 = scmp.lt.s32.totalorder %s352, 3
        %s354 = scalar_select %p353, %s352, 3
        %s355 = scalar_lea.vmem %s4, %s354
        %s356 = smul.u32 2, %s21
        %s357 = smul.u32 2, %s20
        %s358 = smul.u32 2, %s21
        %p359 = scmp.eq.s32.totalorder %s21, 0
        // Predicated region
        $region64: #{gpt_forward.14} parent=58 // pred_check
          %p360 = pneg %p359
        $region65: #{gpt_forward.14} parent=58 // pred_check_branch
          %362 = sbr.rel (%p360) target = $region67
        $region66: #{gpt_forward.14} parent=58 // pred_region
          %v363 = vld [vmem:[%s349] sm:$0xff]
          %v364 = vld [vmem:[%s349 + $0x8] sm:$0xff]
          %365 = vadd.xlane.f32.xlu0 %v363
          %v366 = vpop.xlane.xlu0 %365
          %367 = vadd.xlane.f32.xlu0 %v364
          %v368 = vpop.xlane.xlu0 %367
          %v369 = vrcp.pop 128.0
          %v370 = vmul.f32 %v366, %v369
          %v371 = vmul.f32 %v368, %v369
          %v372 = vsub.f32 %v363, %v370
          %v373 = vsub.f32 %v364, %v371
          %v374 = vmul.f32 %v372, %v372
          %v375 = vmul.f32 %v373, %v373
          %376 = vadd.xlane.f32.xlu0 %v374
          %v377 = vpop.xlane.xlu0 %376
          %378 = vadd.xlane.f32.xlu0 %v375
          %v379 = vpop.xlane.xlu0 %378
          %v380 = vmul.f32 %v377, %v369
          %v381 = vmul.f32 %v379, %v369
          %v382 = vadd.f32 %v380, 1e-05
          %v383 = vadd.f32 %v381, 1e-05
          %v384 = vrsqrt.pop %v382
          %v385 = vrsqrt.pop %v383
          %v386 = vmul.f32 %v372, %v384
          %v387 = vmul.f32 %v373, %v385
          %v388 = vld [vmem:[%s1] sm:$0x1]
          %v390 = vlaneseq
          %v391 = vshrl.u32 %v390, 7
          %v392 = vsub.s32 0, %v391
          %v393 = vrot.slane %v388, %v392
          %v395 = vmul.f32 %v386, %v393
          %v396 = vmul.f32 %v387, %v393
          %v397 = vld [vmem:[%s2] sm:$0x1]
          %v399 = vlaneseq
          %v400 = vshrl.u32 %v399, 7
          %v401 = vsub.s32 0, %v400
          %v402 = vrot.slane %v397, %v401
          %v404 = vadd.f32 %v395, %v402
          %v405 = vadd.f32 %v396, %v402
          %406 = vst [vmem:[#allocation2] sm:$0xff] %v404
          %407 = vst [vmem:[#allocation2 + $0x8] sm:$0xff] %v405
        $region67: #{gpt_forward.14} parent=58 // pred_fallthru
          _
        %v408 = vld [vmem:[#allocation2] sm:$0xff]
        %v409 = vld [vmem:[#allocation2 + $0x8] sm:$0xff]
        %v410 = vld [vmem:[%s312] sm:$0xff]
        %v411 = vld [vmem:[%s312 + $0x8] sm:$0xff]
        %v412 = vld [vmem:[%s312 + $0x10] sm:$0xff]
        %v413 = vld [vmem:[%s312 + $0x18] sm:$0xff]
        %v414 = vld [vmem:[%s312 + $0x20] sm:$0xff]
        %v415 = vld [vmem:[%s312 + $0x28] sm:$0xff]
        %v416 = vld [vmem:[%s312 + $0x30] sm:$0xff]
        %v417 = vld [vmem:[%s312 + $0x38] sm:$0xff]
        %v418 = vld [vmem:[%s312 + $0x40] sm:$0xff]
        %v419 = vld [vmem:[%s312 + $0x48] sm:$0xff]
        %v420 = vld [vmem:[%s312 + $0x50] sm:$0xff]
        %v421 = vld [vmem:[%s312 + $0x58] sm:$0xff]
        %v422 = vld [vmem:[%s312 + $0x60] sm:$0xff]
        %v423 = vld [vmem:[%s312 + $0x68] sm:$0xff]
        %v424 = vld [vmem:[%s312 + $0x70] sm:$0xff]
        %v425 = vld [vmem:[%s312 + $0x78] sm:$0xff]
        %v426 = vld [vmem:[%s312 + $0x80] sm:$0xff]
        %v427 = vld [vmem:[%s312 + $0x88] sm:$0xff]
        %v428 = vld [vmem:[%s312 + $0x90] sm:$0xff]
        %v429 = vld [vmem:[%s312 + $0x98] sm:$0xff]
        %v430 = vld [vmem:[%s312 + $0xa0] sm:$0xff]
        %v431 = vld [vmem:[%s312 + $0xa8] sm:$0xff]
        %v432 = vld [vmem:[%s312 + $0xb0] sm:$0xff]
        %v433 = vld [vmem:[%s312 + $0xb8] sm:$0xff]
        %v434 = vld [vmem:[%s312 + $0xc0] sm:$0xff]
        %v435 = vld [vmem:[%s312 + $0xc8] sm:$0xff]
        %v436 = vld [vmem:[%s312 + $0xd0] sm:$0xff]
        %v437 = vld [vmem:[%s312 + $0xd8] sm:$0xff]
        %v438 = vld [vmem:[%s312 + $0xe0] sm:$0xff]
        %v439 = vld [vmem:[%s312 + $0xe8] sm:$0xff]
        %v440 = vld [vmem:[%s312 + $0xf0] sm:$0xff]
        %v441 = vld [vmem:[%s312 + $0xf8] sm:$0xff]
        %v442 = vld [vmem:[%s355] sm:$0x3]
        %v444 = vlaneseq
        %v445 = vshrl.u32 %v444, 7
        %v446 = vsub.s32 0, %v445
        %v447 = vrot.slane %v442, %v446
        %v448 = vlaneseq
        %v449 = vshrl.u32 %v448, 7
        %v450 = vsub.s32 1, %v449
        %v451 = vrot.slane %v442, %v450
        %454 = vmatprep.subr.mxu0 %v441
        %455 = vmatpush1.msra.mxu0 %v440
        %456 = vmatprep.subr.mxu0 %v439
        %457 = vmatpush1.msra.mxu0 %v438
        %458 = vmatprep.subr.mxu0 %v437
        %459 = vmatpush1.msra.mxu0 %v436
        %460 = vmatprep.subr.mxu0 %v435
        %461 = vmatpush1.msra.mxu0 %v434
        %462 = vmatprep.subr.mxu0 %v433
        %463 = vmatpush1.msra.mxu0 %v432
        %464 = vmatprep.subr.mxu0 %v431
        %465 = vmatpush1.msra.mxu0 %v430
        %466 = vmatprep.subr.mxu0 %v429
        %467 = vmatpush1.msra.mxu0 %v428
        %468 = vmatprep.subr.mxu0 %v427
        %469 = vmatpush1.msra.mxu0 %v426
        %470 = vmatprep.subr.mxu0 %v425
        %471 = vmatpush1.msra.mxu0 %v424
        %472 = vmatprep.subr.mxu0 %v423
        %473 = vmatpush1.msra.mxu0 %v422
        %474 = vmatprep.subr.mxu0 %v421
        %475 = vmatpush1.msra.mxu0 %v420
        %476 = vmatprep.subr.mxu0 %v419
        %477 = vmatpush1.msra.mxu0 %v418
        %478 = vmatprep.subr.mxu0 %v417
        %479 = vmatpush1.msra.mxu0 %v416
        %480 = vmatprep.subr.mxu0 %v415
        %481 = vmatpush1.msra.mxu0 %v414
        %482 = vmatprep.subr.mxu0 %v413
        %483 = vmatpush1.msra.mxu0 %v412
        %484 = vmatprep.subr.mxu0 %v411
        %485 = vmatpush1.msra.mxu0 %v410
        %486 = vmatprep.subr.mxu0 0.0
        %487 = vmatpush2.msra.mxu0 0.0
        %488 = vmatprep.subr.mxu0 0.0
        %489 = vmatpush2.msra.mxu0 0.0
        %490 = vmatprep.subr.mxu0 0.0
        %491 = vmatpush2.msra.mxu0 0.0
        %492 = vmatprep.subr.mxu0 0.0
        %493 = vmatpush2.msra.mxu0 0.0
        %494 = vmatprep.subr.mxu0 0.0
        %495 = vmatpush2.msra.mxu0 0.0
        %496 = vmatprep.subr.mxu0 0.0
        %497 = vmatpush2.msra.mxu0 0.0
        %498 = vmatprep.subr.mxu0 0.0
        %499 = vmatpush2.msra.mxu0 0.0
        %500 = vmatprep.subr.mxu0 0.0
        %501 = vmatpush2.msra.mxu0 0.0
        %502 = vmatprep.subr.mxu0 0.0
        %503 = vmatpush2.msra.mxu0 0.0
        %504 = vmatprep.subr.mxu0 0.0
        %505 = vmatpush2.msra.mxu0 0.0
        %506 = vmatprep.subr.mxu0 0.0
        %507 = vmatpush2.msra.mxu0 0.0
        %508 = vmatprep.subr.mxu0 0.0
        %509 = vmatpush2.msra.mxu0 0.0
        %510 = vmatprep.subr.mxu0 0.0
        %511 = vmatpush2.msra.mxu0 0.0
        %512 = vmatprep.subr.mxu0 0.0
        %513 = vmatpush2.msra.mxu0 0.0
        %514 = vmatprep.subr.mxu0 0.0
        %515 = vmatpush2.msra.mxu0 0.0
        %516 = vmatprep.subr.mxu0 0.0
        %517 = vmatpush2.msra.mxu0 0.0
        %518 = vmatprep.mubr.f32.mxu0 0.0
        %519 = vmatmul.mubr.f32.gmra.mxu0 %v408
        %v520 = vpop.f32.mrf.mxu0
        %v521 = vadd.f32 %v447, %v520
        %v522 = vpop.f32.mrf.mxu0
        %v523 = vadd.f32 %v451, %v522
        %524 = vmatprep.mubr.f32.mxu0 0.0
        %525 = vmatmul.mubr.f32.gmra.mxu0 %v409
        %v526 = vpop.f32.mrf.mxu0
        %v527 = vadd.f32 %v447, %v526
        %v528 = vpop.f32.mrf.mxu0
        %v529 = vadd.f32 %v451, %v528
        %530 = vdwg.mxu0
        %v531 = vmul.f32 %v521, 0.5
        %v532 = vmul.f32 %v523, 0.5
        %v533 = vmul.f32 %v527, 0.5
        %v534 = vmul.f32 %v529, 0.5
        %v535 = vmul.f32 %v521, 0.044715
        %v536 = vmul.f32 %v523, 0.044715
        %v537 = vmul.f32 %v527, 0.044715
        %v538 = vmul.f32 %v529, 0.044715
        %v539 = vmul.f32 %v535, %v521
        %v540 = vmul.f32 %v536, %v523
        %v541 = vmul.f32 %v537, %v527
        %v542 = vmul.f32 %v538, %v529
        %v543 = vmul.f32 %v539, %v521
        %v544 = vmul.f32 %v540, %v523
        %v545 = vmul.f32 %v541, %v527
        %v546 = vmul.f32 %v542, %v529
        %v547 = vadd.f32 %v521, %v543
        %v548 = vadd.f32 %v523, %v544
        %v549 = vadd.f32 %v527, %v545
        %v550 = vadd.f32 %v529, %v546
        %v551 = vmul.f32 %v547, 0.7978846
        %v552 = vmul.f32 %v548, 0.7978846
        %v553 = vmul.f32 %v549, 0.7978846
        %v554 = vmul.f32 %v550, 0.7978846
        %v555 = vtanh.pop %v551
        %v556 = vtanh.pop %v552
        %v557 = vtanh.pop %v553
        %v558 = vtanh.pop %v554
        %v559 = vadd.f32 %v555, 1.0
        %v560 = vadd.f32 %v556, 1.0
        %v561 = vadd.f32 %v557, 1.0
        %v562 = vadd.f32 %v558, 1.0
        %v563 = vmul.f32 %v531, %v559
        %v564 = vmul.f32 %v532, %v560
        %v565 = vmul.f32 %v533, %v561
        %v566 = vmul.f32 %v534, %v562
        %567 = vst [vmem:[%s344] sm:$0xff] %v563
        %568 = vst [vmem:[%s344 + $0x8] sm:$0xff] %v564
        %569 = vst [vmem:[%s344 + $0x10] sm:$0xff] %v565
        %570 = vst [vmem:[%s344 + $0x18] sm:$0xff] %v566
        %s571 = sand.u32 %s158, 1
        %s572 = sand.u32 %s158, 1
        %s573 = smul.addr %s572, 32
        %s574 = scalar_lea.vmem [#allocation4], %s573
        // Predicated region
        $region68: #{gpt_forward.14} parent=58 // pred_check
          %p575 = pneg %p168
        $region69: #{gpt_forward.14} parent=58 // pred_check_branch
          %577 = sbr.rel (%p575) target = $region71
        $region70: #{gpt_forward.14} parent=58 // pred_region
          %s578 = smul.u32 2, %s20
          %s579 = smul.u32 2, %s21
          %s580 = smul.addr %s578, 4
          %s581 = sadd.s32 %s579, %s580
          %s582 = smul.addr %s581, 8
          %s583 = scalar_lea.vmem %s5, %s582
          // Predicated region
          $region72: #{gpt_forward.14} parent=70 // pred_check
            _
          $region73: #{gpt_forward.14} parent=70 // pred_check_branch
            %585 = sbr.rel (0) target = $region75
          $region74: #{gpt_forward.14} parent=70 // pred_region
            // Predicated region
            $region76: #{gpt_forward.14} parent=74 // pred_check
              _
            $region77: #{gpt_forward.14} parent=74 // pred_check_branch
              %587 = sbr.rel (0) target = $region79
            $region78: #{gpt_forward.14} parent=74 // pred_region
              loop: start=0, step=1, limit=1
              $region80: #{gpt_forward.14} parent=78 // loop_pre_header
                _
              $region81: #{gpt_forward.14} parent=78 // loop_header
                %s589 = sphi 0, %s593
                %p590 = scmp.ge.s32.totalorder %s589, 1
                %s594 = sphi %s574, %s574
                %s595 = sphi %s583, %s583
              $region82: #{gpt_forward.14} parent=78 // loop_header_branch
                %592 = sbr.rel (%p590) target = $region86
              $region83: #{gpt_forward.14} parent=78 // loop_body
                %v596 = vld [vmem:[%s594] sm:$0xff]
                %597 = vst [vmem:[%s595] sm:$0xff] %v596
                %v598 = vld [vmem:[%s594 + $0x8] sm:$0xff]
                %599 = vst [vmem:[%s595 + $0x8] sm:$0xff] %v598
                %v600 = vld [vmem:[%s594 + $0x10] sm:$0xff]
                %601 = vst [vmem:[%s595 + $0x20] sm:$0xff] %v600
                %v602 = vld [vmem:[%s594 + $0x18] sm:$0xff]
                %603 = vst [vmem:[%s595 + $0x28] sm:$0xff] %v602
              $region84: #{gpt_forward.14} parent=78 // loop_footer
                %s593 = sadd.s32 1, %s589
              $region85: #{gpt_forward.14} parent=78 // loop_footer_branch
                %588 = sbr.rel target = $region81
              $region86: #{gpt_forward.14} parent=78 // loop_exit
                _
            $region79: #{gpt_forward.14} parent=74 // pred_fallthru
              _
            // Predicated region
            $region87: #{gpt_forward.14} parent=74 // pred_check
              _
            $region88: #{gpt_forward.14} parent=74 // pred_check_branch
              %605 = sbr.rel target = $region90
            $region89: #{gpt_forward.14} parent=74 // pred_region
              _
            $region90: #{gpt_forward.14} parent=74 // pred_fallthru
              _
          $region75: #{gpt_forward.14} parent=70 // pred_fallthru
            _
          %606 = vnop
        $region71: #{gpt_forward.14} parent=58 // pred_fallthru
          _
      $region59: #{gpt_forward.14} parent=5 // pred_fallthru
        _
      %p607 = scmp.le.s32.totalorder 2, %s11
      // Predicated region
      $region91: #{gpt_forward.14} parent=5 // pred_check
        %p608 = pneg %p607
      $region92: #{gpt_forward.14} parent=5 // pred_check_branch
        %610 = sbr.rel (%p608) target = $region94
      $region93: #{gpt_forward.14} parent=5 // pred_region
        %s611 = ssub.s32 %s11, 2
        // Predicated region
        $region95: #{gpt_forward.14} parent=93 // pred_check
          %p612 = pneg %p174
        $region96: #{gpt_forward.14} parent=93 // pred_check_branch
          %614 = sbr.rel (%p612) target = $region98
        $region97: #{gpt_forward.14} parent=93 // pred_region
          %s615 = sand.u32 %s159, 1
          %s616 = sand.u32 %s159, 1
          %s617 = smul.addr %s616, 32
          %s618 = scalar_lea.vmem [#allocation4], %s617
        $region98: #{gpt_forward.14} parent=93 // pred_fallthru
          _
      $region94: #{gpt_forward.14} parent=5 // pred_fallthru
        _
    $region6: #{gpt_forward.14} parent=1 // loop_footer
      %s15 = sadd.s32 1, %s11
    $region7: #{gpt_forward.14} parent=1 // loop_footer_branch
      %10 = sbr.rel target = $region3
    $region8: #{gpt_forward.14} parent=1 // loop_exit
      _

// kernel: gpt_forward.12
$region0: #{gpt_forward.12}
  #allocation0 [shape = 'u32[]', space=smem, size = 0x4, offset = 0x4, fixed_abs, tag = 'smem constant byte address 0x4 - core index']
  #allocation1 [shape = 'u32[144,128]{1,0:T(1,128)}', space=vmem, size = 0x12000, scoped, tag = 'internal scratch']
  %s0 = inlined_call_operand.vmem [shape: f32[2,4,8,32], index: 0, kind: input, shape index: {}]
  %s1 = inlined_call_operand.vmem [shape: f32[2,4,8,32], index: 1, kind: input, shape index: {}]
  %s2 = inlined_call_operand.vmem [shape: f32[2,4,8,32], index: 2, kind: input, shape index: {}]
  %s3 = inlined_call_operand.vmem [shape: f32[2,4,8,32], index: 3, kind: output, shape index: {0}]
  %s4 = inlined_call_operand.hbm [shape: f32[2,4,8,8], index: 4, kind: output, shape index: {1}]
  %5 = xla_tuple %s3, %s4
  %s6 = sld [smem:[#allocation0]]
  $region53: #{gpt_forward.12} parent=0
    _
  %s8 = ssub.s32 1, %s6
  %s9 = scalar_select 0, %s8, %s6
  $region1: #{gpt_forward.12} parent=0
    #allocation2 [shape = 'u8[8192]{0}', space=vmem, size = 0x2000, scoped, tag = 'output window, operand 1']
    #allocation3 [shape = 's32[2]{0}', space=sflag, size = 0x8, scoped, tag = 'scoped memory for gpt_forward.12']
    %10 = vsyncpa [#allocation3], 0
    %s11 = scalar_lea.sflag [#allocation3], 1
    %12 = vsyncpa %s11, 0
    loop: start=0, step=1, limit=10
    $region2: #{gpt_forward.12} parent=1 // loop_pre_header
      _
    $region3: #{gpt_forward.12} parent=1 // loop_header
      %s14 = sphi 0, %s18
      %p15 = scmp.ge.s32.totalorder %s14, 10
      %s21 = sphi 0, %s40
      %s22 = sphi 0, %s36
      %s23 = sphi 0, %s32
      %s24 = sphi 0, %s21
      %s25 = sphi 0, %s22
      %s26 = sphi 0, %s23
      %s27 = sphi 0, %s24
      %s28 = sphi 0, %s25
      %s29 = sphi 0, %s26
      %s47 = sphi 0, %s49
      %s50 = sphi 0, %s47
      %s51 = sphi 0, %s50
      %s67 = sphi 0, %s51
      %s75 = sphi 0, %s77
      %s78 = sphi 0, %s75
      %s79 = sphi 0, %s78
      %s95 = sphi 0, %s79
      %s103 = sphi 0, %s105
      %s106 = sphi 0, %s103
      %s107 = sphi 0, %s106
      %s123 = sphi 0, %s107
      %s133 = sphi 0, %s135
      %s136 = sphi 0, %s133
      %s137 = sphi 0, %s136
      %s153 = sphi 0, %s137
      %s163 = sphi 0, %s165
      %s166 = sphi 0, %s163
      %s167 = sphi 0, %s166
      %s183 = sphi 0, %s167
    $region4: #{gpt_forward.12} parent=1 // loop_header_branch
      %17 = sbr.rel (%p15) target = $region8
    $region5: #{gpt_forward.12} parent=1 // loop_body
      %s19 = ssub.s32 %s14, 1
      %s20 = ssub.s32 %s14, 2
      %s30 = sadd.s32 1, %s23
      %p31 = scmp.ge.s32.totalorder %s30, 1
      %s32 = scalar_select %p31, 0, %s30
      %s33 = sadd.s32 1, %s22
      %s34 = scalar_select %p31, %s33, %s22
      %p35 = scmp.ge.s32.totalorder %s34, 4
      %s36 = scalar_select %p35, 0, %s34
      %s37 = sadd.s32 1, %s21
      %s38 = scalar_select %p35, %s37, %s21
      %p39 = scmp.ge.s32.totalorder %s38, 2
      %s40 = scalar_select %p39, 0, %s38
      %s41 = ssub.s32 %s21, %s40
      %s42 = ssub.s32 %s22, %s36
      %s43 = sor.u32 %s41, %s42
      %s44 = ssub.s32 %s23, %s32
      %s45 = sor.u32 %s43, %s44
      %p46 = scmp.eq.s32.totalorder %s45, 0
      %s48 = sadd.s32 %s47, 1
      %s49 = scalar_select %p46, %s47, %s48
      %p52 = pneg %p46
      %p53 = scmp.eq.s32.totalorder %s14, 7
      %p54 = por %p52, %p53
      %p55 = scmp.ne.s32.totalorder %s47, %s50
      %p56 = scmp.eq.s32.totalorder %s14, 0
      %p57 = por %p55, %p56
      %p58 = scmp.ne.s32.totalorder %s47, %s50
      %p59 = scmp.eq.s32.totalorder %s19, 7
      %p60 = por %p58, %p59
      %p61 = scmp.ne.s32.totalorder %s50, %s51
      %p62 = scmp.eq.s32.totalorder %s19, 0
      %p63 = por %p61, %p62
      %p64 = scmp.ne.s32.totalorder %s50, %s51
      %p65 = scmp.eq.s32.totalorder %s20, 7
      %p66 = por %p64, %p65
      %p68 = scmp.ne.s32.totalorder %s51, %s67
      %p69 = scmp.eq.s32.totalorder %s20, 0
      %p70 = por %p68, %p69
      %s71 = ssub.s32 %s21, %s40
      %s72 = ssub.s32 %s22, %s36
      %s73 = sor.u32 %s71, %s72
      %p74 = scmp.eq.s32.totalorder %s73, 0
      %s76 = sadd.s32 %s75, 1
      %s77 = scalar_select %p74, %s75, %s76
      %p80 = pneg %p74
      %p81 = scmp.eq.s32.totalorder %s14, 7
      %p82 = por %p80, %p81
      %p83 = scmp.ne.s32.totalorder %s75, %s78
      %p84 = scmp.eq.s32.totalorder %s14, 0
      %p85 = por %p83, %p84
      %p86 = scmp.ne.s32.totalorder %s75, %s78
      %p87 = scmp.eq.s32.totalorder %s19, 7
      %p88 = por %p86, %p87
      %p89 = scmp.ne.s32.totalorder %s78, %s79
      %p90 = scmp.eq.s32.totalorder %s19, 0
      %p91 = por %p89, %p90
      %p92 = scmp.ne.s32.totalorder %s78, %s79
      %p93 = scmp.eq.s32.totalorder %s20, 7
      %p94 = por %p92, %p93
      %p96 = scmp.ne.s32.totalorder %s79, %s95
      %p97 = scmp.eq.s32.totalorder %s20, 0
      %p98 = por %p96, %p97
      %s99 = ssub.s32 %s21, %s40
      %s100 = ssub.s32 %s22, %s36
      %s101 = sor.u32 %s99, %s100
      %p102 = scmp.eq.s32.totalorder %s101, 0
      %s104 = sadd.s32 %s103, 1
      %s105 = scalar_select %p102, %s103, %s104
      %p108 = pneg %p102
      %p109 = scmp.eq.s32.totalorder %s14, 7
      %p110 = por %p108, %p109
      %p111 = scmp.ne.s32.totalorder %s103, %s106
      %p112 = scmp.eq.s32.totalorder %s14, 0
      %p113 = por %p111, %p112
      %p114 = scmp.ne.s32.totalorder %s103, %s106
      %p115 = scmp.eq.s32.totalorder %s19, 7
      %p116 = por %p114, %p115
      %p117 = scmp.ne.s32.totalorder %s106, %s107
      %p118 = scmp.eq.s32.totalorder %s19, 0
      %p119 = por %p117, %p118
      %p120 = scmp.ne.s32.totalorder %s106, %s107
      %p121 = scmp.eq.s32.totalorder %s20, 7
      %p122 = por %p120, %p121
      %p124 = scmp.ne.s32.totalorder %s107, %s123
      %p125 = scmp.eq.s32.totalorder %s20, 0
      %p126 = por %p124, %p125
      %s127 = ssub.s32 %s21, %s40
      %s128 = ssub.s32 %s22, %s36
      %s129 = sor.u32 %s127, %s128
      %s130 = ssub.s32 %s23, %s32
      %s131 = sor.u32 %s129, %s130
      %p132 = scmp.eq.s32.totalorder %s131, 0
      %s134 = sadd.s32 %s133, 1
      %s135 = scalar_select %p132, %s133, %s134
      %p138 = pneg %p132
      %p139 = scmp.eq.s32.totalorder %s14, 7
      %p140 = por %p138, %p139
      %p141 = scmp.ne.s32.totalorder %s133, %s136
      %p142 = scmp.eq.s32.totalorder %s14, 0
      %p143 = por %p141, %p142
      %p144 = scmp.ne.s32.totalorder %s133, %s136
      %p145 = scmp.eq.s32.totalorder %s19, 7
      %p146 = por %p144, %p145
      %p147 = scmp.ne.s32.totalorder %s136, %s137
      %p148 = scmp.eq.s32.totalorder %s19, 0
      %p149 = por %p147, %p148
      %p150 = scmp.ne.s32.totalorder %s136, %s137
      %p151 = scmp.eq.s32.totalorder %s20, 7
      %p152 = por %p150, %p151
      %p154 = scmp.ne.s32.totalorder %s137, %s153
      %p155 = scmp.eq.s32.totalorder %s20, 0
      %p156 = por %p154, %p155
      %s157 = ssub.s32 %s21, %s40
      %s158 = ssub.s32 %s22, %s36
      %s159 = sor.u32 %s157, %s158
      %s160 = ssub.s32 %s23, %s32
      %s161 = sor.u32 %s159, %s160
      %p162 = scmp.eq.s32.totalorder %s161, 0
      %s164 = sadd.s32 %s163, 1
      %s165 = scalar_select %p162, %s163, %s164
      %p168 = pneg %p162
      %p169 = scmp.eq.s32.totalorder %s14, 7
      %p170 = por %p168, %p169
      %p171 = scmp.ne.s32.totalorder %s163, %s166
      %p172 = scmp.eq.s32.totalorder %s14, 0
      %p173 = por %p171, %p172
      %p174 = scmp.ne.s32.totalorder %s163, %s166
      %p175 = scmp.eq.s32.totalorder %s19, 7
      %p176 = por %p174, %p175
      %p177 = scmp.ne.s32.totalorder %s166, %s167
      %p178 = scmp.eq.s32.totalorder %s19, 0
      %p179 = por %p177, %p178
      %p180 = scmp.ne.s32.totalorder %s166, %s167
      %p181 = scmp.eq.s32.totalorder %s20, 7
      %p182 = por %p180, %p181
      %p184 = scmp.ne.s32.totalorder %s167, %s183
      %p185 = scmp.eq.s32.totalorder %s20, 0
      %p186 = por %p184, %p185
      %p187 = scmp.le.s32.totalorder 1, %s14
      %p188 = scmp.lt.s32.totalorder %s14, 9
      %p189 = pnand %p187, %p188
      %p190 = pneg %p189
      // Predicated region
      $region9: #{gpt_forward.12} parent=5 // pred_check
        _
      $region10: #{gpt_forward.12} parent=5 // pred_check_branch
        %192 = sbr.rel (%p189) target = $region12
      $region11: #{gpt_forward.12} parent=5 // pred_region
        %s193 = ssub.s32 %s14, 1
      $region12: #{gpt_forward.12} parent=5 // pred_fallthru
        _
      %p194 = scmp.lt.s32.totalorder %s14, 8
      // Predicated region
      $region13: #{gpt_forward.12} parent=5 // pred_check
        %p195 = pneg %p194
      $region14: #{gpt_forward.12} parent=5 // pred_check_branch
        %197 = sbr.rel (%p195) target = $region16
      $region15: #{gpt_forward.12} parent=5 // pred_region
        // Predicated region
        $region17: #{gpt_forward.12} parent=15 // pred_check
          %p198 = pneg %p57
        $region18: #{gpt_forward.12} parent=15 // pred_check_branch
          %200 = sbr.rel (%p198) target = $region20
        $region19: #{gpt_forward.12} parent=15 // pred_region
          %p201 = scmp.lt.s32.totalorder %s21, 1
          %s202 = scalar_select %p201, %s21, 1
          %p203 = scmp.lt.s32.totalorder %s22, 3
          %s204 = scalar_select %p203, %s22, 3
          %p205 = scmp.lt.s32.totalorder %s23, 0
          %s206 = scalar_select %p205, %s23, 0
          %s207 = sadd.s32 %s206, %s204
          %s208 = smul.addr %s202, 4
          %s209 = sadd.s32 %s207, %s208
          %s210 = smul.addr %s209, 8
          %s211 = scalar_lea.vmem %s0, %s210
        $region20: #{gpt_forward.12} parent=15 // pred_fallthru
          _
        // Predicated region
        $region21: #{gpt_forward.12} parent=15 // pred_check
          %p212 = pneg %p85
        $region22: #{gpt_forward.12} parent=15 // pred_check_branch
          %214 = sbr.rel (%p212) target = $region24
        $region23: #{gpt_forward.12} parent=15 // pred_region
          %p215 = scmp.lt.s32.totalorder %s21, 1
          %s216 = scalar_select %p215, %s21, 1
          %p217 = scmp.lt.s32.totalorder %s22, 3
          %s218 = scalar_select %p217, %s22, 3
          %s219 = smul.addr %s216, 4
          %s220 = sadd.s32 %s218, %s219
          %s221 = smul.addr %s220, 8
          %s222 = scalar_lea.vmem %s1, %s221
        $region24: #{gpt_forward.12} parent=15 // pred_fallthru
          _
        // Predicated region
        $region25: #{gpt_forward.12} parent=15 // pred_check
          %p223 = pneg %p113
        $region26: #{gpt_forward.12} parent=15 // pred_check_branch
          %225 = sbr.rel (%p223) target = $region28
        $region27: #{gpt_forward.12} parent=15 // pred_region
          %p226 = scmp.lt.s32.totalorder %s21, 1
          %s227 = scalar_select %p226, %s21, 1
          %p228 = scmp.lt.s32.totalorder %s22, 3
          %s229 = scalar_select %p228, %s22, 3
          %s230 = smul.addr %s227, 4
          %s231 = sadd.s32 %s229, %s230
          %s232 = smul.addr %s231, 8
          %s233 = scalar_lea.vmem %s2, %s232
        $region28: #{gpt_forward.12} parent=15 // pred_fallthru
          _
      $region16: #{gpt_forward.12} parent=5 // pred_fallthru
        _
      %p234 = scmp.le.s32.totalorder 1, %s14
      %p235 = scmp.lt.s32.totalorder %s14, 9
      %p236 = pnand %p234, %p235
      %p237 = pneg %p236
      // Predicated region
      $region29: #{gpt_forward.12} parent=5 // pred_check
        _
      $region30: #{gpt_forward.12} parent=5 // pred_check_branch
        %239 = sbr.rel (%p236) target = $region32
      $region31: #{gpt_forward.12} parent=5 // pred_region
        %s240 = ssub.s32 %s14, 1
        %p241 = scmp.lt.s32.totalorder %s24, 1
        %s242 = scalar_select %p241, %s24, 1
        %p243 = scmp.lt.s32.totalorder %s25, 3
        %s244 = scalar_select %p243, %s25, 3
        %p245 = scmp.lt.s32.totalorder %s26, 0
        %s246 = scalar_select %p245, %s26, 0
        %s247 = sadd.s32 %s246, %s244
        %s248 = smul.addr %s242, 4
        %s249 = sadd.s32 %s247, %s248
        %s250 = smul.addr %s249, 8
        %s251 = scalar_lea.vmem %s0, %s250
        %p252 = pneg %p63
        %p253 = pneg %p60
        %p254 = scmp.lt.s32.totalorder %s24, 1
        %s255 = scalar_select %p254, %s24, 1
        %p256 = scmp.lt.s32.totalorder %s25, 3
        %s257 = scalar_select %p256, %s25, 3
        %s258 = smul.addr %s255, 4
        %s259 = sadd.s32 %s257, %s258
        %s260 = smul.addr %s259, 8
        %s261 = scalar_lea.vmem %s1, %s260
        %p262 = pneg %p91
        %p263 = pneg %p88
        %p264 = scmp.lt.s32.totalorder %s24, 1
        %s265 = scalar_select %p264, %s24, 1
        %p266 = scmp.lt.s32.totalorder %s25, 3
        %s267 = scalar_select %p266, %s25, 3
        %s268 = smul.addr %s265, 4
        %s269 = sadd.s32 %s267, %s268
        %s270 = smul.addr %s269, 8
        %s271 = scalar_lea.vmem %s2, %s270
        %p272 = pneg %p119
        %p273 = pneg %p116
        %p274 = pneg %p149
        %p275 = pneg %p146
        %p276 = scmp.lt.s32.totalorder %s24, 1
        %s277 = scalar_select %p276, %s24, 1
        %p278 = scmp.lt.s32.totalorder %s25, 3
        %s279 = scalar_select %p278, %s25, 3
        %p280 = scmp.lt.s32.totalorder %s26, 0
        %s281 = scalar_select %p280, %s26, 0
        %s282 = sadd.s32 %s281, %s279
        %s283 = smul.addr %s277, 4
        %s284 = sadd.s32 %s282, %s283
        %s285 = smul.addr %s284, 8
        %s286 = scalar_lea.vmem %s3, %s285
        %p287 = pneg %p179
        %p288 = pneg %p176
        %s289 = sand.u32 %s166, 1
        %s290 = scalar_lea.sflag [#allocation3], %s289
        %s291 = sand.u32 %s166, 1
        %s292 = smul.addr %s291, 8
        %s293 = scalar_lea.vmem [#allocation2], %s292
        %p294 = scmp.lt.s32.totalorder %s24, 1
        %s295 = scalar_select %p294, %s24, 1
        %p296 = scmp.lt.s32.totalorder %s25, 3
        %s297 = scalar_select %p296, %s25, 3
        %p298 = scmp.lt.s32.totalorder %s26, 0
        %s299 = scalar_select %p298, %s26, 0
        %s300 = sadd.s32 %s299, %s297
        %s301 = smul.addr %s295, 4
        %s302 = sadd.s32 %s300, %s301
        %s303 = smul.addr %s302, 8
        %s304 = scalar_lea.vmem %s0, %s303
        %p305 = scmp.lt.s32.totalorder %s24, 1
        %s306 = scalar_select %p305, %s24, 1
        %p307 = scmp.lt.s32.totalorder %s25, 3
        %s308 = scalar_select %p307, %s25, 3
        %s309 = smul.addr %s306, 4
        %s310 = sadd.s32 %s308, %s309
        %s311 = smul.addr %s310, 8
        %s312 = scalar_lea.vmem %s1, %s311
        %p313 = scmp.lt.s32.totalorder %s24, 1
        %s314 = scalar_select %p313, %s24, 1
        %p315 = scmp.lt.s32.totalorder %s25, 3
        %s316 = scalar_select %p315, %s25, 3
        %s317 = smul.addr %s314, 4
        %s318 = sadd.s32 %s316, %s317
        %s319 = smul.addr %s318, 8
        %s320 = scalar_lea.vmem %s2, %s319
        %p321 = scmp.lt.s32.totalorder %s24, 1
        %s322 = scalar_select %p321, %s24, 1
        %p323 = scmp.lt.s32.totalorder %s25, 3
        %s324 = scalar_select %p323, %s25, 3
        %p325 = scmp.lt.s32.totalorder %s26, 0
        %s326 = scalar_select %p325, %s26, 0
        %s327 = sadd.s32 %s326, %s324
        %s328 = smul.addr %s322, 4
        %s329 = sadd.s32 %s327, %s328
        %s330 = smul.addr %s329, 8
        %s331 = scalar_lea.vmem %s3, %s330
        %v332 = vld [vmem:[%s304] sm:$0xff]
        %v333 = vld [vmem:[%s312] sm:$0xff]
        %v334 = vld [vmem:[%s320] sm:$0xff]
        %vm335 = vcmask 261120
        %v337 = vsel %vm335, %v332, 0
        %v340 = vsel %vm335, %v333, 0
        %342 = vmatprep.subr.mxu0 0.0
        %343 = vmatpush1.xpose.msra.mxu0 0.0
        %344 = vmatprep.subr.mxu0 0.0
        %345 = vmatpush1.xpose.msra.mxu0 0.0
        %346 = vmatprep.subr.mxu0 0.0
        %347 = vmatpush1.xpose.msra.mxu0 0.0
        %348 = vmatprep.subr.mxu0 0.0
        %349 = vmatpush1.xpose.msra.mxu0 0.0
        %350 = vmatprep.subr.mxu0 0.0
        %351 = vmatpush1.xpose.msra.mxu0 0.0
        %352 = vmatprep.subr.mxu0 0.0
        %353 = vmatpush1.xpose.msra.mxu0 0.0
        %354 = vmatprep.subr.mxu0 0.0
        %355 = vmatpush1.xpose.msra.mxu0 0.0
        %356 = vmatprep.subr.mxu0 0.0
        %357 = vmatpush1.xpose.msra.mxu0 0.0
        %358 = vmatprep.subr.mxu0 0.0
        %359 = vmatpush1.xpose.msra.mxu0 0.0
        %360 = vmatprep.subr.mxu0 0.0
        %361 = vmatpush1.xpose.msra.mxu0 0.0
        %362 = vmatprep.subr.mxu0 0.0
        %363 = vmatpush1.xpose.msra.mxu0 0.0
        %364 = vmatprep.subr.mxu0 0.0
        %365 = vmatpush1.xpose.msra.mxu0 0.0
        %366 = vmatprep.subr.mxu0 0.0
        %367 = vmatpush1.xpose.msra.mxu0 0.0
        %368 = vmatprep.subr.mxu0 0.0
        %369 = vmatpush1.xpose.msra.mxu0 0.0
        %370 = vmatprep.subr.mxu0 0.0
        %371 = vmatpush1.xpose.msra.mxu0 0.0
        %372 = vmatprep.subr.mxu0 0.0
        %373 = vmatpush1.xpose.msra.mxu0 %v340
        %374 = vmatprep.subr.mxu0 0.0
        %375 = vmatpush2.xpose.msra.mxu0 0.0
        %376 = vmatprep.subr.mxu0 0.0
        %377 = vmatpush2.xpose.msra.mxu0 0.0
        %378 = vmatprep.subr.mxu0 0.0
        %379 = vmatpush2.xpose.msra.mxu0 0.0
        %380 = vmatprep.subr.mxu0 0.0
        %381 = vmatpush2.xpose.msra.mxu0 0.0
        %382 = vmatprep.subr.mxu0 0.0
        %383 = vmatpush2.xpose.msra.mxu0 0.0
        %384 = vmatprep.subr.mxu0 0.0
        %385 = vmatpush2.xpose.msra.mxu0 0.0
        %386 = vmatprep.subr.mxu0 0.0
        %387 = vmatpush2.xpose.msra.mxu0 0.0
        %388 = vmatprep.subr.mxu0 0.0
        %389 = vmatpush2.xpose.msra.mxu0 0.0
        %390 = vmatprep.subr.mxu0 0.0
        %391 = vmatpush2.xpose.msra.mxu0 0.0
        %392 = vmatprep.subr.mxu0 0.0
        %393 = vmatpush2.xpose.msra.mxu0 0.0
        %394 = vmatprep.subr.mxu0 0.0
        %395 = vmatpush2.xpose.msra.mxu0 0.0
        %396 = vmatprep.subr.mxu0 0.0
        %397 = vmatpush2.xpose.msra.mxu0 0.0
        %398 = vmatprep.subr.mxu0 0.0
        %399 = vmatpush2.xpose.msra.mxu0 0.0
        %400 = vmatprep.subr.mxu0 0.0
        %401 = vmatpush2.xpose.msra.mxu0 0.0
        %402 = vmatprep.subr.mxu0 0.0
        %403 = vmatpush2.xpose.msra.mxu0 0.0
        %404 = vmatprep.subr.mxu0 0.0
        %405 = vmatpush2.xpose.msra.mxu0 0.0
        %406 = vmatprep.mubr.f32.mxu0 0.0
        %407 = vmatmul.mubr.f32.gmra.mxu0 %v337
        %v408 = vpop.f32.mrf.mxu0
        %v409 = vadd.f32 0.0, %v408
        %v410 = vpop.f32.mrf.mxu0
        %411 = vdwg.mxu0
        %v412 = vmul.f32 %v409, 0.17677669
        %s413 = smul.u32 %s26, 8
        %v414 = vlaneseq
        %v415 = vshrl.u32 %v414, 7
        %v416 = vstv %s413
        %v417 = vadd.s32 %v416, %v415
        %v418 = vlaneseq
        %v419 = vand.u32 %v418, 127
        %vm420 = vcmp.le.s32.totalorder %v419, %v417
        %v421 = vsel %vm420, %v412, -inf
        %vm422 = vcmask 64512
        %v423 = vsel %vm422, %v421, -inf
        %424 = vmax.xlane.f32.xlu0 %v423
        %v425 = vpop.xlane.xlu0 %424
        %v426 = vsub.f32 %v421, %v425
        %v427 = vmul.f32 %v426, 1.442695
        %v428 = vpow.pop %v427
        %v429 = vsel %vm422, %v428, 0.0
        %430 = vadd.xlane.f32.xlu0 %v429
        %v431 = vpop.xlane.xlu0 %430
        %v432 = vrcp.pop %v431
        %v433 = vmul.f32 %v428, %v432
        %v435 = vsel %vm422, %v433, 0
        %437 = vmatprep.subr.mxu0 0.0
        %438 = vmatpush1.msra.mxu0 0.0
        %439 = vmatprep.subr.mxu0 0.0
        %440 = vmatpush1.msra.mxu0 0.0
        %441 = vmatprep.subr.mxu0 0.0
        %442 = vmatpush1.msra.mxu0 0.0
        %443 = vmatprep.subr.mxu0 0.0
        %444 = vmatpush1.msra.mxu0 0.0
        %445 = vmatprep.subr.mxu0 0.0
        %446 = vmatpush1.msra.mxu0 0.0
        %447 = vmatprep.subr.mxu0 0.0
        %448 = vmatpush1.msra.mxu0 0.0
        %449 = vmatprep.subr.mxu0 0.0
        %450 = vmatpush1.msra.mxu0 0.0
        %451 = vmatprep.subr.mxu0 0.0
        %452 = vmatpush1.msra.mxu0 0.0
        %453 = vmatprep.subr.mxu0 0.0
        %454 = vmatpush1.msra.mxu0 0.0
        %455 = vmatprep.subr.mxu0 0.0
        %456 = vmatpush1.msra.mxu0 0.0
        %457 = vmatprep.subr.mxu0 0.0
        %458 = vmatpush1.msra.mxu0 0.0
        %459 = vmatprep.subr.mxu0 0.0
        %460 = vmatpush1.msra.mxu0 0.0
        %461 = vmatprep.subr.mxu0 0.0
        %462 = vmatpush1.msra.mxu0 0.0
        %463 = vmatprep.subr.mxu0 0.0
        %464 = vmatpush1.msra.mxu0 0.0
        %465 = vmatprep.subr.mxu0 0.0
        %466 = vmatpush1.msra.mxu0 0.0
        %467 = vmatprep.subr.mxu0 0.0
        %468 = vmatpush1.msra.mxu0 %v334
        %469 = vmatprep.subr.mxu0 0.0
        %470 = vmatpush2.msra.mxu0 0.0
        %471 = vmatprep.subr.mxu0 0.0
        %472 = vmatpush2.msra.mxu0 0.0
        %473 = vmatprep.subr.mxu0 0.0
        %474 = vmatpush2.msra.mxu0 0.0
        %475 = vmatprep.subr.mxu0 0.0
        %476 = vmatpush2.msra.mxu0 0.0
        %477 = vmatprep.subr.mxu0 0.0
        %478 = vmatpush2.msra.mxu0 0.0
        %479 = vmatprep.subr.mxu0 0.0
        %480 = vmatpush2.msra.mxu0 0.0
        %481 = vmatprep.subr.mxu0 0.0
        %482 = vmatpush2.msra.mxu0 0.0
        %483 = vmatprep.subr.mxu0 0.0
        %484 = vmatpush2.msra.mxu0 0.0
        %485 = vmatprep.subr.mxu0 0.0
        %486 = vmatpush2.msra.mxu0 0.0
        %487 = vmatprep.subr.mxu0 0.0
        %488 = vmatpush2.msra.mxu0 0.0
        %489 = vmatprep.subr.mxu0 0.0
        %490 = vmatpush2.msra.mxu0 0.0
        %491 = vmatprep.subr.mxu0 0.0
        %492 = vmatpush2.msra.mxu0 0.0
        %493 = vmatprep.subr.mxu0 0.0
        %494 = vmatpush2.msra.mxu0 0.0
        %495 = vmatprep.subr.mxu0 0.0
        %496 = vmatpush2.msra.mxu0 0.0
        %497 = vmatprep.subr.mxu0 0.0
        %498 = vmatpush2.msra.mxu0 0.0
        %499 = vmatprep.subr.mxu0 0.0
        %500 = vmatpush2.msra.mxu0 0.0
        %501 = vmatprep.mubr.f32.mxu0 0.0
        %502 = vmatmul.mubr.f32.gmra.mxu0 %v435
        %v503 = vpop.f32.mrf.mxu0
        %v504 = vadd.f32 0.0, %v503
        %v505 = vpop.f32.mrf.mxu0
        %506 = vdwg.mxu0
        %507 = vst.msk [vmem:[%s331] sm:$0xff] %vm335, %v504
        %508 = vst.msk [vmem:[%s293] sm:$0xff] %vm422, %v433
        %p509 = scmp.lt.s32.totalorder %s24, 1
        %s510 = scalar_select %p509, %s24, 1
        %p511 = scmp.lt.s32.totalorder %s25, 3
        %s512 = scalar_select %p511, %s25, 3
        %p513 = scmp.lt.s32.totalorder %s26, 0
        %s514 = scalar_select %p513, %s26, 0
        %s515 = sadd.s32 %s514, %s512
        %s516 = smul.addr %s510, 4
        %s517 = sadd.s32 %s515, %s516
        %s518 = smul.addr %s517, 8
        %s519 = scalar_lea.vmem %s3, %s518
        %s520 = sand.u32 %s166, 1
        %s521 = scalar_lea.sflag [#allocation3], %s520
        %s522 = sand.u32 %s166, 1
        %s523 = smul.addr %s522, 8
        %s524 = scalar_lea.vmem [#allocation2], %s523
        // Predicated region
        $region33: #{gpt_forward.12} parent=31 // pred_check
          %p525 = pneg %p146
        $region34: #{gpt_forward.12} parent=31 // pred_check_branch
          %527 = sbr.rel (%p525) target = $region36
        $region35: #{gpt_forward.12} parent=31 // pred_region
          _
        $region36: #{gpt_forward.12} parent=31 // pred_fallthru
          _
        // Predicated region
        $region37: #{gpt_forward.12} parent=31 // pred_check
          %p528 = pneg %p176
        $region38: #{gpt_forward.12} parent=31 // pred_check_branch
          %530 = sbr.rel (%p528) target = $region40
        $region39: #{gpt_forward.12} parent=31 // pred_region
          %s532 = ssub.s32 128, 128
          %533 = vsyncadd %s521, %s532
          %s534 = sadd.s32 %s26, %s25
          %s535 = smul.addr %s24, 4
          %s536 = sadd.s32 %s534, %s535
          %s537 = smul.addr %s536, 128
          %s538 = scalar_lea.hbm %s4, %s537
          %s540 = sshll.u32 %s524, 4
          %s541 = int_to_ptr.vmem [resolvable:$true] %s540
          %543 = dma.vmem_to_hbm [thread:$0]  %s541, 128, %s538, %s521
        $region40: #{gpt_forward.12} parent=31 // pred_fallthru
          _
      $region32: #{gpt_forward.12} parent=5 // pred_fallthru
        _
      %p544 = scmp.le.s32.totalorder 2, %s14
      // Predicated region
      $region41: #{gpt_forward.12} parent=5 // pred_check
        %p545 = pneg %p544
      $region42: #{gpt_forward.12} parent=5 // pred_check_branch
        %547 = sbr.rel (%p545) target = $region44
      $region43: #{gpt_forward.12} parent=5 // pred_region
        %s548 = ssub.s32 %s14, 2
        // Predicated region
        $region45: #{gpt_forward.12} parent=43 // pred_check
          %p549 = pneg %p152
        $region46: #{gpt_forward.12} parent=43 // pred_check_branch
          %551 = sbr.rel (%p549) target = $region48
        $region47: #{gpt_forward.12} parent=43 // pred_region
          %p552 = scmp.lt.s32.totalorder %s27, 1
          %s553 = scalar_select %p552, %s27, 1
          %p554 = scmp.lt.s32.totalorder %s28, 3
          %s555 = scalar_select %p554, %s28, 3
          %p556 = scmp.lt.s32.totalorder %s29, 0
          %s557 = scalar_select %p556, %s29, 0
          %s558 = sadd.s32 %s557, %s555
          %s559 = smul.addr %s553, 4
          %s560 = sadd.s32 %s558, %s559
          %s561 = smul.addr %s560, 8
          %s562 = scalar_lea.vmem %s3, %s561
        $region48: #{gpt_forward.12} parent=43 // pred_fallthru
          _
        // Predicated region
        $region49: #{gpt_forward.12} parent=43 // pred_check
          %p563 = pneg %p182
        $region50: #{gpt_forward.12} parent=43 // pred_check_branch
          %565 = sbr.rel (%p563) target = $region52
        $region51: #{gpt_forward.12} parent=43 // pred_region
          %s566 = sand.u32 %s167, 1
          %s567 = scalar_lea.sflag [#allocation3], %s566
          %s568 = sand.u32 %s167, 1
          %s569 = smul.addr %s568, 8
          %s570 = scalar_lea.vmem [#allocation2], %s569
          %571 = dma.done %s567, 128
        $region52: #{gpt_forward.12} parent=43 // pred_fallthru
          _
      $region44: #{gpt_forward.12} parent=5 // pred_fallthru
        _
    $region6: #{gpt_forward.12} parent=1 // loop_footer
      %s18 = sadd.s32 1, %s14
    $region7: #{gpt_forward.12} parent=1 // loop_footer_branch
      %13 = sbr.rel target = $region3
    $region8: #{gpt_forward.12} parent=1 // loop_exit
      _
    %572 = vsyncpa [#allocation3], 1
    %s573 = scalar_lea.sflag [#allocation3], 1
    %574 = vsyncpa %s573, 1

// kernel: gpt_forward.13
$region0: #{gpt_forward.13}
  #allocation0 [shape = 'u32[]', space=smem, size = 0x4, offset = 0x4, fixed_abs, tag = 'smem constant byte address 0x4 - core index']
  #allocation1 [shape = 'u32[144,128]{1,0:T(1,128)}', space=vmem, size = 0x12000, scoped, tag = 'internal scratch']
  #allocation2 [shape = 'f32[16,128]{1,0:T(8,128)}', space=vmem, size = 0x2000, scoped, tag = 'scratch operand']
  %s0 = inlined_call_operand.vmem [shape: f32[16,128], index: 0, kind: input, shape index: {}]
  %s1 = inlined_call_operand.vmem [shape: f32[128,128], index: 1, kind: input, shape index: {}]
  %s2 = inlined_call_operand.vmem [shape: f32[1,128], index: 2, kind: input, shape index: {}]
  %s3 = inlined_call_operand.vmem [shape: f32[16,128], index: 3, kind: input, shape index: {}]
  %s4 = inlined_call_operand.vmem [shape: f32[16,128], index: 4, kind: output, shape index: {}]
  %s5 = sld [smem:[#allocation0]]
  $region34: #{gpt_forward.13} parent=0
    _
  %s7 = ssub.s32 1, %s5
  %s8 = scalar_select 0, %s7, %s5
  // Predicated region
  $region2: #{gpt_forward.13} parent=0 // pred_check
    _
  $region3: #{gpt_forward.13} parent=0 // pred_check_branch
    %10 = sbr.rel (0) target = $region5
  $region4: #{gpt_forward.13} parent=0 // pred_region
    _
  $region5: #{gpt_forward.13} parent=0 // pred_fallthru
    _
  // Predicated region
  $region6: #{gpt_forward.13} parent=0 // pred_check
    _
  $region7: #{gpt_forward.13} parent=0 // pred_check_branch
    %12 = sbr.rel (0) target = $region9
  $region8: #{gpt_forward.13} parent=0 // pred_region
    _
  $region9: #{gpt_forward.13} parent=0 // pred_fallthru
    _
  // Predicated region
  $region10: #{gpt_forward.13} parent=0 // pred_check
    _
  $region11: #{gpt_forward.13} parent=0 // pred_check_branch
    %14 = sbr.rel (0) target = $region13
  $region12: #{gpt_forward.13} parent=0 // pred_region
    _
  $region13: #{gpt_forward.13} parent=0 // pred_fallthru
    _
  // Predicated region
  $region14: #{gpt_forward.13} parent=0 // pred_check
    _
  $region15: #{gpt_forward.13} parent=0 // pred_check_branch
    %16 = sbr.rel (0) target = $region17
  $region16: #{gpt_forward.13} parent=0 // pred_region
    _
  $region17: #{gpt_forward.13} parent=0 // pred_fallthru
    _
  %p17 = scmp.eq.s32.totalorder 0, 0
  // Predicated region
  $region18: #{gpt_forward.13} parent=0 // pred_check
    %p18 = pneg %p17
  $region19: #{gpt_forward.13} parent=0 // pred_check_branch
    %20 = sbr.rel (%p18) target = $region21
  $region20: #{gpt_forward.13} parent=0 // pred_region
    %21 = vst [vmem:[#allocation2] sm:$0xff] 0.0
    %22 = vst [vmem:[#allocation2 + $0x8] sm:$0xff] 0.0
  $region21: #{gpt_forward.13} parent=0 // pred_fallthru
    _
  %v23 = vld [vmem:[#allocation2] sm:$0xff]
  %v24 = vld [vmem:[#allocation2 + $0x8] sm:$0xff]
  %v25 = vld [vmem:[%s0] sm:$0xff]
  %v26 = vld [vmem:[%s0 + $0x8] sm:$0xff]
  %v27 = vld [vmem:[%s1] sm:$0xff]
  %v28 = vld [vmem:[%s1 + $0x8] sm:$0xff]
  %v29 = vld [vmem:[%s1 + $0x10] sm:$0xff]
  %v30 = vld [vmem:[%s1 + $0x18] sm:$0xff]
  %v31 = vld [vmem:[%s1 + $0x20] sm:$0xff]
  %v32 = vld [vmem:[%s1 + $0x28] sm:$0xff]
  %v33 = vld [vmem:[%s1 + $0x30] sm:$0xff]
  %v34 = vld [vmem:[%s1 + $0x38] sm:$0xff]
  %v35 = vld [vmem:[%s1 + $0x40] sm:$0xff]
  %v36 = vld [vmem:[%s1 + $0x48] sm:$0xff]
  %v37 = vld [vmem:[%s1 + $0x50] sm:$0xff]
  %v38 = vld [vmem:[%s1 + $0x58] sm:$0xff]
  %v39 = vld [vmem:[%s1 + $0x60] sm:$0xff]
  %v40 = vld [vmem:[%s1 + $0x68] sm:$0xff]
  %v41 = vld [vmem:[%s1 + $0x70] sm:$0xff]
  %v42 = vld [vmem:[%s1 + $0x78] sm:$0xff]
  %43 = vmatprep.subr.mxu0 0.0
  %44 = vmatpush1.msra.mxu0 %v42
  %45 = vmatprep.subr.mxu0 0.0
  %46 = vmatpush1.msra.mxu0 %v41
  %47 = vmatprep.subr.mxu0 0.0
  %48 = vmatpush1.msra.mxu0 %v40
  %49 = vmatprep.subr.mxu0 0.0
  %50 = vmatpush1.msra.mxu0 %v39
  %51 = vmatprep.subr.mxu0 0.0
  %52 = vmatpush1.msra.mxu0 %v38
  %53 = vmatprep.subr.mxu0 0.0
  %54 = vmatpush1.msra.mxu0 %v37
  %55 = vmatprep.subr.mxu0 0.0
  %56 = vmatpush1.msra.mxu0 %v36
  %57 = vmatprep.subr.mxu0 0.0
  %58 = vmatpush1.msra.mxu0 %v35
  %59 = vmatprep.subr.mxu0 0.0
  %60 = vmatpush1.msra.mxu0 %v34
  %61 = vmatprep.subr.mxu0 0.0
  %62 = vmatpush1.msra.mxu0 %v33
  %63 = vmatprep.subr.mxu0 0.0
  %64 = vmatpush1.msra.mxu0 %v32
  %65 = vmatprep.subr.mxu0 0.0
  %66 = vmatpush1.msra.mxu0 %v31
  %67 = vmatprep.subr.mxu0 0.0
  %68 = vmatpush1.msra.mxu0 %v30
  %69 = vmatprep.subr.mxu0 0.0
  %70 = vmatpush1.msra.mxu0 %v29
  %71 = vmatprep.subr.mxu0 0.0
  %72 = vmatpush1.msra.mxu0 %v28
  %73 = vmatprep.subr.mxu0 0.0
  %74 = vmatpush1.msra.mxu0 %v27
  %75 = vmatprep.subr.mxu0 0.0
  %76 = vmatpush2.msra.mxu0 0.0
  %77 = vmatprep.subr.mxu0 0.0
  %78 = vmatpush2.msra.mxu0 0.0
  %79 = vmatprep.subr.mxu0 0.0
  %80 = vmatpush2.msra.mxu0 0.0
  %81 = vmatprep.subr.mxu0 0.0
  %82 = vmatpush2.msra.mxu0 0.0
  %83 = vmatprep.subr.mxu0 0.0
  %84 = vmatpush2.msra.mxu0 0.0
  %85 = vmatprep.subr.mxu0 0.0
  %86 = vmatpush2.msra.mxu0 0.0
  %87 = vmatprep.subr.mxu0 0.0
  %88 = vmatpush2.msra.mxu0 0.0
  %89 = vmatprep.subr.mxu0 0.0
  %90 = vmatpush2.msra.mxu0 0.0
  %91 = vmatprep.subr.mxu0 0.0
  %92 = vmatpush2.msra.mxu0 0.0
  %93 = vmatprep.subr.mxu0 0.0
  %94 = vmatpush2.msra.mxu0 0.0
  %95 = vmatprep.subr.mxu0 0.0
  %96 = vmatpush2.msra.mxu0 0.0
  %97 = vmatprep.subr.mxu0 0.0
  %98 = vmatpush2.msra.mxu0 0.0
  %99 = vmatprep.subr.mxu0 0.0
  %100 = vmatpush2.msra.mxu0 0.0
  %101 = vmatprep.subr.mxu0 0.0
  %102 = vmatpush2.msra.mxu0 0.0
  %103 = vmatprep.subr.mxu0 0.0
  %104 = vmatpush2.msra.mxu0 0.0
  %105 = vmatprep.subr.mxu0 0.0
  %106 = vmatpush2.msra.mxu0 0.0
  %107 = vmatprep.mubr.f32.mxu0 0.0
  %108 = vmatmul.mubr.f32.gmra.mxu0 %v25
  %v109 = vpop.f32.mrf.mxu0
  %v110 = vadd.f32 0.0, %v109
  %v111 = vpop.f32.mrf.mxu0
  %112 = vmatprep.mubr.f32.mxu0 0.0
  %113 = vmatmul.mubr.f32.gmra.mxu0 %v26
  %v114 = vpop.f32.mrf.mxu0
  %v115 = vadd.f32 0.0, %v114
  %v116 = vpop.f32.mrf.mxu0
  %117 = vdwg.mxu0
  %v118 = vadd.f32 %v23, %v110
  %v119 = vadd.f32 %v24, %v115
  %120 = vst [vmem:[#allocation2] sm:$0xff] %v118
  %121 = vst [vmem:[#allocation2 + $0x8] sm:$0xff] %v119
  // Predicated region
  $region22: #{gpt_forward.13} parent=0 // pred_check
    %p122 = pneg %p17
  $region23: #{gpt_forward.13} parent=0 // pred_check_branch
    %124 = sbr.rel (%p122) target = $region25
  $region24: #{gpt_forward.13} parent=0 // pred_region
    %v125 = vld [vmem:[#allocation2] sm:$0xff]
    %v126 = vld [vmem:[#allocation2 + $0x8] sm:$0xff]
    %v127 = vld [vmem:[%s2] sm:$0x1]
    %v129 = vlaneseq
    %v130 = vshrl.u32 %v129, 7
    %v131 = vsub.s32 0, %v130
    %v132 = vrot.slane %v127, %v131
    %v134 = vadd.f32 %v125, %v132
    %v135 = vadd.f32 %v126, %v132
    %v136 = vld [vmem:[%s3] sm:$0xff]
    %v137 = vld [vmem:[%s3 + $0x8] sm:$0xff]
    %v138 = vadd.f32 %v134, %v136
    %v139 = vadd.f32 %v135, %v137
    %140 = vst [vmem:[%s4] sm:$0xff] %v138
    %141 = vst [vmem:[%s4 + $0x8] sm:$0xff] %v139
  $region25: #{gpt_forward.13} parent=0 // pred_fallthru
    _
  // Predicated region
  $region26: #{gpt_forward.13} parent=0 // pred_check
    _
  $region27: #{gpt_forward.13} parent=0 // pred_check_branch
    %143 = sbr.rel (0) target = $region29
  $region28: #{gpt_forward.13} parent=0 // pred_region
    _
  $region29: #{gpt_forward.13} parent=0 // pred_fallthru
    _
  // Predicated region
  $region30: #{gpt_forward.13} parent=0 // pred_check
    _
  $region31: #{gpt_forward.13} parent=0 // pred_check_branch
    %145 = sbr.rel (0) target = $region33
  $region32: #{gpt_forward.13} parent=0 // pred_region
    _
  $region33: #{gpt_forward.13} parent=0 // pred_fallthru
    _

// kernel: gpt_forward.11
$region0: #{gpt_forward.11}
  #allocation0 [shape = 'u32[]', space=smem, size = 0x4, offset = 0x4, fixed_abs, tag = 'smem constant byte address 0x4 - core index']
  #allocation1 [shape = 'u32[144,128]{1,0:T(1,128)}', space=vmem, size = 0x12000, scoped, tag = 'internal scratch']
  #allocation2 [shape = 'f32[16,128]{1,0:T(8,128)}', space=vmem, size = 0x2000, scoped, tag = 'scratch operand']
  %s0 = inlined_call_operand.vmem [shape: f32[16,128], index: 0, kind: input, shape index: {}]
  %s1 = inlined_call_operand.vmem [shape: f32[1,128], index: 1, kind: input, shape index: {}]
  %s2 = inlined_call_operand.vmem [shape: f32[1,128], index: 2, kind: input, shape index: {}]
  %s3 = inlined_call_operand.hbm [shape: f32[128,384], index: 3, kind: input, shape index: {}]
  %s4 = inlined_call_operand.vmem [shape: f32[1,384], index: 4, kind: input, shape index: {}]
  %s5 = inlined_call_operand.vmem [shape: f32[16,384], index: 5, kind: output, shape index: {}]
  %s6 = sld [smem:[#allocation0]]
  $region95: #{gpt_forward.11} parent=0
    _
  %s8 = ssub.s32 1, %s6
  %s9 = scalar_select 0, %s8, %s6
  $region1: #{gpt_forward.11} parent=0
    #allocation3 [shape = 'u8[131072]{0}', space=vmem, size = 0x20000, scoped, tag = 'input window, operand 3']
    #allocation4 [shape = 's32[2]{0}', space=sflag, size = 0x8, scoped, tag = 'scoped memory for gpt_forward.11']
    #allocation5 [shape = 'u8[16384]{0}', space=vmem, size = 0x4000, scoped, tag = 'output window, operand 0']
    %10 = vsyncpa [#allocation4], 0
    %s11 = scalar_lea.sflag [#allocation4], 1
    %12 = vsyncpa %s11, 0
    loop: start=0, step=1, limit=5
    $region2: #{gpt_forward.11} parent=1 // loop_pre_header
      _
    $region3: #{gpt_forward.11} parent=1 // loop_header
      %s14 = sphi 0, %s18
      %p15 = scmp.ge.s32.totalorder %s14, 5
      %s21 = sphi 0, %s33
      %s22 = sphi 0, %s29
      %s23 = sphi 0, %s21
      %s24 = sphi 0, %s22
      %s25 = sphi 0, %s23
      %s26 = sphi 0, %s24
      %s36 = sphi 0, %s38
      %s39 = sphi 0, %s36
      %s40 = sphi 0, %s39
      %s56 = sphi 0, %s40
      %s60 = sphi 0, %s60
      %s62 = sphi 0, %s60
      %s63 = sphi 0, %s62
      %s77 = sphi 0, %s63
      %s81 = sphi 0, %s81
      %s83 = sphi 0, %s81
      %s84 = sphi 0, %s83
      %s98 = sphi 0, %s84
      %s104 = sphi 0, %s106
      %s107 = sphi 0, %s104
      %s108 = sphi 0, %s107
      %s124 = sphi 0, %s108
      %s130 = sphi 0, %s132
      %s133 = sphi 0, %s130
      %s134 = sphi 0, %s133
      %s150 = sphi 0, %s134
      %s158 = sphi 0, %s160
      %s161 = sphi 0, %s158
      %s162 = sphi 0, %s161
      %s178 = sphi 0, %s162
    $region4: #{gpt_forward.11} parent=1 // loop_header_branch
      %17 = sbr.rel (%p15) target = $region8
    $region5: #{gpt_forward.11} parent=1 // loop_body
      %s19 = ssub.s32 %s14, 1
      %s20 = ssub.s32 %s14, 2
      %s27 = sadd.s32 1, %s22
      %p28 = scmp.ge.s32.totalorder %s27, 3
      %s29 = scalar_select %p28, 0, %s27
      %s30 = sadd.s32 1, %s21
      %s31 = scalar_select %p28, %s30, %s21
      %p32 = scmp.ge.s32.totalorder %s31, 1
      %s33 = scalar_select %p32, 0, %s31
      %s34 = ssub.s32 %s21, %s33
      %p35 = scmp.eq.s32.totalorder %s34, 0
      %s37 = sadd.s32 %s36, 1
      %s38 = scalar_select %p35, %s36, %s37
      %p41 = pneg %p35
      %p42 = scmp.eq.s32.totalorder %s14, 2
      %p43 = por %p41, %p42
      %p44 = scmp.ne.s32.totalorder %s36, %s39
      %p45 = scmp.eq.s32.totalorder %s14, 0
      %p46 = por %p44, %p45
      %p47 = scmp.ne.s32.totalorder %s36, %s39
      %p48 = scmp.eq.s32.totalorder %s19, 2
      %p49 = por %p47, %p48
      %p50 = scmp.ne.s32.totalorder %s39, %s40
      %p51 = scmp.eq.s32.totalorder %s19, 0
      %p52 = por %p50, %p51
      %p53 = scmp.ne.s32.totalorder %s39, %s40
      %p54 = scmp.eq.s32.totalorder %s20, 2
      %p55 = por %p53, %p54
      %p57 = scmp.ne.s32.totalorder %s40, %s56
      %p58 = scmp.eq.s32.totalorder %s20, 0
      %p59 = por %p57, %p58
      %s61 = sadd.s32 %s60, 1
      %p64 = scmp.eq.s32.totalorder %s14, 2
      %p65 = scmp.ne.s32.totalorder %s60, %s62
      %p66 = scmp.eq.s32.totalorder %s14, 0
      %p67 = por %p65, %p66
      %p68 = scmp.ne.s32.totalorder %s60, %s62
      %p69 = scmp.eq.s32.totalorder %s19, 2
      %p70 = por %p68, %p69
      %p71 = scmp.ne.s32.totalorder %s62, %s63
      %p72 = scmp.eq.s32.totalorder %s19, 0
      %p73 = por %p71, %p72
      %p74 = scmp.ne.s32.totalorder %s62, %s63
      %p75 = scmp.eq.s32.totalorder %s20, 2
      %p76 = por %p74, %p75
      %p78 = scmp.ne.s32.totalorder %s63, %s77
      %p79 = scmp.eq.s32.totalorder %s20, 0
      %p80 = por %p78, %p79
      %s82 = sadd.s32 %s81, 1
      %p85 = scmp.eq.s32.totalorder %s14, 2
      %p86 = scmp.ne.s32.totalorder %s81, %s83
      %p87 = scmp.eq.s32.totalorder %s14, 0
      %p88 = por %p86, %p87
      %p89 = scmp.ne.s32.totalorder %s81, %s83
      %p90 = scmp.eq.s32.totalorder %s19, 2
      %p91 = por %p89, %p90
      %p92 = scmp.ne.s32.totalorder %s83, %s84
      %p93 = scmp.eq.s32.totalorder %s19, 0
      %p94 = por %p92, %p93
      %p95 = scmp.ne.s32.totalorder %s83, %s84
      %p96 = scmp.eq.s32.totalorder %s20, 2
      %p97 = por %p95, %p96
      %p99 = scmp.ne.s32.totalorder %s84, %s98
      %p100 = scmp.eq.s32.totalorder %s20, 0
      %p101 = por %p99, %p100
      %s102 = ssub.s32 %s22, %s29
      %p103 = scmp.eq.s32.totalorder %s102, 0
      %s105 = sadd.s32 %s104, 1
      %s106 = scalar_select %p103, %s104, %s105
      %p109 = pneg %p103
      %p110 = scmp.eq.s32.totalorder %s14, 2
      %p111 = por %p109, %p110
      %p112 = scmp.ne.s32.totalorder %s104, %s107
      %p113 = scmp.eq.s32.totalorder %s14, 0
      %p114 = por %p112, %p113
      %p115 = scmp.ne.s32.totalorder %s104, %s107
      %p116 = scmp.eq.s32.totalorder %s19, 2
      %p117 = por %p115, %p116
      %p118 = scmp.ne.s32.totalorder %s107, %s108
      %p119 = scmp.eq.s32.totalorder %s19, 0
      %p120 = por %p118, %p119
      %p121 = scmp.ne.s32.totalorder %s107, %s108
      %p122 = scmp.eq.s32.totalorder %s20, 2
      %p123 = por %p121, %p122
      %p125 = scmp.ne.s32.totalorder %s108, %s124
      %p126 = scmp.eq.s32.totalorder %s20, 0
      %p127 = por %p125, %p126
      %s128 = ssub.s32 %s22, %s29
      %p129 = scmp.eq.s32.totalorder %s128, 0
      %s131 = sadd.s32 %s130, 1
      %s132 = scalar_select %p129, %s130, %s131
      %p135 = pneg %p129
      %p136 = scmp.eq.s32.totalorder %s14, 2
      %p137 = por %p135, %p136
      %p138 = scmp.ne.s32.totalorder %s130, %s133
      %p139 = scmp.eq.s32.totalorder %s14, 0
      %p140 = por %p138, %p139
      %p141 = scmp.ne.s32.totalorder %s130, %s133
      %p142 = scmp.eq.s32.totalorder %s19, 2
      %p143 = por %p141, %p142
      %p144 = scmp.ne.s32.totalorder %s133, %s134
      %p145 = scmp.eq.s32.totalorder %s19, 0
      %p146 = por %p144, %p145
      %p147 = scmp.ne.s32.totalorder %s133, %s134
      %p148 = scmp.eq.s32.totalorder %s20, 2
      %p149 = por %p147, %p148
      %p151 = scmp.ne.s32.totalorder %s134, %s150
      %p152 = scmp.eq.s32.totalorder %s20, 0
      %p153 = por %p151, %p152
      %s154 = ssub.s32 %s21, %s33
      %s155 = ssub.s32 %s22, %s29
      %s156 = sor.u32 %s154, %s155
      %p157 = scmp.eq.s32.totalorder %s156, 0
      %s159 = sadd.s32 %s158, 1
      %s160 = scalar_select %p157, %s158, %s159
      %p163 = pneg %p157
      %p164 = scmp.eq.s32.totalorder %s14, 2
      %p165 = por %p163, %p164
      %p166 = scmp.ne.s32.totalorder %s158, %s161
      %p167 = scmp.eq.s32.totalorder %s14, 0
      %p168 = por %p166, %p167
      %p169 = scmp.ne.s32.totalorder %s158, %s161
      %p170 = scmp.eq.s32.totalorder %s19, 2
      %p171 = por %p169, %p170
      %p172 = scmp.ne.s32.totalorder %s161, %s162
      %p173 = scmp.eq.s32.totalorder %s19, 0
      %p174 = por %p172, %p173
      %p175 = scmp.ne.s32.totalorder %s161, %s162
      %p176 = scmp.eq.s32.totalorder %s20, 2
      %p177 = por %p175, %p176
      %p179 = scmp.ne.s32.totalorder %s162, %s178
      %p180 = scmp.eq.s32.totalorder %s20, 0
      %p181 = por %p179, %p180
      %p182 = scmp.le.s32.totalorder 1, %s14
      %p183 = scmp.lt.s32.totalorder %s14, 4
      %p184 = pnand %p182, %p183
      %p185 = pneg %p184
      // Predicated region
      $region9: #{gpt_forward.11} parent=5 // pred_check
        _
      $region10: #{gpt_forward.11} parent=5 // pred_check_branch
        %187 = sbr.rel (%p184) target = $region12
      $region11: #{gpt_forward.11} parent=5 // pred_region
        %s188 = ssub.s32 %s14, 1
        // Predicated region
        $region13: #{gpt_forward.11} parent=11 // pred_check
          %p189 = pneg %p52
        $region14: #{gpt_forward.11} parent=11 // pred_check_branch
          %191 = sbr.rel (%p189) target = $region16
        $region15: #{gpt_forward.11} parent=11 // pred_region
          %s192 = smul.u32 2, %s23
          %p193 = scmp.lt.s32.totalorder %s192, 1
          %s194 = scalar_select %p193, %s192, 1
          %s195 = smul.addr %s194, 8
          %s196 = scalar_lea.vmem %s0, %s195
          %s197 = smul.u32 2, %s23
        $region16: #{gpt_forward.11} parent=11 // pred_fallthru
          _
        // Predicated region
        $region17: #{gpt_forward.11} parent=11 // pred_check
          %p198 = pneg %p73
        $region18: #{gpt_forward.11} parent=11 // pred_check_branch
          %200 = sbr.rel (%p198) target = $region20
        $region19: #{gpt_forward.11} parent=11 // pred_region
          _
        $region20: #{gpt_forward.11} parent=11 // pred_fallthru
          _
        // Predicated region
        $region21: #{gpt_forward.11} parent=11 // pred_check
          %p201 = pneg %p94
        $region22: #{gpt_forward.11} parent=11 // pred_check_branch
          %203 = sbr.rel (%p201) target = $region24
        $region23: #{gpt_forward.11} parent=11 // pred_region
          _
        $region24: #{gpt_forward.11} parent=11 // pred_fallthru
          _
      $region12: #{gpt_forward.11} parent=5 // pred_fallthru
        _
      %p204 = scmp.lt.s32.totalorder %s14, 3
      // Predicated region
      $region25: #{gpt_forward.11} parent=5 // pred_check
        %p205 = pneg %p204
      $region26: #{gpt_forward.11} parent=5 // pred_check_branch
        %207 = sbr.rel (%p205) target = $region28
      $region27: #{gpt_forward.11} parent=5 // pred_region
        // Predicated region
        $region29: #{gpt_forward.11} parent=27 // pred_check
          %p208 = pneg %p114
        $region30: #{gpt_forward.11} parent=27 // pred_check_branch
          %210 = sbr.rel (%p208) target = $region32
        $region31: #{gpt_forward.11} parent=27 // pred_region
          %s211 = sand.u32 %s104, 1
          %s212 = scalar_lea.sflag [#allocation4], %s211
          %s213 = sand.u32 %s104, 1
          %s214 = smul.addr %s213, 128
          %s215 = scalar_lea.vmem [#allocation3], %s214
          %s217 = ssub.s32 2048, 2048
          %218 = vsyncadd %s212, %s217
          %s219 = smul.addr %s22, 128
          %s220 = scalar_lea.hbm %s3, %s219
          %s221 = sshll.u32 %s215, 4
          %s222 = int_to_ptr.vmem [resolvable:$true] %s221
          %227 = dma.hbm_to_vmem [thread:$0]  %s220, 2048, %s222, %s212, 384, 128, 8
        $region32: #{gpt_forward.11} parent=27 // pred_fallthru
          _
        // Predicated region
        $region33: #{gpt_forward.11} parent=27 // pred_check
          %p228 = pneg %p140
        $region34: #{gpt_forward.11} parent=27 // pred_check_branch
          %230 = sbr.rel (%p228) target = $region36
        $region35: #{gpt_forward.11} parent=27 // pred_region
          %p231 = scmp.lt.s32.totalorder %s22, 2
          %s232 = scalar_select %p231, %s22, 2
          %s233 = scalar_lea.vmem %s4, %s232
        $region36: #{gpt_forward.11} parent=27 // pred_fallthru
          _
      $region28: #{gpt_forward.11} parent=5 // pred_fallthru
        _
      %p234 = scmp.le.s32.totalorder 1, %s14
      %p235 = scmp.lt.s32.totalorder %s14, 4
      %p236 = pnand %p234, %p235
      %p237 = pneg %p236
      // Predicated region
      $region37: #{gpt_forward.11} parent=5 // pred_check
        _
      $region38: #{gpt_forward.11} parent=5 // pred_check_branch
        %239 = sbr.rel (%p236) target = $region40
      $region39: #{gpt_forward.11} parent=5 // pred_region
        %s240 = ssub.s32 %s14, 1
        %s241 = sand.u32 %s107, 1
        %s242 = scalar_lea.sflag [#allocation4], %s241
        %s243 = sand.u32 %s107, 1
        %s244 = smul.addr %s243, 128
        %s245 = scalar_lea.vmem [#allocation3], %s244
        // Predicated region
        $region41: #{gpt_forward.11} parent=39 // pred_check
          %p246 = pneg %p120
        $region42: #{gpt_forward.11} parent=39 // pred_check_branch
          %248 = sbr.rel (%p246) target = $region44
        $region43: #{gpt_forward.11} parent=39 // pred_region
          %249 = dma.done %s242, 2048
        $region44: #{gpt_forward.11} parent=39 // pred_fallthru
          _
        %s250 = smul.u32 2, %s23
        %p251 = scmp.lt.s32.totalorder %s250, 1
        %s252 = scalar_select %p251, %s250, 1
        %s253 = smul.addr %s252, 8
        %s254 = scalar_lea.vmem %s0, %s253
        %p255 = pneg %p52
        %p256 = pneg %p49
        %p257 = pneg %p73
        %p258 = pneg %p70
        %p259 = pneg %p94
        %p260 = pneg %p91
        %s261 = sand.u32 %s107, 1
        %s262 = scalar_lea.sflag [#allocation4], %s261
        %s263 = sand.u32 %s107, 1
        %s264 = smul.addr %s263, 128
        %s265 = scalar_lea.vmem [#allocation3], %s264
        %p266 = pneg %p120
        %p267 = pneg %p117
        %p268 = scmp.lt.s32.totalorder %s24, 2
        %s269 = scalar_select %p268, %s24, 2
        %s270 = scalar_lea.vmem %s4, %s269
        %p271 = pneg %p146
        %p272 = pneg %p143
        %p273 = pneg %p174
        %p274 = pneg %p171
        %s275 = sand.u32 %s161, 1
        %s276 = sand.u32 %s161, 1
        %s277 = smul.addr %s276, 16
        %s278 = scalar_lea.vmem [#allocation5], %s277
        %s279 = smul.u32 2, %s23
        %p280 = scmp.lt.s32.totalorder %s279, 1
        %s281 = scalar_select %p280, %s279, 1
        %s282 = smul.addr %s281, 8
        %s283 = scalar_lea.vmem %s0, %s282
        %s284 = smul.u32 2, %s23
        %p285 = scmp.lt.s32.totalorder %s24, 2
        %s286 = scalar_select %p285, %s24, 2
        %s287 = scalar_lea.vmem %s4, %s286
        %s288 = smul.u32 2, %s23
        %p289 = scmp.eq.s32.totalorder %s24, 0
        // Predicated region
        $region45: #{gpt_forward.11} parent=39 // pred_check
          %p290 = pneg %p289
        $region46: #{gpt_forward.11} parent=39 // pred_check_branch
          %292 = sbr.rel (%p290) target = $region48
        $region47: #{gpt_forward.11} parent=39 // pred_region
          %v293 = vld [vmem:[%s283] sm:$0xff]
          %v294 = vld [vmem:[%s283 + $0x8] sm:$0xff]
          %295 = vadd.xlane.f32.xlu0 %v293
          %v296 = vpop.xlane.xlu0 %295
          %297 = vadd.xlane.f32.xlu0 %v294
          %v298 = vpop.xlane.xlu0 %297
          %v299 = vrcp.pop 128.0
          %v300 = vmul.f32 %v296, %v299
          %v301 = vmul.f32 %v298, %v299
          %v302 = vsub.f32 %v293, %v300
          %v303 = vsub.f32 %v294, %v301
          %v304 = vmul.f32 %v302, %v302
          %v305 = vmul.f32 %v303, %v303
          %306 = vadd.xlane.f32.xlu0 %v304
          %v307 = vpop.xlane.xlu0 %306
          %308 = vadd.xlane.f32.xlu0 %v305
          %v309 = vpop.xlane.xlu0 %308
          %v310 = vmul.f32 %v307, %v299
          %v311 = vmul.f32 %v309, %v299
          %v312 = vadd.f32 %v310, 1e-05
          %v313 = vadd.f32 %v311, 1e-05
          %v314 = vrsqrt.pop %v312
          %v315 = vrsqrt.pop %v313
          %v316 = vmul.f32 %v302, %v314
          %v317 = vmul.f32 %v303, %v315
          %v318 = vld [vmem:[%s1] sm:$0x1]
          %v320 = vlaneseq
          %v321 = vshrl.u32 %v320, 7
          %v322 = vsub.s32 0, %v321
          %v323 = vrot.slane %v318, %v322
          %v325 = vmul.f32 %v316, %v323
          %v326 = vmul.f32 %v317, %v323
          %v327 = vld [vmem:[%s2] sm:$0x1]
          %v329 = vlaneseq
          %v330 = vshrl.u32 %v329, 7
          %v331 = vsub.s32 0, %v330
          %v332 = vrot.slane %v327, %v331
          %v334 = vadd.f32 %v325, %v332
          %v335 = vadd.f32 %v326, %v332
          %336 = vst [vmem:[#allocation2] sm:$0xff] %v334
          %337 = vst [vmem:[#allocation2 + $0x8] sm:$0xff] %v335
        $region48: #{gpt_forward.11} parent=39 // pred_fallthru
          _
        %v338 = vld [vmem:[#allocation2] sm:$0xff]
        %v339 = vld [vmem:[#allocation2 + $0x8] sm:$0xff]
        %v340 = vld [vmem:[%s245] sm:$0xff]
        %v341 = vld [vmem:[%s245 + $0x8] sm:$0xff]
        %v342 = vld [vmem:[%s245 + $0x10] sm:$0xff]
        %v343 = vld [vmem:[%s245 + $0x18] sm:$0xff]
        %v344 = vld [vmem:[%s245 + $0x20] sm:$0xff]
        %v345 = vld [vmem:[%s245 + $0x28] sm:$0xff]
        %v346 = vld [vmem:[%s245 + $0x30] sm:$0xff]
        %v347 = vld [vmem:[%s245 + $0x38] sm:$0xff]
        %v348 = vld [vmem:[%s245 + $0x40] sm:$0xff]
        %v349 = vld [vmem:[%s245 + $0x48] sm:$0xff]
        %v350 = vld [vmem:[%s245 + $0x50] sm:$0xff]
        %v351 = vld [vmem:[%s245 + $0x58] sm:$0xff]
        %v352 = vld [vmem:[%s245 + $0x60] sm:$0xff]
        %v353 = vld [vmem:[%s245 + $0x68] sm:$0xff]
        %v354 = vld [vmem:[%s245 + $0x70] sm:$0xff]
        %v355 = vld [vmem:[%s245 + $0x78] sm:$0xff]
        %v356 = vld [vmem:[%s287] sm:$0x1]
        %v358 = vlaneseq
        %v359 = vshrl.u32 %v358, 7
        %v360 = vsub.s32 0, %v359
        %v361 = vrot.slane %v356, %v360
        %363 = vmatprep.subr.mxu0 0.0
        %364 = vmatpush1.msra.mxu0 %v355
        %365 = vmatprep.subr.mxu0 0.0
        %366 = vmatpush1.msra.mxu0 %v354
        %367 = vmatprep.subr.mxu0 0.0
        %368 = vmatpush1.msra.mxu0 %v353
        %369 = vmatprep.subr.mxu0 0.0
        %370 = vmatpush1.msra.mxu0 %v352
        %371 = vmatprep.subr.mxu0 0.0
        %372 = vmatpush1.msra.mxu0 %v351
        %373 = vmatprep.subr.mxu0 0.0
        %374 = vmatpush1.msra.mxu0 %v350
        %375 = vmatprep.subr.mxu0 0.0
        %376 = vmatpush1.msra.mxu0 %v349
        %377 = vmatprep.subr.mxu0 0.0
        %378 = vmatpush1.msra.mxu0 %v348
        %379 = vmatprep.subr.mxu0 0.0
        %380 = vmatpush1.msra.mxu0 %v347
        %381 = vmatprep.subr.mxu0 0.0
        %382 = vmatpush1.msra.mxu0 %v346
        %383 = vmatprep.subr.mxu0 0.0
        %384 = vmatpush1.msra.mxu0 %v345
        %385 = vmatprep.subr.mxu0 0.0
        %386 = vmatpush1.msra.mxu0 %v344
        %387 = vmatprep.subr.mxu0 0.0
        %388 = vmatpush1.msra.mxu0 %v343
        %389 = vmatprep.subr.mxu0 0.0
        %390 = vmatpush1.msra.mxu0 %v342
        %391 = vmatprep.subr.mxu0 0.0
        %392 = vmatpush1.msra.mxu0 %v341
        %393 = vmatprep.subr.mxu0 0.0
        %394 = vmatpush1.msra.mxu0 %v340
        %395 = vmatprep.subr.mxu0 0.0
        %396 = vmatpush2.msra.mxu0 0.0
        %397 = vmatprep.subr.mxu0 0.0
        %398 = vmatpush2.msra.mxu0 0.0
        %399 = vmatprep.subr.mxu0 0.0
        %400 = vmatpush2.msra.mxu0 0.0
        %401 = vmatprep.subr.mxu0 0.0
        %402 = vmatpush2.msra.mxu0 0.0
        %403 = vmatprep.subr.mxu0 0.0
        %404 = vmatpush2.msra.mxu0 0.0
        %405 = vmatprep.subr.mxu0 0.0
        %406 = vmatpush2.msra.mxu0 0.0
        %407 = vmatprep.subr.mxu0 0.0
        %408 = vmatpush2.msra.mxu0 0.0
        %409 = vmatprep.subr.mxu0 0.0
        %410 = vmatpush2.msra.mxu0 0.0
        %411 = vmatprep.subr.mxu0 0.0
        %412 = vmatpush2.msra.mxu0 0.0
        %413 = vmatprep.subr.mxu0 0.0
        %414 = vmatpush2.msra.mxu0 0.0
        %415 = vmatprep.subr.mxu0 0.0
        %416 = vmatpush2.msra.mxu0 0.0
        %417 = vmatprep.subr.mxu0 0.0
        %418 = vmatpush2.msra.mxu0 0.0
        %419 = vmatprep.subr.mxu0 0.0
        %420 = vmatpush2.msra.mxu0 0.0
        %421 = vmatprep.subr.mxu0 0.0
        %422 = vmatpush2.msra.mxu0 0.0
        %423 = vmatprep.subr.mxu0 0.0
        %424 = vmatpush2.msra.mxu0 0.0
        %425 = vmatprep.subr.mxu0 0.0
        %426 = vmatpush2.msra.mxu0 0.0
        %427 = vmatprep.mubr.f32.mxu0 0.0
        %428 = vmatmul.mubr.f32.gmra.mxu0 %v338
        %v429 = vpop.f32.mrf.mxu0
        %v430 = vadd.f32 %v361, %v429
        %v431 = vpop.f32.mrf.mxu0
        %432 = vmatprep.mubr.f32.mxu0 0.0
        %433 = vmatmul.mubr.f32.gmra.mxu0 %v339
        %v434 = vpop.f32.mrf.mxu0
        %v435 = vadd.f32 %v361, %v434
        %v436 = vpop.f32.mrf.mxu0
        %437 = vdwg.mxu0
        %438 = vst [vmem:[%s278] sm:$0xff] %v430
        %439 = vst [vmem:[%s278 + $0x8] sm:$0xff] %v435
        %s440 = sand.u32 %s161, 1
        %s441 = sand.u32 %s161, 1
        %s442 = smul.addr %s441, 16
        %s443 = scalar_lea.vmem [#allocation5], %s442
        // Predicated region
        $region49: #{gpt_forward.11} parent=39 // pred_check
          %p444 = pneg %p171
        $region50: #{gpt_forward.11} parent=39 // pred_check_branch
          %446 = sbr.rel (%p444) target = $region52
        $region51: #{gpt_forward.11} parent=39 // pred_region
          %s447 = smul.u32 2, %s23
          %s448 = smul.addr %s447, 3
          %s449 = sadd.s32 %s24, %s448
          %s450 = smul.addr %s449, 8
          %s451 = scalar_lea.vmem %s5, %s450
          // Predicated region
          $region53: #{gpt_forward.11} parent=51 // pred_check
            _
          $region54: #{gpt_forward.11} parent=51 // pred_check_branch
            %453 = sbr.rel (0) target = $region56
          $region55: #{gpt_forward.11} parent=51 // pred_region
            // Predicated region
            $region57: #{gpt_forward.11} parent=55 // pred_check
              _
            $region58: #{gpt_forward.11} parent=55 // pred_check_branch
              %455 = sbr.rel (0) target = $region60
            $region59: #{gpt_forward.11} parent=55 // pred_region
              // Predicated region
              $region72: #{gpt_forward.11} parent=59 // pred_check
                _
              $region73: #{gpt_forward.11} parent=59 // pred_check_branch
                %473 = sbr.rel (0) target = $region75
              $region74: #{gpt_forward.11} parent=59 // pred_region
                loop: start=0, step=1, limit=1
                $region76: #{gpt_forward.11} parent=74 // loop_pre_header
                  _
                $region77: #{gpt_forward.11} parent=74 // loop_header
                  %s475 = sphi 0, %s479
                  %p476 = scmp.ge.s32.totalorder %s475, 1
                  %s480 = sphi %s443, %s443
                  %s481 = sphi %s451, %s451
                $region78: #{gpt_forward.11} parent=74 // loop_header_branch
                  %478 = sbr.rel (%p476) target = $region82
                $region79: #{gpt_forward.11} parent=74 // loop_body
                  %v482 = vld [vmem:[%s480] sm:$0xff]
                  %483 = vst [vmem:[%s481] sm:$0xff] %v482
                  %v484 = vld [vmem:[%s480 + $0x8] sm:$0xff]
                  %485 = vst [vmem:[%s481 + $0x18] sm:$0xff] %v484
                $region80: #{gpt_forward.11} parent=74 // loop_footer
                  %s479 = sadd.s32 1, %s475
                $region81: #{gpt_forward.11} parent=74 // loop_footer_branch
                  %474 = sbr.rel target = $region77
                $region82: #{gpt_forward.11} parent=74 // loop_exit
                  _
              $region75: #{gpt_forward.11} parent=59 // pred_fallthru
                _
              // Predicated region
              $region83: #{gpt_forward.11} parent=59 // pred_check
                _
              $region84: #{gpt_forward.11} parent=59 // pred_check_branch
                %487 = sbr.rel target = $region86
              $region85: #{gpt_forward.11} parent=59 // pred_region
                _
              $region86: #{gpt_forward.11} parent=59 // pred_fallthru
                _
            $region60: #{gpt_forward.11} parent=55 // pred_fallthru
              _
            // Predicated region
            $region61: #{gpt_forward.11} parent=55 // pred_check
              _
            $region62: #{gpt_forward.11} parent=55 // pred_check_branch
              %457 = sbr.rel target = $region64
            $region63: #{gpt_forward.11} parent=55 // pred_region
              %s459 = ssub.s32 256, 1
              loop: start=0, step=1, limit=1
              $region65: #{gpt_forward.11} parent=63 // loop_pre_header
                _
              $region66: #{gpt_forward.11} parent=63 // loop_header
                %s461 = sphi 0, %s465
                %p462 = scmp.ge.s32.totalorder %s461, 1
                %s466 = sphi %s443, %s443
                %s467 = sphi %s451, %s451
              $region67: #{gpt_forward.11} parent=63 // loop_header_branch
                %464 = sbr.rel (%p462) target = $region71
              $region68: #{gpt_forward.11} parent=63 // loop_body
                %v468 = vld [vmem:[%s466] sm:%s459]
                %469 = vst [vmem:[%s467] sm:%s459] %v468
                %v470 = vld [vmem:[%s466 + $0x8] sm:%s459]
                %471 = vst [vmem:[%s467 + $0x18] sm:%s459] %v470
              $region69: #{gpt_forward.11} parent=63 // loop_footer
                %s465 = sadd.s32 1, %s461
              $region70: #{gpt_forward.11} parent=63 // loop_footer_branch
                %460 = sbr.rel target = $region66
              $region71: #{gpt_forward.11} parent=63 // loop_exit
                _
            $region64: #{gpt_forward.11} parent=55 // pred_fallthru
              _
          $region56: #{gpt_forward.11} parent=51 // pred_fallthru
            _
          %488 = vnop
        $region52: #{gpt_forward.11} parent=39 // pred_fallthru
          _
      $region40: #{gpt_forward.11} parent=5 // pred_fallthru
        _
      %p489 = scmp.le.s32.totalorder 2, %s14
      // Predicated region
      $region87: #{gpt_forward.11} parent=5 // pred_check
        %p490 = pneg %p489
      $region88: #{gpt_forward.11} parent=5 // pred_check_branch
        %492 = sbr.rel (%p490) target = $region90
      $region89: #{gpt_forward.11} parent=5 // pred_region
        %s493 = ssub.s32 %s14, 2
        // Predicated region
        $region91: #{gpt_forward.11} parent=89 // pred_check
          %p494 = pneg %p177
        $region92: #{gpt_forward.11} parent=89 // pred_check_branch
          %496 = sbr.rel (%p494) target = $region94
        $region93: #{gpt_forward.11} parent=89 // pred_region
          %s497 = sand.u32 %s162, 1
          %s498 = sand.u32 %s162, 1
          %s499 = smul.addr %s498, 16
          %s500 = scalar_lea.vmem [#allocation5], %s499
        $region94: #{gpt_forward.11} parent=89 // pred_fallthru
          _
      $region90: #{gpt_forward.11} parent=5 // pred_fallthru
        _
    $region6: #{gpt_forward.11} parent=1 // loop_footer
      %s18 = sadd.s32 1, %s14
    $region7: #{gpt_forward.11} parent=1 // loop_footer_branch
      %13 = sbr.rel target = $region3
    $region8: #{gpt_forward.11} parent=1 // loop_exit
      _
    %501 = vsyncpa [#allocation4], 1
    %s502 = scalar_lea.sflag [#allocation4], 1
    %503 = vsyncpa %s502, 1

// kernel: gpt_forward.16
$region0: #{gpt_forward.16}
  #allocation0 [shape = 'u32[]', space=smem, size = 0x4, offset = 0x4, fixed_abs, tag = 'smem constant byte address 0x4 - core index']
  #allocation1 [shape = 'u32[144,128]{1,0:T(1,128)}', space=vmem, size = 0x12000, scoped, tag = 'internal scratch']
  #allocation2 [shape = 'f32[16,128]{1,0:T(8,128)}', space=vmem, size = 0x2000, scoped, tag = 'scratch operand']
  %s0 = inlined_call_operand.vmem [shape: f32[16,128], index: 0, kind: input, shape index: {}]
  %s1 = inlined_call_operand.vmem [shape: f32[1,128], index: 1, kind: input, shape index: {}]
  %s2 = inlined_call_operand.vmem [shape: f32[1,128], index: 2, kind: input, shape index: {}]
  %s3 = inlined_call_operand.vmem [shape: f32[128,384], index: 3, kind: input, shape index: {}]
  %s4 = inlined_call_operand.vmem [shape: f32[1,384], index: 4, kind: input, shape index: {}]
  %s5 = inlined_call_operand.vmem [shape: f32[16,384], index: 5, kind: output, shape index: {}]
  %s6 = sld [smem:[#allocation0]]
  $region129: #{gpt_forward.16} parent=0
    _
  %s8 = ssub.s32 1, %s6
  %s9 = scalar_select 0, %s8, %s6
  $region1: #{gpt_forward.16} parent=0
    #allocation3 [shape = 'u8[131072]{0}', space=vmem, size = 0x20000, scoped, tag = 'input window, operand 3']
    #allocation4 [shape = 'u8[16384]{0}', space=vmem, size = 0x4000, scoped, tag = 'output window, operand 0']
    loop: start=0, step=1, limit=5
    $region2: #{gpt_forward.16} parent=1 // loop_pre_header
      _
    $region3: #{gpt_forward.16} parent=1 // loop_header
      %s11 = sphi 0, %s15
      %p12 = scmp.ge.s32.totalorder %s11, 5
      %s18 = sphi 0, %s30
      %s19 = sphi 0, %s26
      %s20 = sphi 0, %s18
      %s21 = sphi 0, %s19
      %s22 = sphi 0, %s20
      %s23 = sphi 0, %s21
      %s33 = sphi 0, %s35
      %s36 = sphi 0, %s33
      %s37 = sphi 0, %s36
      %s53 = sphi 0, %s37
      %s57 = sphi 0, %s57
      %s59 = sphi 0, %s57
      %s60 = sphi 0, %s59
      %s74 = sphi 0, %s60
      %s78 = sphi 0, %s78
      %s80 = sphi 0, %s78
      %s81 = sphi 0, %s80
      %s95 = sphi 0, %s81
      %s101 = sphi 0, %s103
      %s104 = sphi 0, %s101
      %s105 = sphi 0, %s104
      %s121 = sphi 0, %s105
      %s127 = sphi 0, %s129
      %s130 = sphi 0, %s127
      %s131 = sphi 0, %s130
      %s147 = sphi 0, %s131
      %s155 = sphi 0, %s157
      %s158 = sphi 0, %s155
      %s159 = sphi 0, %s158
      %s175 = sphi 0, %s159
    $region4: #{gpt_forward.16} parent=1 // loop_header_branch
      %14 = sbr.rel (%p12) target = $region8
    $region5: #{gpt_forward.16} parent=1 // loop_body
      %s16 = ssub.s32 %s11, 1
      %s17 = ssub.s32 %s11, 2
      %s24 = sadd.s32 1, %s19
      %p25 = scmp.ge.s32.totalorder %s24, 3
      %s26 = scalar_select %p25, 0, %s24
      %s27 = sadd.s32 1, %s18
      %s28 = scalar_select %p25, %s27, %s18
      %p29 = scmp.ge.s32.totalorder %s28, 1
      %s30 = scalar_select %p29, 0, %s28
      %s31 = ssub.s32 %s18, %s30
      %p32 = scmp.eq.s32.totalorder %s31, 0
      %s34 = sadd.s32 %s33, 1
      %s35 = scalar_select %p32, %s33, %s34
      %p38 = pneg %p32
      %p39 = scmp.eq.s32.totalorder %s11, 2
      %p40 = por %p38, %p39
      %p41 = scmp.ne.s32.totalorder %s33, %s36
      %p42 = scmp.eq.s32.totalorder %s11, 0
      %p43 = por %p41, %p42
      %p44 = scmp.ne.s32.totalorder %s33, %s36
      %p45 = scmp.eq.s32.totalorder %s16, 2
      %p46 = por %p44, %p45
      %p47 = scmp.ne.s32.totalorder %s36, %s37
      %p48 = scmp.eq.s32.totalorder %s16, 0
      %p49 = por %p47, %p48
      %p50 = scmp.ne.s32.totalorder %s36, %s37
      %p51 = scmp.eq.s32.totalorder %s17, 2
      %p52 = por %p50, %p51
      %p54 = scmp.ne.s32.totalorder %s37, %s53
      %p55 = scmp.eq.s32.totalorder %s17, 0
      %p56 = por %p54, %p55
      %s58 = sadd.s32 %s57, 1
      %p61 = scmp.eq.s32.totalorder %s11, 2
      %p62 = scmp.ne.s32.totalorder %s57, %s59
      %p63 = scmp.eq.s32.totalorder %s11, 0
      %p64 = por %p62, %p63
      %p65 = scmp.ne.s32.totalorder %s57, %s59
      %p66 = scmp.eq.s32.totalorder %s16, 2
      %p67 = por %p65, %p66
      %p68 = scmp.ne.s32.totalorder %s59, %s60
      %p69 = scmp.eq.s32.totalorder %s16, 0
      %p70 = por %p68, %p69
      %p71 = scmp.ne.s32.totalorder %s59, %s60
      %p72 = scmp.eq.s32.totalorder %s17, 2
      %p73 = por %p71, %p72
      %p75 = scmp.ne.s32.totalorder %s60, %s74
      %p76 = scmp.eq.s32.totalorder %s17, 0
      %p77 = por %p75, %p76
      %s79 = sadd.s32 %s78, 1
      %p82 = scmp.eq.s32.totalorder %s11, 2
      %p83 = scmp.ne.s32.totalorder %s78, %s80
      %p84 = scmp.eq.s32.totalorder %s11, 0
      %p85 = por %p83, %p84
      %p86 = scmp.ne.s32.totalorder %s78, %s80
      %p87 = scmp.eq.s32.totalorder %s16, 2
      %p88 = por %p86, %p87
      %p89 = scmp.ne.s32.totalorder %s80, %s81
      %p90 = scmp.eq.s32.totalorder %s16, 0
      %p91 = por %p89, %p90
      %p92 = scmp.ne.s32.totalorder %s80, %s81
      %p93 = scmp.eq.s32.totalorder %s17, 2
      %p94 = por %p92, %p93
      %p96 = scmp.ne.s32.totalorder %s81, %s95
      %p97 = scmp.eq.s32.totalorder %s17, 0
      %p98 = por %p96, %p97
      %s99 = ssub.s32 %s19, %s26
      %p100 = scmp.eq.s32.totalorder %s99, 0
      %s102 = sadd.s32 %s101, 1
      %s103 = scalar_select %p100, %s101, %s102
      %p106 = pneg %p100
      %p107 = scmp.eq.s32.totalorder %s11, 2
      %p108 = por %p106, %p107
      %p109 = scmp.ne.s32.totalorder %s101, %s104
      %p110 = scmp.eq.s32.totalorder %s11, 0
      %p111 = por %p109, %p110
      %p112 = scmp.ne.s32.totalorder %s101, %s104
      %p113 = scmp.eq.s32.totalorder %s16, 2
      %p114 = por %p112, %p113
      %p115 = scmp.ne.s32.totalorder %s104, %s105
      %p116 = scmp.eq.s32.totalorder %s16, 0
      %p117 = por %p115, %p116
      %p118 = scmp.ne.s32.totalorder %s104, %s105
      %p119 = scmp.eq.s32.totalorder %s17, 2
      %p120 = por %p118, %p119
      %p122 = scmp.ne.s32.totalorder %s105, %s121
      %p123 = scmp.eq.s32.totalorder %s17, 0
      %p124 = por %p122, %p123
      %s125 = ssub.s32 %s19, %s26
      %p126 = scmp.eq.s32.totalorder %s125, 0
      %s128 = sadd.s32 %s127, 1
      %s129 = scalar_select %p126, %s127, %s128
      %p132 = pneg %p126
      %p133 = scmp.eq.s32.totalorder %s11, 2
      %p134 = por %p132, %p133
      %p135 = scmp.ne.s32.totalorder %s127, %s130
      %p136 = scmp.eq.s32.totalorder %s11, 0
      %p137 = por %p135, %p136
      %p138 = scmp.ne.s32.totalorder %s127, %s130
      %p139 = scmp.eq.s32.totalorder %s16, 2
      %p140 = por %p138, %p139
      %p141 = scmp.ne.s32.totalorder %s130, %s131
      %p142 = scmp.eq.s32.totalorder %s16, 0
      %p143 = por %p141, %p142
      %p144 = scmp.ne.s32.totalorder %s130, %s131
      %p145 = scmp.eq.s32.totalorder %s17, 2
      %p146 = por %p144, %p145
      %p148 = scmp.ne.s32.totalorder %s131, %s147
      %p149 = scmp.eq.s32.totalorder %s17, 0
      %p150 = por %p148, %p149
      %s151 = ssub.s32 %s18, %s30
      %s152 = ssub.s32 %s19, %s26
      %s153 = sor.u32 %s151, %s152
      %p154 = scmp.eq.s32.totalorder %s153, 0
      %s156 = sadd.s32 %s155, 1
      %s157 = scalar_select %p154, %s155, %s156
      %p160 = pneg %p154
      %p161 = scmp.eq.s32.totalorder %s11, 2
      %p162 = por %p160, %p161
      %p163 = scmp.ne.s32.totalorder %s155, %s158
      %p164 = scmp.eq.s32.totalorder %s11, 0
      %p165 = por %p163, %p164
      %p166 = scmp.ne.s32.totalorder %s155, %s158
      %p167 = scmp.eq.s32.totalorder %s16, 2
      %p168 = por %p166, %p167
      %p169 = scmp.ne.s32.totalorder %s158, %s159
      %p170 = scmp.eq.s32.totalorder %s16, 0
      %p171 = por %p169, %p170
      %p172 = scmp.ne.s32.totalorder %s158, %s159
      %p173 = scmp.eq.s32.totalorder %s17, 2
      %p174 = por %p172, %p173
      %p176 = scmp.ne.s32.totalorder %s159, %s175
      %p177 = scmp.eq.s32.totalorder %s17, 0
      %p178 = por %p176, %p177
      %p179 = scmp.le.s32.totalorder 1, %s11
      %p180 = scmp.lt.s32.totalorder %s11, 4
      %p181 = pnand %p179, %p180
      %p182 = pneg %p181
      // Predicated region
      $region9: #{gpt_forward.16} parent=5 // pred_check
        _
      $region10: #{gpt_forward.16} parent=5 // pred_check_branch
        %184 = sbr.rel (%p181) target = $region12
      $region11: #{gpt_forward.16} parent=5 // pred_region
        %s185 = ssub.s32 %s11, 1
        // Predicated region
        $region13: #{gpt_forward.16} parent=11 // pred_check
          %p186 = pneg %p49
        $region14: #{gpt_forward.16} parent=11 // pred_check_branch
          %188 = sbr.rel (%p186) target = $region16
        $region15: #{gpt_forward.16} parent=11 // pred_region
          %s189 = smul.u32 2, %s20
          %p190 = scmp.lt.s32.totalorder %s189, 1
          %s191 = scalar_select %p190, %s189, 1
          %s192 = smul.addr %s191, 8
          %s193 = scalar_lea.vmem %s0, %s192
          %s194 = smul.u32 2, %s20
        $region16: #{gpt_forward.16} parent=11 // pred_fallthru
          _
        // Predicated region
        $region17: #{gpt_forward.16} parent=11 // pred_check
          %p195 = pneg %p70
        $region18: #{gpt_forward.16} parent=11 // pred_check_branch
          %197 = sbr.rel (%p195) target = $region20
        $region19: #{gpt_forward.16} parent=11 // pred_region
          _
        $region20: #{gpt_forward.16} parent=11 // pred_fallthru
          _
        // Predicated region
        $region21: #{gpt_forward.16} parent=11 // pred_check
          %p198 = pneg %p91
        $region22: #{gpt_forward.16} parent=11 // pred_check_branch
          %200 = sbr.rel (%p198) target = $region24
        $region23: #{gpt_forward.16} parent=11 // pred_region
          _
        $region24: #{gpt_forward.16} parent=11 // pred_fallthru
          _
      $region12: #{gpt_forward.16} parent=5 // pred_fallthru
        _
      %p201 = scmp.lt.s32.totalorder %s11, 3
      // Predicated region
      $region25: #{gpt_forward.16} parent=5 // pred_check
        %p202 = pneg %p201
      $region26: #{gpt_forward.16} parent=5 // pred_check_branch
        %204 = sbr.rel (%p202) target = $region28
      $region27: #{gpt_forward.16} parent=5 // pred_region
        // Predicated region
        $region29: #{gpt_forward.16} parent=27 // pred_check
          %p205 = pneg %p111
        $region30: #{gpt_forward.16} parent=27 // pred_check_branch
          %207 = sbr.rel (%p205) target = $region32
        $region31: #{gpt_forward.16} parent=27 // pred_region
          %s208 = sand.u32 %s101, 1
          %s209 = sand.u32 %s101, 1
          %s210 = smul.addr %s209, 128
          %s211 = scalar_lea.vmem [#allocation3], %s210
          %s212 = smul.addr %s19, 8
          %s213 = scalar_lea.vmem %s3, %s212
          // Predicated region
          $region33: #{gpt_forward.16} parent=31 // pred_check
            _
          $region34: #{gpt_forward.16} parent=31 // pred_check_branch
            %215 = sbr.rel (0) target = $region36
          $region35: #{gpt_forward.16} parent=31 // pred_region
            // Predicated region
            $region37: #{gpt_forward.16} parent=35 // pred_check
              _
            $region38: #{gpt_forward.16} parent=35 // pred_check_branch
              %217 = sbr.rel (0) target = $region40
            $region39: #{gpt_forward.16} parent=35 // pred_region
              // Predicated region
              $region52: #{gpt_forward.16} parent=39 // pred_check
                _
              $region53: #{gpt_forward.16} parent=39 // pred_check_branch
                %263 = sbr.rel (0) target = $region55
              $region54: #{gpt_forward.16} parent=39 // pred_region
                loop: start=0, step=1, limit=1
                $region56: #{gpt_forward.16} parent=54 // loop_pre_header
                  _
                $region57: #{gpt_forward.16} parent=54 // loop_header
                  %s265 = sphi 0, %s269
                  %p266 = scmp.ge.s32.totalorder %s265, 1
                  %s270 = sphi %s213, %s213
                  %s271 = sphi %s211, %s211
                $region58: #{gpt_forward.16} parent=54 // loop_header_branch
                  %268 = sbr.rel (%p266) target = $region62
                $region59: #{gpt_forward.16} parent=54 // loop_body
                  %v272 = vld [vmem:[%s270] sm:$0xff]
                  %273 = vst [vmem:[%s271] sm:$0xff] %v272
                  %v274 = vld [vmem:[%s270 + $0x18] sm:$0xff]
                  %275 = vst [vmem:[%s271 + $0x8] sm:$0xff] %v274
                  %v276 = vld [vmem:[%s270 + $0x30] sm:$0xff]
                  %277 = vst [vmem:[%s271 + $0x10] sm:$0xff] %v276
                  %v278 = vld [vmem:[%s270 + $0x48] sm:$0xff]
                  %279 = vst [vmem:[%s271 + $0x18] sm:$0xff] %v278
                  %v280 = vld [vmem:[%s270 + $0x60] sm:$0xff]
                  %281 = vst [vmem:[%s271 + $0x20] sm:$0xff] %v280
                  %v282 = vld [vmem:[%s270 + $0x78] sm:$0xff]
                  %283 = vst [vmem:[%s271 + $0x28] sm:$0xff] %v282
                  %v284 = vld [vmem:[%s270 + $0x90] sm:$0xff]
                  %285 = vst [vmem:[%s271 + $0x30] sm:$0xff] %v284
                  %v286 = vld [vmem:[%s270 + $0xa8] sm:$0xff]
                  %287 = vst [vmem:[%s271 + $0x38] sm:$0xff] %v286
                  %v288 = vld [vmem:[%s270 + $0xc0] sm:$0xff]
                  %289 = vst [vmem:[%s271 + $0x40] sm:$0xff] %v288
                  %v290 = vld [vmem:[%s270 + $0xd8] sm:$0xff]
                  %291 = vst [vmem:[%s271 + $0x48] sm:$0xff] %v290
                  %v292 = vld [vmem:[%s270 + $0xf0] sm:$0xff]
                  %293 = vst [vmem:[%s271 + $0x50] sm:$0xff] %v292
                  %v294 = vld [vmem:[%s270 + $0x108] sm:$0xff]
                  %295 = vst [vmem:[%s271 + $0x58] sm:$0xff] %v294
                  %v296 = vld [vmem:[%s270 + $0x120] sm:$0xff]
                  %297 = vst [vmem:[%s271 + $0x60] sm:$0xff] %v296
                  %v298 = vld [vmem:[%s270 + $0x138] sm:$0xff]
                  %299 = vst [vmem:[%s271 + $0x68] sm:$0xff] %v298
                  %v300 = vld [vmem:[%s270 + $0x150] sm:$0xff]
                  %301 = vst [vmem:[%s271 + $0x70] sm:$0xff] %v300
                  %v302 = vld [vmem:[%s270 + $0x168] sm:$0xff]
                  %303 = vst [vmem:[%s271 + $0x78] sm:$0xff] %v302
                $region60: #{gpt_forward.16} parent=54 // loop_footer
                  %s269 = sadd.s32 1, %s265
                $region61: #{gpt_forward.16} parent=54 // loop_footer_branch
                  %264 = sbr.rel target = $region57
                $region62: #{gpt_forward.16} parent=54 // loop_exit
                  _
              $region55: #{gpt_forward.16} parent=39 // pred_fallthru
                _
              // Predicated region
              $region63: #{gpt_forward.16} parent=39 // pred_check
                _
              $region64: #{gpt_forward.16} parent=39 // pred_check_branch
                %305 = sbr.rel target = $region66
              $region65: #{gpt_forward.16} parent=39 // pred_region
                _
              $region66: #{gpt_forward.16} parent=39 // pred_fallthru
                _
            $region40: #{gpt_forward.16} parent=35 // pred_fallthru
              _
            // Predicated region
            $region41: #{gpt_forward.16} parent=35 // pred_check
              _
            $region42: #{gpt_forward.16} parent=35 // pred_check_branch
              %219 = sbr.rel target = $region44
            $region43: #{gpt_forward.16} parent=35 // pred_region
              %s221 = ssub.s32 256, 1
              loop: start=0, step=1, limit=1
              $region45: #{gpt_forward.16} parent=43 // loop_pre_header
                _
              $region46: #{gpt_forward.16} parent=43 // loop_header
                %s223 = sphi 0, %s227
                %p224 = scmp.ge.s32.totalorder %s223, 1
                %s228 = sphi %s213, %s213
                %s229 = sphi %s211, %s211
              $region47: #{gpt_forward.16} parent=43 // loop_header_branch
                %226 = sbr.rel (%p224) target = $region51
              $region48: #{gpt_forward.16} parent=43 // loop_body
                %v230 = vld [vmem:[%s228] sm:%s221]
                %231 = vst [vmem:[%s229] sm:%s221] %v230
                %v232 = vld [vmem:[%s228 + $0x18] sm:%s221]
                %233 = vst [vmem:[%s229 + $0x8] sm:%s221] %v232
                %v234 = vld [vmem:[%s228 + $0x30] sm:%s221]
                %235 = vst [vmem:[%s229 + $0x10] sm:%s221] %v234
                %v236 = vld [vmem:[%s228 + $0x48] sm:%s221]
                %237 = vst [vmem:[%s229 + $0x18] sm:%s221] %v236
                %v238 = vld [vmem:[%s228 + $0x60] sm:%s221]
                %239 = vst [vmem:[%s229 + $0x20] sm:%s221] %v238
                %v240 = vld [vmem:[%s228 + $0x78] sm:%s221]
                %241 = vst [vmem:[%s229 + $0x28] sm:%s221] %v240
                %v242 = vld [vmem:[%s228 + $0x90] sm:%s221]
                %243 = vst [vmem:[%s229 + $0x30] sm:%s221] %v242
                %v244 = vld [vmem:[%s228 + $0xa8] sm:%s221]
                %245 = vst [vmem:[%s229 + $0x38] sm:%s221] %v244
                %v246 = vld [vmem:[%s228 + $0xc0] sm:%s221]
                %247 = vst [vmem:[%s229 + $0x40] sm:%s221] %v246
                %v248 = vld [vmem:[%s228 + $0xd8] sm:%s221]
                %249 = vst [vmem:[%s229 + $0x48] sm:%s221] %v248
                %v250 = vld [vmem:[%s228 + $0xf0] sm:%s221]
                %251 = vst [vmem:[%s229 + $0x50] sm:%s221] %v250
                %v252 = vld [vmem:[%s228 + $0x108] sm:%s221]
                %253 = vst [vmem:[%s229 + $0x58] sm:%s221] %v252
                %v254 = vld [vmem:[%s228 + $0x120] sm:%s221]
                %255 = vst [vmem:[%s229 + $0x60] sm:%s221] %v254
                %v256 = vld [vmem:[%s228 + $0x138] sm:%s221]
                %257 = vst [vmem:[%s229 + $0x68] sm:%s221] %v256
                %v258 = vld [vmem:[%s228 + $0x150] sm:%s221]
                %259 = vst [vmem:[%s229 + $0x70] sm:%s221] %v258
                %v260 = vld [vmem:[%s228 + $0x168] sm:%s221]
                %261 = vst [vmem:[%s229 + $0x78] sm:%s221] %v260
              $region49: #{gpt_forward.16} parent=43 // loop_footer
                %s227 = sadd.s32 1, %s223
              $region50: #{gpt_forward.16} parent=43 // loop_footer_branch
                %222 = sbr.rel target = $region46
              $region51: #{gpt_forward.16} parent=43 // loop_exit
                _
            $region44: #{gpt_forward.16} parent=35 // pred_fallthru
              _
          $region36: #{gpt_forward.16} parent=31 // pred_fallthru
            _
          %306 = vnop
        $region32: #{gpt_forward.16} parent=27 // pred_fallthru
          _
        // Predicated region
        $region67: #{gpt_forward.16} parent=27 // pred_check
          %p307 = pneg %p137
        $region68: #{gpt_forward.16} parent=27 // pred_check_branch
          %309 = sbr.rel (%p307) target = $region70
        $region69: #{gpt_forward.16} parent=27 // pred_region
          %p310 = scmp.lt.s32.totalorder %s19, 2
          %s311 = scalar_select %p310, %s19, 2
          %s312 = scalar_lea.vmem %s4, %s311
        $region70: #{gpt_forward.16} parent=27 // pred_fallthru
          _
      $region28: #{gpt_forward.16} parent=5 // pred_fallthru
        _
      %p313 = scmp.le.s32.totalorder 1, %s11
      %p314 = scmp.lt.s32.totalorder %s11, 4
      %p315 = pnand %p313, %p314
      %p316 = pneg %p315
      // Predicated region
      $region71: #{gpt_forward.16} parent=5 // pred_check
        _
      $region72: #{gpt_forward.16} parent=5 // pred_check_branch
        %318 = sbr.rel (%p315) target = $region74
      $region73: #{gpt_forward.16} parent=5 // pred_region
        %s319 = ssub.s32 %s11, 1
        %s320 = sand.u32 %s104, 1
        %s321 = sand.u32 %s104, 1
        %s322 = smul.addr %s321, 128
        %s323 = scalar_lea.vmem [#allocation3], %s322
        // Predicated region
        $region75: #{gpt_forward.16} parent=73 // pred_check
          %p324 = pneg %p117
        $region76: #{gpt_forward.16} parent=73 // pred_check_branch
          %326 = sbr.rel (%p324) target = $region78
        $region77: #{gpt_forward.16} parent=73 // pred_region
          _
        $region78: #{gpt_forward.16} parent=73 // pred_fallthru
          _
        %s327 = smul.u32 2, %s20
        %p328 = scmp.lt.s32.totalorder %s327, 1
        %s329 = scalar_select %p328, %s327, 1
        %s330 = smul.addr %s329, 8
        %s331 = scalar_lea.vmem %s0, %s330
        %p332 = pneg %p49
        %p333 = pneg %p46
        %p334 = pneg %p70
        %p335 = pneg %p67
        %p336 = pneg %p91
        %p337 = pneg %p88
        %s338 = sand.u32 %s104, 1
        %s339 = sand.u32 %s104, 1
        %s340 = smul.addr %s339, 128
        %s341 = scalar_lea.vmem [#allocation3], %s340
        %p342 = pneg %p117
        %p343 = pneg %p114
        %p344 = scmp.lt.s32.totalorder %s21, 2
        %s345 = scalar_select %p344, %s21, 2
        %s346 = scalar_lea.vmem %s4, %s345
        %p347 = pneg %p143
        %p348 = pneg %p140
        %p349 = pneg %p171
        %p350 = pneg %p168
        %s351 = sand.u32 %s158, 1
        %s352 = sand.u32 %s158, 1
        %s353 = smul.addr %s352, 16
        %s354 = scalar_lea.vmem [#allocation4], %s353
        %s355 = smul.u32 2, %s20
        %p356 = scmp.lt.s32.totalorder %s355, 1
        %s357 = scalar_select %p356, %s355, 1
        %s358 = smul.addr %s357, 8
        %s359 = scalar_lea.vmem %s0, %s358
        %s360 = smul.u32 2, %s20
        %p361 = scmp.lt.s32.totalorder %s21, 2
        %s362 = scalar_select %p361, %s21, 2
        %s363 = scalar_lea.vmem %s4, %s362
        %s364 = smul.u32 2, %s20
        %p365 = scmp.eq.s32.totalorder %s21, 0
        // Predicated region
        $region79: #{gpt_forward.16} parent=73 // pred_check
          %p366 = pneg %p365
        $region80: #{gpt_forward.16} parent=73 // pred_check_branch
          %368 = sbr.rel (%p366) target = $region82
        $region81: #{gpt_forward.16} parent=73 // pred_region
          %v369 = vld [vmem:[%s359] sm:$0xff]
          %v370 = vld [vmem:[%s359 + $0x8] sm:$0xff]
          %371 = vadd.xlane.f32.xlu0 %v369
          %v372 = vpop.xlane.xlu0 %371
          %373 = vadd.xlane.f32.xlu0 %v370
          %v374 = vpop.xlane.xlu0 %373
          %v375 = vrcp.pop 128.0
          %v376 = vmul.f32 %v372, %v375
          %v377 = vmul.f32 %v374, %v375
          %v378 = vsub.f32 %v369, %v376
          %v379 = vsub.f32 %v370, %v377
          %v380 = vmul.f32 %v378, %v378
          %v381 = vmul.f32 %v379, %v379
          %382 = vadd.xlane.f32.xlu0 %v380
          %v383 = vpop.xlane.xlu0 %382
          %384 = vadd.xlane.f32.xlu0 %v381
          %v385 = vpop.xlane.xlu0 %384
          %v386 = vmul.f32 %v383, %v375
          %v387 = vmul.f32 %v385, %v375
          %v388 = vadd.f32 %v386, 1e-05
          %v389 = vadd.f32 %v387, 1e-05
          %v390 = vrsqrt.pop %v388
          %v391 = vrsqrt.pop %v389
          %v392 = vmul.f32 %v378, %v390
          %v393 = vmul.f32 %v379, %v391
          %v394 = vld [vmem:[%s1] sm:$0x1]
          %v396 = vlaneseq
          %v397 = vshrl.u32 %v396, 7
          %v398 = vsub.s32 0, %v397
          %v399 = vrot.slane %v394, %v398
          %v401 = vmul.f32 %v392, %v399
          %v402 = vmul.f32 %v393, %v399
          %v403 = vld [vmem:[%s2] sm:$0x1]
          %v405 = vlaneseq
          %v406 = vshrl.u32 %v405, 7
          %v407 = vsub.s32 0, %v406
          %v408 = vrot.slane %v403, %v407
          %v410 = vadd.f32 %v401, %v408
          %v411 = vadd.f32 %v402, %v408
          %412 = vst [vmem:[#allocation2] sm:$0xff] %v410
          %413 = vst [vmem:[#allocation2 + $0x8] sm:$0xff] %v411
        $region82: #{gpt_forward.16} parent=73 // pred_fallthru
          _
        %v414 = vld [vmem:[#allocation2] sm:$0xff]
        %v415 = vld [vmem:[#allocation2 + $0x8] sm:$0xff]
        %v416 = vld [vmem:[%s323] sm:$0xff]
        %v417 = vld [vmem:[%s323 + $0x8] sm:$0xff]
        %v418 = vld [vmem:[%s323 + $0x10] sm:$0xff]
        %v419 = vld [vmem:[%s323 + $0x18] sm:$0xff]
        %v420 = vld [vmem:[%s323 + $0x20] sm:$0xff]
        %v421 = vld [vmem:[%s323 + $0x28] sm:$0xff]
        %v422 = vld [vmem:[%s323 + $0x30] sm:$0xff]
        %v423 = vld [vmem:[%s323 + $0x38] sm:$0xff]
        %v424 = vld [vmem:[%s323 + $0x40] sm:$0xff]
        %v425 = vld [vmem:[%s323 + $0x48] sm:$0xff]
        %v426 = vld [vmem:[%s323 + $0x50] sm:$0xff]
        %v427 = vld [vmem:[%s323 + $0x58] sm:$0xff]
        %v428 = vld [vmem:[%s323 + $0x60] sm:$0xff]
        %v429 = vld [vmem:[%s323 + $0x68] sm:$0xff]
        %v430 = vld [vmem:[%s323 + $0x70] sm:$0xff]
        %v431 = vld [vmem:[%s323 + $0x78] sm:$0xff]
        %v432 = vld [vmem:[%s363] sm:$0x1]
        %v434 = vlaneseq
        %v435 = vshrl.u32 %v434, 7
        %v436 = vsub.s32 0, %v435
        %v437 = vrot.slane %v432, %v436
        %439 = vmatprep.subr.mxu0 0.0
        %440 = vmatpush1.msra.mxu0 %v431
        %441 = vmatprep.subr.mxu0 0.0
        %442 = vmatpush1.msra.mxu0 %v430
        %443 = vmatprep.subr.mxu0 0.0
        %444 = vmatpush1.msra.mxu0 %v429
        %445 = vmatprep.subr.mxu0 0.0
        %446 = vmatpush1.msra.mxu0 %v428
        %447 = vmatprep.subr.mxu0 0.0
        %448 = vmatpush1.msra.mxu0 %v427
        %449 = vmatprep.subr.mxu0 0.0
        %450 = vmatpush1.msra.mxu0 %v426
        %451 = vmatprep.subr.mxu0 0.0
        %452 = vmatpush1.msra.mxu0 %v425
        %453 = vmatprep.subr.mxu0 0.0
        %454 = vmatpush1.msra.mxu0 %v424
        %455 = vmatprep.subr.mxu0 0.0
        %456 = vmatpush1.msra.mxu0 %v423
        %457 = vmatprep.subr.mxu0 0.0
        %458 = vmatpush1.msra.mxu0 %v422
        %459 = vmatprep.subr.mxu0 0.0
        %460 = vmatpush1.msra.mxu0 %v421
        %461 = vmatprep.subr.mxu0 0.0
        %462 = vmatpush1.msra.mxu0 %v420
        %463 = vmatprep.subr.mxu0 0.0
        %464 = vmatpush1.msra.mxu0 %v419
        %465 = vmatprep.subr.mxu0 0.0
        %466 = vmatpush1.msra.mxu0 %v418
        %467 = vmatprep.subr.mxu0 0.0
        %468 = vmatpush1.msra.mxu0 %v417
        %469 = vmatprep.subr.mxu0 0.0
        %470 = vmatpush1.msra.mxu0 %v416
        %471 = vmatprep.subr.mxu0 0.0
        %472 = vmatpush2.msra.mxu0 0.0
        %473 = vmatprep.subr.mxu0 0.0
        %474 = vmatpush2.msra.mxu0 0.0
        %475 = vmatprep.subr.mxu0 0.0
        %476 = vmatpush2.msra.mxu0 0.0
        %477 = vmatprep.subr.mxu0 0.0
        %478 = vmatpush2.msra.mxu0 0.0
        %479 = vmatprep.subr.mxu0 0.0
        %480 = vmatpush2.msra.mxu0 0.0
        %481 = vmatprep.subr.mxu0 0.0
        %482 = vmatpush2.msra.mxu0 0.0
        %483 = vmatprep.subr.mxu0 0.0
        %484 = vmatpush2.msra.mxu0 0.0
        %485 = vmatprep.subr.mxu0 0.0
        %486 = vmatpush2.msra.mxu0 0.0
        %487 = vmatprep.subr.mxu0 0.0
        %488 = vmatpush2.msra.mxu0 0.0
        %489 = vmatprep.subr.mxu0 0.0
        %490 = vmatpush2.msra.mxu0 0.0
        %491 = vmatprep.subr.mxu0 0.0
        %492 = vmatpush2.msra.mxu0 0.0
        %493 = vmatprep.subr.mxu0 0.0
        %494 = vmatpush2.msra.mxu0 0.0
        %495 = vmatprep.subr.mxu0 0.0
        %496 = vmatpush2.msra.mxu0 0.0
        %497 = vmatprep.subr.mxu0 0.0
        %498 = vmatpush2.msra.mxu0 0.0
        %499 = vmatprep.subr.mxu0 0.0
        %500 = vmatpush2.msra.mxu0 0.0
        %501 = vmatprep.subr.mxu0 0.0
        %502 = vmatpush2.msra.mxu0 0.0
        %503 = vmatprep.mubr.f32.mxu0 0.0
        %504 = vmatmul.mubr.f32.gmra.mxu0 %v414
        %v505 = vpop.f32.mrf.mxu0
        %v506 = vadd.f32 %v437, %v505
        %v507 = vpop.f32.mrf.mxu0
        %508 = vmatprep.mubr.f32.mxu0 0.0
        %509 = vmatmul.mubr.f32.gmra.mxu0 %v415
        %v510 = vpop.f32.mrf.mxu0
        %v511 = vadd.f32 %v437, %v510
        %v512 = vpop.f32.mrf.mxu0
        %513 = vdwg.mxu0
        %514 = vst [vmem:[%s354] sm:$0xff] %v506
        %515 = vst [vmem:[%s354 + $0x8] sm:$0xff] %v511
        %s516 = sand.u32 %s158, 1
        %s517 = sand.u32 %s158, 1
        %s518 = smul.addr %s517, 16
        %s519 = scalar_lea.vmem [#allocation4], %s518
        // Predicated region
        $region83: #{gpt_forward.16} parent=73 // pred_check
          %p520 = pneg %p168
        $region84: #{gpt_forward.16} parent=73 // pred_check_branch
          %522 = sbr.rel (%p520) target = $region86
        $region85: #{gpt_forward.16} parent=73 // pred_region
          %s523 = smul.u32 2, %s20
          %s524 = smul.addr %s523, 3
          %s525 = sadd.s32 %s21, %s524
          %s526 = smul.addr %s525, 8
          %s527 = scalar_lea.vmem %s5, %s526
          // Predicated region
          $region87: #{gpt_forward.16} parent=85 // pred_check
            _
          $region88: #{gpt_forward.16} parent=85 // pred_check_branch
            %529 = sbr.rel (0) target = $region90
          $region89: #{gpt_forward.16} parent=85 // pred_region
            // Predicated region
            $region91: #{gpt_forward.16} parent=89 // pred_check
              _
            $region92: #{gpt_forward.16} parent=89 // pred_check_branch
              %531 = sbr.rel (0) target = $region94
            $region93: #{gpt_forward.16} parent=89 // pred_region
              // Predicated region
              $region106: #{gpt_forward.16} parent=93 // pred_check
                _
              $region107: #{gpt_forward.16} parent=93 // pred_check_branch
                %549 = sbr.rel (0) target = $region109
              $region108: #{gpt_forward.16} parent=93 // pred_region
                loop: start=0, step=1, limit=1
                $region110: #{gpt_forward.16} parent=108 // loop_pre_header
                  _
                $region111: #{gpt_forward.16} parent=108 // loop_header
                  %s551 = sphi 0, %s555
                  %p552 = scmp.ge.s32.totalorder %s551, 1
                  %s556 = sphi %s519, %s519
                  %s557 = sphi %s527, %s527
                $region112: #{gpt_forward.16} parent=108 // loop_header_branch
                  %554 = sbr.rel (%p552) target = $region116
                $region113: #{gpt_forward.16} parent=108 // loop_body
                  %v558 = vld [vmem:[%s556] sm:$0xff]
                  %559 = vst [vmem:[%s557] sm:$0xff] %v558
                  %v560 = vld [vmem:[%s556 + $0x8] sm:$0xff]
                  %561 = vst [vmem:[%s557 + $0x18] sm:$0xff] %v560
                $region114: #{gpt_forward.16} parent=108 // loop_footer
                  %s555 = sadd.s32 1, %s551
                $region115: #{gpt_forward.16} parent=108 // loop_footer_branch
                  %550 = sbr.rel target = $region111
                $region116: #{gpt_forward.16} parent=108 // loop_exit
                  _
              $region109: #{gpt_forward.16} parent=93 // pred_fallthru
                _
              // Predicated region
              $region117: #{gpt_forward.16} parent=93 // pred_check
                _
              $region118: #{gpt_forward.16} parent=93 // pred_check_branch
                %563 = sbr.rel target = $region120
              $region119: #{gpt_forward.16} parent=93 // pred_region
                _
              $region120: #{gpt_forward.16} parent=93 // pred_fallthru
                _
            $region94: #{gpt_forward.16} parent=89 // pred_fallthru
              _
            // Predicated region
            $region95: #{gpt_forward.16} parent=89 // pred_check
              _
            $region96: #{gpt_forward.16} parent=89 // pred_check_branch
              %533 = sbr.rel target = $region98
            $region97: #{gpt_forward.16} parent=89 // pred_region
              %s535 = ssub.s32 256, 1
              loop: start=0, step=1, limit=1
              $region99: #{gpt_forward.16} parent=97 // loop_pre_header
                _
              $region100: #{gpt_forward.16} parent=97 // loop_header
                %s537 = sphi 0, %s541
                %p538 = scmp.ge.s32.totalorder %s537, 1
                %s542 = sphi %s519, %s519
                %s543 = sphi %s527, %s527
              $region101: #{gpt_forward.16} parent=97 // loop_header_branch
                %540 = sbr.rel (%p538) target = $region105
              $region102: #{gpt_forward.16} parent=97 // loop_body
                %v544 = vld [vmem:[%s542] sm:%s535]
                %545 = vst [vmem:[%s543] sm:%s535] %v544
                %v546 = vld [vmem:[%s542 + $0x8] sm:%s535]
                %547 = vst [vmem:[%s543 + $0x18] sm:%s535] %v546
              $region103: #{gpt_forward.16} parent=97 // loop_footer
                %s541 = sadd.s32 1, %s537
              $region104: #{gpt_forward.16} parent=97 // loop_footer_branch
                %536 = sbr.rel target = $region100
              $region105: #{gpt_forward.16} parent=97 // loop_exit
                _
            $region98: #{gpt_forward.16} parent=89 // pred_fallthru
              _
          $region90: #{gpt_forward.16} parent=85 // pred_fallthru
            _
          %564 = vnop
        $region86: #{gpt_forward.16} parent=73 // pred_fallthru
          _
      $region74: #{gpt_forward.16} parent=5 // pred_fallthru
        _
      %p565 = scmp.le.s32.totalorder 2, %s11
      // Predicated region
      $region121: #{gpt_forward.16} parent=5 // pred_check
        %p566 = pneg %p565
      $region122: #{gpt_forward.16} parent=5 // pred_check_branch
        %568 = sbr.rel (%p566) target = $region124
      $region123: #{gpt_forward.16} parent=5 // pred_region
        %s569 = ssub.s32 %s11, 2
        // Predicated region
        $region125: #{gpt_forward.16} parent=123 // pred_check
          %p570 = pneg %p174
        $region126: #{gpt_forward.16} parent=123 // pred_check_branch
          %572 = sbr.rel (%p570) target = $region128
        $region127: #{gpt_forward.16} parent=123 // pred_region
          %s573 = sand.u32 %s159, 1
          %s574 = sand.u32 %s159, 1
          %s575 = smul.addr %s574, 16
          %s576 = scalar_lea.vmem [#allocation4], %s575
        $region128: #{gpt_forward.16} parent=123 // pred_fallthru
          _
      $region124: #{gpt_forward.16} parent=5 // pred_fallthru
        _
    $region6: #{gpt_forward.16} parent=1 // loop_footer
      %s15 = sadd.s32 1, %s11
    $region7: #{gpt_forward.16} parent=1 // loop_footer_branch
      %10 = sbr.rel target = $region3
    $region8: #{gpt_forward.16} parent=1 // loop_exit
      _

// kernel: gpt_forward.21
$region0: #{gpt_forward.21}
  #allocation0 [shape = 'u32[]', space=smem, size = 0x4, offset = 0x4, fixed_abs, tag = 'smem constant byte address 0x4 - core index']
  #allocation1 [shape = 'u32[144,128]{1,0:T(1,128)}', space=vmem, size = 0x12000, scoped, tag = 'internal scratch']
  #allocation2 [shape = 'f32[16,128]{1,0:T(8,128)}', space=vmem, size = 0x2000, scoped, tag = 'scratch operand']
  %s0 = inlined_call_operand.vmem [shape: f32[16,128], index: 0, kind: input, shape index: {}]
  %s1 = inlined_call_operand.vmem [shape: f32[1,128], index: 1, kind: input, shape index: {}]
  %s2 = inlined_call_operand.vmem [shape: f32[1,128], index: 2, kind: input, shape index: {}]
  %s3 = inlined_call_operand.vmem [shape: f32[256,128], index: 3, kind: input, shape index: {}]
  %s4 = inlined_call_operand.vmem [shape: f32[16,256], index: 4, kind: output, shape index: {}]
  %s5 = sld [smem:[#allocation0]]
  $region30: #{gpt_forward.21} parent=0
    _
  %s7 = ssub.s32 1, %s5
  %s8 = scalar_select 0, %s7, %s5
  // Predicated region
  $region2: #{gpt_forward.21} parent=0 // pred_check
    _
  $region3: #{gpt_forward.21} parent=0 // pred_check_branch
    %10 = sbr.rel (0) target = $region5
  $region4: #{gpt_forward.21} parent=0 // pred_region
    _
  $region5: #{gpt_forward.21} parent=0 // pred_fallthru
    _
  // Predicated region
  $region6: #{gpt_forward.21} parent=0 // pred_check
    _
  $region7: #{gpt_forward.21} parent=0 // pred_check_branch
    %12 = sbr.rel (0) target = $region9
  $region8: #{gpt_forward.21} parent=0 // pred_region
    _
  $region9: #{gpt_forward.21} parent=0 // pred_fallthru
    _
  // Predicated region
  $region10: #{gpt_forward.21} parent=0 // pred_check
    _
  $region11: #{gpt_forward.21} parent=0 // pred_check_branch
    %14 = sbr.rel (0) target = $region13
  $region12: #{gpt_forward.21} parent=0 // pred_region
    _
  $region13: #{gpt_forward.21} parent=0 // pred_fallthru
    _
  // Predicated region
  $region14: #{gpt_forward.21} parent=0 // pred_check
    _
  $region15: #{gpt_forward.21} parent=0 // pred_check_branch
    %16 = sbr.rel (0) target = $region17
  $region16: #{gpt_forward.21} parent=0 // pred_region
    _
  $region17: #{gpt_forward.21} parent=0 // pred_fallthru
    _
  %p17 = scmp.eq.s32.totalorder 0, 0
  // Predicated region
  $region18: #{gpt_forward.21} parent=0 // pred_check
    %p18 = pneg %p17
  $region19: #{gpt_forward.21} parent=0 // pred_check_branch
    %20 = sbr.rel (%p18) target = $region21
  $region20: #{gpt_forward.21} parent=0 // pred_region
    %v21 = vld [vmem:[%s0] sm:$0xff]
    %v22 = vld [vmem:[%s0 + $0x8] sm:$0xff]
    %23 = vadd.xlane.f32.xlu0 %v21
    %v24 = vpop.xlane.xlu0 %23
    %25 = vadd.xlane.f32.xlu0 %v22
    %v26 = vpop.xlane.xlu0 %25
    %v27 = vrcp.pop 128.0
    %v28 = vmul.f32 %v24, %v27
    %v29 = vmul.f32 %v26, %v27
    %v30 = vsub.f32 %v21, %v28
    %v31 = vsub.f32 %v22, %v29
    %v32 = vmul.f32 %v30, %v30
    %v33 = vmul.f32 %v31, %v31
    %34 = vadd.xlane.f32.xlu0 %v32
    %v35 = vpop.xlane.xlu0 %34
    %36 = vadd.xlane.f32.xlu0 %v33
    %v37 = vpop.xlane.xlu0 %36
    %v38 = vmul.f32 %v35, %v27
    %v39 = vmul.f32 %v37, %v27
    %v40 = vadd.f32 %v38, 1e-05
    %v41 = vadd.f32 %v39, 1e-05
    %v42 = vrsqrt.pop %v40
    %v43 = vrsqrt.pop %v41
    %v44 = vmul.f32 %v30, %v42
    %v45 = vmul.f32 %v31, %v43
    %v46 = vld [vmem:[%s1] sm:$0x1]
    %v48 = vlaneseq
    %v49 = vshrl.u32 %v48, 7
    %v50 = vsub.s32 0, %v49
    %v51 = vrot.slane %v46, %v50
    %v53 = vmul.f32 %v44, %v51
    %v54 = vmul.f32 %v45, %v51
    %v55 = vld [vmem:[%s2] sm:$0x1]
    %v57 = vlaneseq
    %v58 = vshrl.u32 %v57, 7
    %v59 = vsub.s32 0, %v58
    %v60 = vrot.slane %v55, %v59
    %v62 = vadd.f32 %v53, %v60
    %v63 = vadd.f32 %v54, %v60
    %64 = vst [vmem:[#allocation2] sm:$0xff] %v62
    %65 = vst [vmem:[#allocation2 + $0x8] sm:$0xff] %v63
  $region21: #{gpt_forward.21} parent=0 // pred_fallthru
    _
  %v66 = vld [vmem:[#allocation2] sm:$0xff]
  %v67 = vld [vmem:[#allocation2 + $0x8] sm:$0xff]
  %v68 = vld [vmem:[%s3] sm:$0xff]
  %v69 = vld [vmem:[%s3 + $0x8] sm:$0xff]
  %v70 = vld [vmem:[%s3 + $0x10] sm:$0xff]
  %v71 = vld [vmem:[%s3 + $0x18] sm:$0xff]
  %v72 = vld [vmem:[%s3 + $0x20] sm:$0xff]
  %v73 = vld [vmem:[%s3 + $0x28] sm:$0xff]
  %v74 = vld [vmem:[%s3 + $0x30] sm:$0xff]
  %v75 = vld [vmem:[%s3 + $0x38] sm:$0xff]
  %v76 = vld [vmem:[%s3 + $0x40] sm:$0xff]
  %v77 = vld [vmem:[%s3 + $0x48] sm:$0xff]
  %v78 = vld [vmem:[%s3 + $0x50] sm:$0xff]
  %v79 = vld [vmem:[%s3 + $0x58] sm:$0xff]
  %v80 = vld [vmem:[%s3 + $0x60] sm:$0xff]
  %v81 = vld [vmem:[%s3 + $0x68] sm:$0xff]
  %v82 = vld [vmem:[%s3 + $0x70] sm:$0xff]
  %v83 = vld [vmem:[%s3 + $0x78] sm:$0xff]
  %v84 = vld [vmem:[%s3 + $0x80] sm:$0xff]
  %v85 = vld [vmem:[%s3 + $0x88] sm:$0xff]
  %v86 = vld [vmem:[%s3 + $0x90] sm:$0xff]
  %v87 = vld [vmem:[%s3 + $0x98] sm:$0xff]
  %v88 = vld [vmem:[%s3 + $0xa0] sm:$0xff]
  %v89 = vld [vmem:[%s3 + $0xa8] sm:$0xff]
  %v90 = vld [vmem:[%s3 + $0xb0] sm:$0xff]
  %v91 = vld [vmem:[%s3 + $0xb8] sm:$0xff]
  %v92 = vld [vmem:[%s3 + $0xc0] sm:$0xff]
  %v93 = vld [vmem:[%s3 + $0xc8] sm:$0xff]
  %v94 = vld [vmem:[%s3 + $0xd0] sm:$0xff]
  %v95 = vld [vmem:[%s3 + $0xd8] sm:$0xff]
  %v96 = vld [vmem:[%s3 + $0xe0] sm:$0xff]
  %v97 = vld [vmem:[%s3 + $0xe8] sm:$0xff]
  %v98 = vld [vmem:[%s3 + $0xf0] sm:$0xff]
  %v99 = vld [vmem:[%s3 + $0xf8] sm:$0xff]
  %100 = vmatprep.subr.mxu0 0.0
  %101 = vmatpush1.xpose.msra.mxu0 %v83
  %102 = vmatprep.subr.mxu0 0.0
  %103 = vmatpush1.xpose.msra.mxu0 %v82
  %104 = vmatprep.subr.mxu0 0.0
  %105 = vmatpush1.xpose.msra.mxu0 %v81
  %106 = vmatprep.subr.mxu0 0.0
  %107 = vmatpush1.xpose.msra.mxu0 %v80
  %108 = vmatprep.subr.mxu0 0.0
  %109 = vmatpush1.xpose.msra.mxu0 %v79
  %110 = vmatprep.subr.mxu0 0.0
  %111 = vmatpush1.xpose.msra.mxu0 %v78
  %112 = vmatprep.subr.mxu0 0.0
  %113 = vmatpush1.xpose.msra.mxu0 %v77
  %114 = vmatprep.subr.mxu0 0.0
  %115 = vmatpush1.xpose.msra.mxu0 %v76
  %116 = vmatprep.subr.mxu0 0.0
  %117 = vmatpush1.xpose.msra.mxu0 %v75
  %118 = vmatprep.subr.mxu0 0.0
  %119 = vmatpush1.xpose.msra.mxu0 %v74
  %120 = vmatprep.subr.mxu0 0.0
  %121 = vmatpush1.xpose.msra.mxu0 %v73
  %122 = vmatprep.subr.mxu0 0.0
  %123 = vmatpush1.xpose.msra.mxu0 %v72
  %124 = vmatprep.subr.mxu0 0.0
  %125 = vmatpush1.xpose.msra.mxu0 %v71
  %126 = vmatprep.subr.mxu0 0.0
  %127 = vmatpush1.xpose.msra.mxu0 %v70
  %128 = vmatprep.subr.mxu0 0.0
  %129 = vmatpush1.xpose.msra.mxu0 %v69
  %130 = vmatprep.subr.mxu0 0.0
  %131 = vmatpush1.xpose.msra.mxu0 %v68
  %132 = vmatprep.subr.mxu0 0.0
  %133 = vmatpush2.xpose.msra.mxu0 %v99
  %134 = vmatprep.subr.mxu0 0.0
  %135 = vmatpush2.xpose.msra.mxu0 %v98
  %136 = vmatprep.subr.mxu0 0.0
  %137 = vmatpush2.xpose.msra.mxu0 %v97
  %138 = vmatprep.subr.mxu0 0.0
  %139 = vmatpush2.xpose.msra.mxu0 %v96
  %140 = vmatprep.subr.mxu0 0.0
  %141 = vmatpush2.xpose.msra.mxu0 %v95
  %142 = vmatprep.subr.mxu0 0.0
  %143 = vmatpush2.xpose.msra.mxu0 %v94
  %144 = vmatprep.subr.mxu0 0.0
  %145 = vmatpush2.xpose.msra.mxu0 %v93
  %146 = vmatprep.subr.mxu0 0.0
  %147 = vmatpush2.xpose.msra.mxu0 %v92
  %148 = vmatprep.subr.mxu0 0.0
  %149 = vmatpush2.xpose.msra.mxu0 %v91
  %150 = vmatprep.subr.mxu0 0.0
  %151 = vmatpush2.xpose.msra.mxu0 %v90
  %152 = vmatprep.subr.mxu0 0.0
  %153 = vmatpush2.xpose.msra.mxu0 %v89
  %154 = vmatprep.subr.mxu0 0.0
  %155 = vmatpush2.xpose.msra.mxu0 %v88
  %156 = vmatprep.subr.mxu0 0.0
  %157 = vmatpush2.xpose.msra.mxu0 %v87
  %158 = vmatprep.subr.mxu0 0.0
  %159 = vmatpush2.xpose.msra.mxu0 %v86
  %160 = vmatprep.subr.mxu0 0.0
  %161 = vmatpush2.xpose.msra.mxu0 %v85
  %162 = vmatprep.subr.mxu0 0.0
  %163 = vmatpush2.xpose.msra.mxu0 %v84
  %164 = vmatprep.mubr.f32.mxu0 0.0
  %165 = vmatmul.mubr.f32.gmra.mxu0 %v66
  %v166 = vpop.f32.mrf.mxu0
  %v167 = vadd.f32 0.0, %v166
  %v168 = vpop.f32.mrf.mxu0
  %v169 = vadd.f32 0.0, %v168
  %170 = vmatprep.mubr.f32.mxu0 0.0
  %171 = vmatmul.mubr.f32.gmra.mxu0 %v67
  %v172 = vpop.f32.mrf.mxu0
  %v173 = vadd.f32 0.0, %v172
  %v174 = vpop.f32.mrf.mxu0
  %v175 = vadd.f32 0.0, %v174
  %176 = vdwg.mxu0
  %177 = vst [vmem:[%s4] sm:$0xff] %v167
  %178 = vst [vmem:[%s4 + $0x8] sm:$0xff] %v169
  %179 = vst [vmem:[%s4 + $0x10] sm:$0xff] %v173
  %180 = vst [vmem:[%s4 + $0x18] sm:$0xff] %v175
  // Predicated region
  $region22: #{gpt_forward.21} parent=0 // pred_check
    _
  $region23: #{gpt_forward.21} parent=0 // pred_check_branch
    %182 = sbr.rel (0) target = $region25
  $region24: #{gpt_forward.21} parent=0 // pred_region
    _
  $region25: #{gpt_forward.21} parent=0 // pred_fallthru
    _
  // Predicated region
  $region26: #{gpt_forward.21} parent=0 // pred_check
    _
  $region27: #{gpt_forward.21} parent=0 // pred_check_branch
    %184 = sbr.rel (0) target = $region29
  $region28: #{gpt_forward.21} parent=0 // pred_region
    _
  $region29: #{gpt_forward.21} parent=0 // pred_fallthru
    _

// kernel: gpt_forward.15
$region0: #{gpt_forward.15}
  #allocation0 [shape = 'u32[]', space=smem, size = 0x4, offset = 0x4, fixed_abs, tag = 'smem constant byte address 0x4 - core index']
  #allocation1 [shape = 'u32[144,128]{1,0:T(1,128)}', space=vmem, size = 0x12000, scoped, tag = 'internal scratch']
  #allocation2 [shape = 'f32[16,128]{1,0:T(8,128)}', space=vmem, size = 0x2000, scoped, tag = 'scratch operand']
  %s0 = inlined_call_operand.vmem [shape: f32[16,512], index: 0, kind: input, shape index: {}]
  %s1 = inlined_call_operand.vmem [shape: f32[512,128], index: 1, kind: input, shape index: {}]
  %s2 = inlined_call_operand.vmem [shape: f32[1,128], index: 2, kind: input, shape index: {}]
  %s3 = inlined_call_operand.vmem [shape: f32[16,128], index: 3, kind: input, shape index: {}]
  %s4 = inlined_call_operand.vmem [shape: f32[16,128], index: 4, kind: output, shape index: {}]
  %s5 = sld [smem:[#allocation0]]
  $region34: #{gpt_forward.15} parent=0
    _
  %s7 = ssub.s32 1, %s5
  %s8 = scalar_select 0, %s7, %s5
  // Predicated region
  $region2: #{gpt_forward.15} parent=0 // pred_check
    _
  $region3: #{gpt_forward.15} parent=0 // pred_check_branch
    %10 = sbr.rel (0) target = $region5
  $region4: #{gpt_forward.15} parent=0 // pred_region
    _
  $region5: #{gpt_forward.15} parent=0 // pred_fallthru
    _
  // Predicated region
  $region6: #{gpt_forward.15} parent=0 // pred_check
    _
  $region7: #{gpt_forward.15} parent=0 // pred_check_branch
    %12 = sbr.rel (0) target = $region9
  $region8: #{gpt_forward.15} parent=0 // pred_region
    _
  $region9: #{gpt_forward.15} parent=0 // pred_fallthru
    _
  // Predicated region
  $region10: #{gpt_forward.15} parent=0 // pred_check
    _
  $region11: #{gpt_forward.15} parent=0 // pred_check_branch
    %14 = sbr.rel (0) target = $region13
  $region12: #{gpt_forward.15} parent=0 // pred_region
    _
  $region13: #{gpt_forward.15} parent=0 // pred_fallthru
    _
  // Predicated region
  $region14: #{gpt_forward.15} parent=0 // pred_check
    _
  $region15: #{gpt_forward.15} parent=0 // pred_check_branch
    %16 = sbr.rel (0) target = $region17
  $region16: #{gpt_forward.15} parent=0 // pred_region
    _
  $region17: #{gpt_forward.15} parent=0 // pred_fallthru
    _
  %p17 = scmp.eq.s32.totalorder 0, 0
  // Predicated region
  $region18: #{gpt_forward.15} parent=0 // pred_check
    %p18 = pneg %p17
  $region19: #{gpt_forward.15} parent=0 // pred_check_branch
    %20 = sbr.rel (%p18) target = $region21
  $region20: #{gpt_forward.15} parent=0 // pred_region
    %21 = vst [vmem:[#allocation2] sm:$0xff] 0.0
    %22 = vst [vmem:[#allocation2 + $0x8] sm:$0xff] 0.0
  $region21: #{gpt_forward.15} parent=0 // pred_fallthru
    _
  %v23 = vld [vmem:[#allocation2] sm:$0xff]
  %v24 = vld [vmem:[#allocation2 + $0x8] sm:$0xff]
  %v25 = vld [vmem:[%s0] sm:$0xff]
  %v26 = vld [vmem:[%s0 + $0x8] sm:$0xff]
  %v27 = vld [vmem:[%s0 + $0x10] sm:$0xff]
  %v28 = vld [vmem:[%s0 + $0x18] sm:$0xff]
  %v29 = vld [vmem:[%s0 + $0x20] sm:$0xff]
  %v30 = vld [vmem:[%s0 + $0x28] sm:$0xff]
  %v31 = vld [vmem:[%s0 + $0x30] sm:$0xff]
  %v32 = vld [vmem:[%s0 + $0x38] sm:$0xff]
  %v33 = vld [vmem:[%s1] sm:$0xff]
  %v34 = vld [vmem:[%s1 + $0x8] sm:$0xff]
  %v35 = vld [vmem:[%s1 + $0x10] sm:$0xff]
  %v36 = vld [vmem:[%s1 + $0x18] sm:$0xff]
  %v37 = vld [vmem:[%s1 + $0x20] sm:$0xff]
  %v38 = vld [vmem:[%s1 + $0x28] sm:$0xff]
  %v39 = vld [vmem:[%s1 + $0x30] sm:$0xff]
  %v40 = vld [vmem:[%s1 + $0x38] sm:$0xff]
  %v41 = vld [vmem:[%s1 + $0x40] sm:$0xff]
  %v42 = vld [vmem:[%s1 + $0x48] sm:$0xff]
  %v43 = vld [vmem:[%s1 + $0x50] sm:$0xff]
  %v44 = vld [vmem:[%s1 + $0x58] sm:$0xff]
  %v45 = vld [vmem:[%s1 + $0x60] sm:$0xff]
  %v46 = vld [vmem:[%s1 + $0x68] sm:$0xff]
  %v47 = vld [vmem:[%s1 + $0x70] sm:$0xff]
  %v48 = vld [vmem:[%s1 + $0x78] sm:$0xff]
  %v49 = vld [vmem:[%s1 + $0x80] sm:$0xff]
  %v50 = vld [vmem:[%s1 + $0x88] sm:$0xff]
  %v51 = vld [vmem:[%s1 + $0x90] sm:$0xff]
  %v52 = vld [vmem:[%s1 + $0x98] sm:$0xff]
  %v53 = vld [vmem:[%s1 + $0xa0] sm:$0xff]
  %v54 = vld [vmem:[%s1 + $0xa8] sm:$0xff]
  %v55 = vld [vmem:[%s1 + $0xb0] sm:$0xff]
  %v56 = vld [vmem:[%s1 + $0xb8] sm:$0xff]
  %v57 = vld [vmem:[%s1 + $0xc0] sm:$0xff]
  %v58 = vld [vmem:[%s1 + $0xc8] sm:$0xff]
  %v59 = vld [vmem:[%s1 + $0xd0] sm:$0xff]
  %v60 = vld [vmem:[%s1 + $0xd8] sm:$0xff]
  %v61 = vld [vmem:[%s1 + $0xe0] sm:$0xff]
  %v62 = vld [vmem:[%s1 + $0xe8] sm:$0xff]
  %v63 = vld [vmem:[%s1 + $0xf0] sm:$0xff]
  %v64 = vld [vmem:[%s1 + $0xf8] sm:$0xff]
  %v65 = vld [vmem:[%s1 + $0x100] sm:$0xff]
  %v66 = vld [vmem:[%s1 + $0x108] sm:$0xff]
  %v67 = vld [vmem:[%s1 + $0x110] sm:$0xff]
  %v68 = vld [vmem:[%s1 + $0x118] sm:$0xff]
  %v69 = vld [vmem:[%s1 + $0x120] sm:$0xff]
  %v70 = vld [vmem:[%s1 + $0x128] sm:$0xff]
  %v71 = vld [vmem:[%s1 + $0x130] sm:$0xff]
  %v72 = vld [vmem:[%s1 + $0x138] sm:$0xff]
  %v73 = vld [vmem:[%s1 + $0x140] sm:$0xff]
  %v74 = vld [vmem:[%s1 + $0x148] sm:$0xff]
  %v75 = vld [vmem:[%s1 + $0x150] sm:$0xff]
  %v76 = vld [vmem:[%s1 + $0x158] sm:$0xff]
  %v77 = vld [vmem:[%s1 + $0x160] sm:$0xff]
  %v78 = vld [vmem:[%s1 + $0x168] sm:$0xff]
  %v79 = vld [vmem:[%s1 + $0x170] sm:$0xff]
  %v80 = vld [vmem:[%s1 + $0x178] sm:$0xff]
  %v81 = vld [vmem:[%s1 + $0x180] sm:$0xff]
  %v82 = vld [vmem:[%s1 + $0x188] sm:$0xff]
  %v83 = vld [vmem:[%s1 + $0x190] sm:$0xff]
  %v84 = vld [vmem:[%s1 + $0x198] sm:$0xff]
  %v85 = vld [vmem:[%s1 + $0x1a0] sm:$0xff]
  %v86 = vld [vmem:[%s1 + $0x1a8] sm:$0xff]
  %v87 = vld [vmem:[%s1 + $0x1b0] sm:$0xff]
  %v88 = vld [vmem:[%s1 + $0x1b8] sm:$0xff]
  %v89 = vld [vmem:[%s1 + $0x1c0] sm:$0xff]
  %v90 = vld [vmem:[%s1 + $0x1c8] sm:$0xff]
  %v91 = vld [vmem:[%s1 + $0x1d0] sm:$0xff]
  %v92 = vld [vmem:[%s1 + $0x1d8] sm:$0xff]
  %v93 = vld [vmem:[%s1 + $0x1e0] sm:$0xff]
  %v94 = vld [vmem:[%s1 + $0x1e8] sm:$0xff]
  %v95 = vld [vmem:[%s1 + $0x1f0] sm:$0xff]
  %v96 = vld [vmem:[%s1 + $0x1f8] sm:$0xff]
  %97 = vmatprep.subr.mxu0 0.0
  %98 = vmatpush1.msra.mxu0 %v48
  %99 = vmatprep.subr.mxu0 0.0
  %100 = vmatpush1.msra.mxu0 %v47
  %101 = vmatprep.subr.mxu0 0.0
  %102 = vmatpush1.msra.mxu0 %v46
  %103 = vmatprep.subr.mxu0 0.0
  %104 = vmatpush1.msra.mxu0 %v45
  %105 = vmatprep.subr.mxu0 0.0
  %106 = vmatpush1.msra.mxu0 %v44
  %107 = vmatprep.subr.mxu0 0.0
  %108 = vmatpush1.msra.mxu0 %v43
  %109 = vmatprep.subr.mxu0 0.0
  %110 = vmatpush1.msra.mxu0 %v42
  %111 = vmatprep.subr.mxu0 0.0
  %112 = vmatpush1.msra.mxu0 %v41
  %113 = vmatprep.subr.mxu0 0.0
  %114 = vmatpush1.msra.mxu0 %v40
  %115 = vmatprep.subr.mxu0 0.0
  %116 = vmatpush1.msra.mxu0 %v39
  %117 = vmatprep.subr.mxu0 0.0
  %118 = vmatpush1.msra.mxu0 %v38
  %119 = vmatprep.subr.mxu0 0.0
  %120 = vmatpush1.msra.mxu0 %v37
  %121 = vmatprep.subr.mxu0 0.0
  %122 = vmatpush1.msra.mxu0 %v36
  %123 = vmatprep.subr.mxu0 0.0
  %124 = vmatpush1.msra.mxu0 %v35
  %125 = vmatprep.subr.mxu0 0.0
  %126 = vmatpush1.msra.mxu0 %v34
  %127 = vmatprep.subr.mxu0 0.0
  %128 = vmatpush1.msra.mxu0 %v33
  %129 = vmatprep.subr.mxu0 0.0
  %130 = vmatpush2.msra.mxu0 %v64
  %131 = vmatprep.subr.mxu0 0.0
  %132 = vmatpush2.msra.mxu0 %v63
  %133 = vmatprep.subr.mxu0 0.0
  %134 = vmatpush2.msra.mxu0 %v62
  %135 = vmatprep.subr.mxu0 0.0
  %136 = vmatpush2.msra.mxu0 %v61
  %137 = vmatprep.subr.mxu0 0.0
  %138 = vmatpush2.msra.mxu0 %v60
  %139 = vmatprep.subr.mxu0 0.0
  %140 = vmatpush2.msra.mxu0 %v59
  %141 = vmatprep.subr.mxu0 0.0
  %142 = vmatpush2.msra.mxu0 %v58
  %143 = vmatprep.subr.mxu0 0.0
  %144 = vmatpush2.msra.mxu0 %v57
  %145 = vmatprep.subr.mxu0 0.0
  %146 = vmatpush2.msra.mxu0 %v56
  %147 = vmatprep.subr.mxu0 0.0
  %148 = vmatpush2.msra.mxu0 %v55
  %149 = vmatprep.subr.mxu0 0.0
  %150 = vmatpush2.msra.mxu0 %v54
  %151 = vmatprep.subr.mxu0 0.0
  %152 = vmatpush2.msra.mxu0 %v53
  %153 = vmatprep.subr.mxu0 0.0
  %154 = vmatpush2.msra.mxu0 %v52
  %155 = vmatprep.subr.mxu0 0.0
  %156 = vmatpush2.msra.mxu0 %v51
  %157 = vmatprep.subr.mxu0 0.0
  %158 = vmatpush2.msra.mxu0 %v50
  %159 = vmatprep.subr.mxu0 0.0
  %160 = vmatpush2.msra.mxu0 %v49
  %161 = vmatprep.mubr.f32.mxu0 %v26
  %162 = vmatmul.mubr.f32.gmra.mxu0 %v25
  %v163 = vpop.f32.mrf.mxu0
  %v164 = vadd.f32 0.0, %v163
  %v165 = vpop.f32.mrf.mxu0
  %166 = vmatprep.mubr.f32.mxu0 %v30
  %167 = vmatmul.mubr.f32.gmra.mxu0 %v29
  %v168 = vpop.f32.mrf.mxu0
  %v169 = vadd.f32 0.0, %v168
  %v170 = vpop.f32.mrf.mxu0
  %171 = vdwg.mxu0
  %172 = vmatprep.subr.mxu0 0.0
  %173 = vmatpush1.msra.mxu0 %v80
  %174 = vmatprep.subr.mxu0 0.0
  %175 = vmatpush1.msra.mxu0 %v79
  %176 = vmatprep.subr.mxu0 0.0
  %177 = vmatpush1.msra.mxu0 %v78
  %178 = vmatprep.subr.mxu0 0.0
  %179 = vmatpush1.msra.mxu0 %v77
  %180 = vmatprep.subr.mxu0 0.0
  %181 = vmatpush1.msra.mxu0 %v76
  %182 = vmatprep.subr.mxu0 0.0
  %183 = vmatpush1.msra.mxu0 %v75
  %184 = vmatprep.subr.mxu0 0.0
  %185 = vmatpush1.msra.mxu0 %v74
  %186 = vmatprep.subr.mxu0 0.0
  %187 = vmatpush1.msra.mxu0 %v73
  %188 = vmatprep.subr.mxu0 0.0
  %189 = vmatpush1.msra.mxu0 %v72
  %190 = vmatprep.subr.mxu0 0.0
  %191 = vmatpush1.msra.mxu0 %v71
  %192 = vmatprep.subr.mxu0 0.0
  %193 = vmatpush1.msra.mxu0 %v70
  %194 = vmatprep.subr.mxu0 0.0
  %195 = vmatpush1.msra.mxu0 %v69
  %196 = vmatprep.subr.mxu0 0.0
  %197 = vmatpush1.msra.mxu0 %v68
  %198 = vmatprep.subr.mxu0 0.0
  %199 = vmatpush1.msra.mxu0 %v67
  %200 = vmatprep.subr.mxu0 0.0
  %201 = vmatpush1.msra.mxu0 %v66
  %202 = vmatprep.subr.mxu0 0.0
  %203 = vmatpush1.msra.mxu0 %v65
  %204 = vmatprep.subr.mxu0 0.0
  %205 = vmatpush2.msra.mxu0 %v96
  %206 = vmatprep.subr.mxu0 0.0
  %207 = vmatpush2.msra.mxu0 %v95
  %208 = vmatprep.subr.mxu0 0.0
  %209 = vmatpush2.msra.mxu0 %v94
  %210 = vmatprep.subr.mxu0 0.0
  %211 = vmatpush2.msra.mxu0 %v93
  %212 = vmatprep.subr.mxu0 0.0
  %213 = vmatpush2.msra.mxu0 %v92
  %214 = vmatprep.subr.mxu0 0.0
  %215 = vmatpush2.msra.mxu0 %v91
  %216 = vmatprep.subr.mxu0 0.0
  %217 = vmatpush2.msra.mxu0 %v90
  %218 = vmatprep.subr.mxu0 0.0
  %219 = vmatpush2.msra.mxu0 %v89
  %220 = vmatprep.subr.mxu0 0.0
  %221 = vmatpush2.msra.mxu0 %v88
  %222 = vmatprep.subr.mxu0 0.0
  %223 = vmatpush2.msra.mxu0 %v87
  %224 = vmatprep.subr.mxu0 0.0
  %225 = vmatpush2.msra.mxu0 %v86
  %226 = vmatprep.subr.mxu0 0.0
  %227 = vmatpush2.msra.mxu0 %v85
  %228 = vmatprep.subr.mxu0 0.0
  %229 = vmatpush2.msra.mxu0 %v84
  %230 = vmatprep.subr.mxu0 0.0
  %231 = vmatpush2.msra.mxu0 %v83
  %232 = vmatprep.subr.mxu0 0.0
  %233 = vmatpush2.msra.mxu0 %v82
  %234 = vmatprep.subr.mxu0 0.0
  %235 = vmatpush2.msra.mxu0 %v81
  %236 = vmatprep.mubr.f32.mxu0 %v28
  %237 = vmatmul.mubr.f32.gmra.mxu0 %v27
  %v238 = vpop.f32.mrf.mxu0
  %v239 = vadd.f32 %v164, %v238
  %v240 = vpop.f32.mrf.mxu0
  %241 = vmatprep.mubr.f32.mxu0 %v32
  %242 = vmatmul.mubr.f32.gmra.mxu0 %v31
  %v243 = vpop.f32.mrf.mxu0
  %v244 = vadd.f32 %v169, %v243
  %v245 = vpop.f32.mrf.mxu0
  %246 = vdwg.mxu0
  %v247 = vadd.f32 %v23, %v239
  %v248 = vadd.f32 %v24, %v244
  %249 = vst [vmem:[#allocation2] sm:$0xff] %v247
  %250 = vst [vmem:[#allocation2 + $0x8] sm:$0xff] %v248
  // Predicated region
  $region22: #{gpt_forward.15} parent=0 // pred_check
    %p251 = pneg %p17
  $region23: #{gpt_forward.15} parent=0 // pred_check_branch
    %253 = sbr.rel (%p251) target = $region25
  $region24: #{gpt_forward.15} parent=0 // pred_region
    %v254 = vld [vmem:[#allocation2] sm:$0xff]
    %v255 = vld [vmem:[#allocation2 + $0x8] sm:$0xff]
    %v256 = vld [vmem:[%s2] sm:$0x1]
    %v258 = vlaneseq
    %v259 = vshrl.u32 %v258, 7
    %v260 = vsub.s32 0, %v259
    %v261 = vrot.slane %v256, %v260
    %v263 = vadd.f32 %v254, %v261
    %v264 = vadd.f32 %v255, %v261
    %v265 = vld [vmem:[%s3] sm:$0xff]
    %v266 = vld [vmem:[%s3 + $0x8] sm:$0xff]
    %v267 = vadd.f32 %v263, %v265
    %v268 = vadd.f32 %v264, %v266
    %269 = vst [vmem:[%s4] sm:$0xff] %v267
    %270 = vst [vmem:[%s4 + $0x8] sm:$0xff] %v268
  $region25: #{gpt_forward.15} parent=0 // pred_fallthru
    _
  // Predicated region
  $region26: #{gpt_forward.15} parent=0 // pred_check
    _
  $region27: #{gpt_forward.15} parent=0 // pred_check_branch
    %272 = sbr.rel (0) target = $region29
  $region28: #{gpt_forward.15} parent=0 // pred_region
    _
  $region29: #{gpt_forward.15} parent=0 // pred_fallthru
    _
  // Predicated region
  $region30: #{gpt_forward.15} parent=0 // pred_check
    _
  $region31: #{gpt_forward.15} parent=0 // pred_check_branch
    %274 = sbr.rel (0) target = $region33
  $region32: #{gpt_forward.15} parent=0 // pred_region
    _
  $region33: #{gpt_forward.15} parent=0 // pred_fallthru
    _

</llo_original>
